<compile_context>
chip_gen: v7x
topology: tpu7x:2x2x1
jax: 0.10.0
libtpu: 0.0.40
codegen_flags: <defaults>
</compile_context>

<pallas_src>
import functools

import jax
import jax.numpy as jnp
from jax.experimental import pallas as pl
from jax.experimental.pallas import tpu as pltpu


def _gat3_fused_kernel(x_ref, adj_ref,
                       w1_ref, a1_ref, b1_ref,
                       w2_ref, a2_ref, b2_ref,
                       w3_ref, a3_ref, b3_ref,
                       o_ref,
                       *, heads, c1, c2, num_classes, ones_lane):
    """All three GATConv layers, fully resident in VMEM (single program)."""
    adj = adj_ref[...]                  # [Np, Np] bf16 edge counts, adj[dst, src]
    f_pad = o_ref.shape[1]

    def mm(a, b):
        # f32 operands, f32 accumulation on the MXU (MXU is not the binding
        # unit in this kernel, so keep full precision for torch parity).
        return jnp.dot(a, b, preferred_element_type=jnp.float32)

    def attention_aggregate(dst_col, src_row, src_max, xp_ones):
        # softmax(leaky_relu(dst_i + src_j)) over incoming edges, then aggregate.
        # Non-edges are zeroed by `* adj` (which also carries parallel-edge
        # multiplicity), so no mask / NEG_INF pass is needed.  The stabilizer
        # is an analytic upper bound on the true row max (leaky_relu monotone),
        # so exp never overflows; the row-sum comes back fused in the MXU
        # matmul via the constant-1 lane of xp_ones.
        t = dst_col + src_max                       # [Np, 1]
        m = jnp.maximum(t, 0.2 * t)                 # >= true masked row max
        e = dst_col + src_row                       # [Np, Np]
        e = jnp.maximum(e, 0.2 * e)                 # leaky relu (vmax, no select)
        p = jnp.exp(e - m) * adj                    # zero off-edges, multiplicity kept
        return mm(p, xp_ones)                       # [Np, f_pad]; lane ones_lane = row-sum

    def gat_layer(h_in, w_ref, a_ref, b_ref, nheads, out_ch):
        xp = mm(h_in, w_ref[...])                   # [Np, f_pad] feature transform
        lane = jax.lax.broadcasted_iota(jnp.int32, xp.shape, 1)
        xp_ones = jnp.where(lane == ones_lane, 1.0, xp)   # inject constant-1 lane
        # Per-head attention scalars in one MXU matmul:
        # cols [0:H) = <x', att_dst[h]>, cols [H:2H) = <x', att_src[h]>.
        logits = mm(xp, a_ref[...])                 # [Np, f_pad] (cols >= 2H are zero)
        logits_t = jnp.transpose(logits)            # one transpose per layer (hoisted)
        src_max = jnp.max(logits_t[nheads:2 * nheads, :], axis=1, keepdims=True)  # [H,1]
        bias = b_ref[...]                           # [1, f_pad]
        outs = []
        for h in range(nheads):                     # tiny static unroll
            dst_col = logits[:, h:h + 1]                          # [Np, 1]
            src_row = logits_t[nheads + h:nheads + h + 1, :]      # [1, Np]
            agg = attention_aggregate(dst_col, src_row,
                                      src_max[h:h + 1, :], xp_ones)
            rs = agg[:, ones_lane:ones_lane + 1]                  # fused row-sum
            inv = 1.0 / rs                                        # exact ([Np,1] only)
            out_h = agg[:, h * out_ch:(h + 1) * out_ch] * inv
            out_h = out_h + bias[:, h * out_ch:(h + 1) * out_ch]
            out_h = jnp.where(out_h > 0, out_h, jnp.exp(out_h) - 1.0)   # elu
            outs.append(out_h)
        width = nheads * out_ch
        pad = jnp.zeros((h_in.shape[0], f_pad - width), jnp.float32)
        # One lane-dense [Np, f_pad] block per layer; no masked narrow stores.
        return jnp.concatenate(outs + [pad], axis=1)

    # Layer 1: Fin -> 16 per head (concat), elu.
    h1 = gat_layer(x_ref[...], w1_ref, a1_ref, b1_ref, heads, c1)
    # Layer 2: 16H -> 8 per head (concat), elu.
    h2 = gat_layer(h1, w2_ref, a2_ref, b2_ref, heads, c2)

    # Layer 3: 8H -> num_classes, single head, masked log_softmax,
    # one unmasked lane-dense [Np, f_pad] store.
    xp3 = mm(h2, w3_ref[...])
    lane3 = jax.lax.broadcasted_iota(jnp.int32, xp3.shape, 1)
    xp3_ones = jnp.where(lane3 == ones_lane, 1.0, xp3)
    logits3 = mm(xp3, a3_ref[...])
    logits3_t = jnp.transpose(logits3)
    src_max3 = jnp.max(logits3_t[1:2, :], axis=1, keepdims=True)
    agg3 = attention_aggregate(logits3[:, 0:1], logits3_t[1:2, :],
                               src_max3, xp3_ones)
    rs3 = agg3[:, ones_lane:ones_lane + 1]
    z = agg3 * (1.0 / rs3) + b3_ref[...]            # exact normalization for parity
    zm = jnp.where(lane3 < num_classes, z, -1e30)   # mask padded class lanes
    mz = jnp.max(zm, axis=1, keepdims=True)
    lse = jnp.log(jnp.sum(jnp.exp(zm - mz), axis=1, keepdims=True))
    o_ref[...] = zm - mz - lse


def _pad_to(x, rows, cols, dtype=jnp.float32):
    out = jnp.zeros((rows, cols), dtype)
    return out.at[:x.shape[0], :x.shape[1]].set(x.astype(dtype))


def pack_gat_params(p, heads, out_ch, f_pad):
    """Zero-pad W/bias; block-pack att_dst/att_src into a [Fp, Fp] matrix
    whose column h is <., att_dst[h]> and column heads+h is <., att_src[h]>."""
    w = _pad_to(p["w"], f_pad, f_pad)
    a = jnp.zeros((f_pad, f_pad), jnp.float32)
    for h in range(heads):
        a = a.at[h * out_ch:(h + 1) * out_ch, h].set(p["att_dst"][h])
        a = a.at[h * out_ch:(h + 1) * out_ch, heads + h].set(p["att_src"][h])
    b = _pad_to(p["bias"], 1, f_pad)
    return w, a, b


def edge_index_to_adj(edge_index, num_nodes, n_pad):
    """Dense adjacency adj[dst, src] with parallel-edge multiplicity (bf16).

    Mirrors PyG GATConv: existing self loops removed, then exactly one self
    loop per node.  Padded nodes also get a self loop so their (discarded)
    softmax rows stay finite; adj[real, pad] = 0 so they never feed real rows.
    Counts are small integers, so bf16 is exact.
    """
    src, dst = edge_index[0], edge_index[1]
    w = jnp.where(src == dst, 0.0, 1.0).astype(jnp.float32)
    adj = jnp.zeros((n_pad, n_pad), jnp.float32)
    adj = adj.at[dst, src].add(w)
    diag = jnp.arange(n_pad)
    adj = adj.at[diag, diag].set(1.0)
    return adj.astype(jnp.bfloat16)


def init_gat_params(key, in_ch, out_ch, heads):
    """Deterministic glorot-style init matching GATConv parameter shapes."""
    k_w, k_s, k_d = jax.random.split(key, 3)
    scale_w = (2.0 / (in_ch + heads * out_ch)) ** 0.5
    scale_a = (2.0 / (1 + out_ch)) ** 0.5
    w = jax.random.normal(k_w, (in_ch, heads * out_ch), jnp.float32) * scale_w
    att_src = jax.random.normal(k_s, (heads, out_ch), jnp.float32) * scale_a
    att_dst = jax.random.normal(k_d, (heads, out_ch), jnp.float32) * scale_a
    bias = jnp.zeros((1, heads * out_ch), jnp.float32)
    return dict(w=w, att_src=att_src, att_dst=att_dst, bias=bias)


def net_amazon_gat_heads(x, edge_index, params, *, heads, num_classes):
    n, f_in = x.shape
    n_pad = max(128, -(-n // 128) * 128)
    f_pad = 128                       # every feature width in this net is <= 128
    ones_lane = f_pad - 1             # lane reserved for the fused row-sum
    assert max(f_in, 16 * heads, 8 * heads, num_classes) < ones_lane
    assert 2 * heads <= f_pad

    adj = edge_index_to_adj(edge_index, n, n_pad)     # bf16
    x_p = _pad_to(x, n_pad, f_pad)
    w1, a1, b1 = pack_gat_params(params["gat1"], heads, 16, f_pad)
    w2, a2, b2 = pack_gat_params(params["gat2"], heads, 8, f_pad)
    w3, a3, b3 = pack_gat_params(params["gat3"], 1, num_classes, f_pad)

    kernel = functools.partial(_gat3_fused_kernel, heads=heads, c1=16, c2=8,
                               num_classes=num_classes, ones_lane=ones_lane)
    vmem = pl.BlockSpec(memory_space=pltpu.MemorySpace.VMEM)

    # Explicit scoped-VMEM budget: bf16 adj + a few f32 [Np,Np] temporaries
    # + the [Np,128] activations/weights.  Capped at 64 MiB (v7x physical).
    vmem_bytes = int(2 * n_pad * n_pad          # bf16 adj
                     + 6 * n_pad * n_pad * 4    # e / p / exp temporaries
                     + 32 * n_pad * f_pad * 4   # activations, weights, logits
                     + (4 << 20))
    vmem_bytes = min(max(vmem_bytes, 32 << 20), 64 << 20)

    # TODO(synk): for graphs with n_pad in the thousands (v7x's 64 MiB VMEM /
    # 2 TensorCores first), split into one row-tiled pallas_call per layer
    # (adj/out BlockSpec((TILE_N, n_pad), lambda i: (i, 0)), dimension_semantics
    # ("parallel",)) instead of this fully-resident fused single program.
    out = pl.pallas_call(
        kernel,
        out_shape=jax.ShapeDtypeStruct((n_pad, f_pad), jnp.float32),
        in_specs=[vmem] * 11,
        out_specs=vmem,
        compiler_params=pltpu.CompilerParams(vmem_limit_bytes=vmem_bytes),
    )(x_p, adj, w1, a1, b1, w2, a2, b2, w3, a3, b3)
    return out[:n, :num_classes]


if __name__ == "__main__":
    N = 64                   # nodes
    F_IN = 32                # num_node_features
    HEADS = 2
    NUM_CLASSES = 4
    E = 256                  # edges

    key = jax.random.PRNGKey(0)
    k_x, k_e, k_p1, k_p2, k_p3 = jax.random.split(key, 5)

    x = jax.random.normal(k_x, (N, F_IN), jnp.float32)
    edge_index = jax.random.randint(k_e, (2, E), 0, N, dtype=jnp.int32)

    params = {
        "gat1": init_gat_params(k_p1, F_IN, 16, HEADS),
        "gat2": init_gat_params(k_p2, 16 * HEADS, 8, HEADS),
        "gat3": init_gat_params(k_p3, 8 * HEADS, NUM_CLASSES, 1),
    }

    net = jax.jit(functools.partial(net_amazon_gat_heads,
                                    heads=HEADS, num_classes=NUM_CLASSES))
    out = jax.block_until_ready(net(x, edge_index, params))
    assert out.shape == (N, NUM_CLASSES), out.shape
    print("KERNEL_OK")
</pallas_src>

<mosaic_0001>
module attributes {stable_mosaic.version = 11 : i64} {
  func.func private @main(%arg0: i32) attributes {dimension_semantics = [#tpu.dimension_semantics<core_parallel>], iteration_bounds = array<i64: 2>, tpu.core_type = #tpu.core_type<sc_scalar_subcore>, window_params = []} {
    return
  }
}

module attributes {stable_mosaic.version = 11 : i64} {
  func.func private @main(%arg0: i32) attributes {dimension_semantics = [#tpu.dimension_semantics<core_parallel>], iteration_bounds = array<i64: 2>, tpu.core_type = #tpu.core_type<sc_scalar_subcore>, window_params = []} {
    return
  }
}

module attributes {stable_mosaic.version = 11 : i64} {
  func.func @_gat3_fused_kernel(%arg0: memref<128x128xf32, #tpu.memory_space<vmem>>, %arg1: memref<128x128xbf16, #tpu.memory_space<vmem>>, %arg2: memref<128x128xf32, #tpu.memory_space<vmem>>, %arg3: memref<128x128xf32, #tpu.memory_space<vmem>>, %arg4: memref<1x128xf32, #tpu.memory_space<vmem>>, %arg5: memref<128x128xf32, #tpu.memory_space<vmem>>, %arg6: memref<128x128xf32, #tpu.memory_space<vmem>>, %arg7: memref<1x128xf32, #tpu.memory_space<vmem>>, %arg8: memref<128x128xf32, #tpu.memory_space<vmem>>, %arg9: memref<128x128xf32, #tpu.memory_space<vmem>>, %arg10: memref<1x128xf32, #tpu.memory_space<vmem>>, %arg11: memref<128x128xf32, #tpu.memory_space<vmem>>) attributes {dimension_semantics = [], scalar_prefetch = 0 : i64, scratch_operands = 0 : i64, tpu.core_type = #tpu.core_type<tc>} {
    %c0 = arith.constant 0 : index
    %c0_0 = arith.constant 0 : index
    %0 = vector.load %arg1[%c0, %c0_0] : memref<128x128xbf16, #tpu.memory_space<vmem>>, vector<128x128xbf16>
    %c0_1 = arith.constant 0 : index
    %c0_2 = arith.constant 0 : index
    %1 = vector.load %arg0[%c0_1, %c0_2] : memref<128x128xf32, #tpu.memory_space<vmem>>, vector<128x128xf32>
    %c0_3 = arith.constant 0 : index
    %c0_4 = arith.constant 0 : index
    %2 = vector.load %arg2[%c0_3, %c0_4] : memref<128x128xf32, #tpu.memory_space<vmem>>, vector<128x128xf32>
    %cst = arith.constant dense<0.000000e+00> : vector<128x128xf32>
    %3 = tpu.matmul %1, %2, %cst {dimension_numbers = #tpu.dot_dimension_numbers<[1], [0], [0], [1], [0, 0, 1, 1], [], []>} : vector<128x128xf32>, vector<128x128xf32>, vector<128x128xf32> -> vector<128x128xf32>
    %4 = tpu.iota {dimensions = array<i32: 1>} : vector<128x128xi32>
    %c127_i32 = arith.constant 127 : i32
    %5 = vector.broadcast %c127_i32 : i32 to vector<128x128xi32>
    %6 = arith.cmpi eq, %4, %5 : vector<128x128xi32>
    %cst_5 = arith.constant 1.000000e+00 : f32
    %7 = vector.broadcast %cst_5 : f32 to vector<128x128xf32>
    %8 = arith.select %6, %7, %3 : vector<128x128xi1>, vector<128x128xf32>
    %c0_6 = arith.constant 0 : index
    %c0_7 = arith.constant 0 : index
    %9 = vector.load %arg3[%c0_6, %c0_7] : memref<128x128xf32, #tpu.memory_space<vmem>>, vector<128x128xf32>
    %cst_8 = arith.constant dense<0.000000e+00> : vector<128x128xf32>
    %10 = tpu.matmul %3, %9, %cst_8 {dimension_numbers = #tpu.dot_dimension_numbers<[1], [0], [0], [1], [0, 0, 1, 1], [], []>} : vector<128x128xf32>, vector<128x128xf32>, vector<128x128xf32> -> vector<128x128xf32>
    %11 = tpu.transpose %10, [1, 0] : vector<128x128xf32> -> vector<128x128xf32>
    %12 = vector.extract_strided_slice %11 {offsets = [2, 0], sizes = [2, 128], strides = [1, 1]} : vector<128x128xf32> to vector<2x128xf32>
    %cst_9 = arith.constant dense<0xFF800000> : vector<2xf32>
    %13 = vector.multi_reduction <maximumf>, %12, %cst_9 [1] : vector<2x128xf32> to vector<2xf32>
    %14 = vector.shape_cast %13 : vector<2xf32> to vector<2x1xf32>
    %c0_10 = arith.constant 0 : index
    %c0_11 = arith.constant 0 : index
    %15 = vector.load %arg4[%c0_10, %c0_11] : memref<1x128xf32, #tpu.memory_space<vmem>>, vector<1x128xf32>
    %16 = vector.extract_strided_slice %10 {offsets = [0, 0], sizes = [128, 1], strides = [1, 1]} : vector<128x128xf32> to vector<128x1xf32>
    %17 = vector.extract_strided_slice %11 {offsets = [2, 0], sizes = [1, 128], strides = [1, 1]} : vector<128x128xf32> to vector<1x128xf32>
    %18 = vector.extract_strided_slice %14 {offsets = [0, 0], sizes = [1, 1], strides = [1, 1]} : vector<2x1xf32> to vector<1x1xf32>
    %19 = vector.broadcast %18 : vector<1x1xf32> to vector<128x1xf32>
    %20 = arith.addf %16, %19 : vector<128x1xf32>
    %cst_12 = arith.constant 2.000000e-01 : f32
    %21 = vector.broadcast %cst_12 : f32 to vector<128x1xf32>
    %22 = arith.mulf %21, %20 : vector<128x1xf32>
    %23 = arith.maximumf %20, %22 : vector<128x1xf32>
    %24 = vector.broadcast %16 : vector<128x1xf32> to vector<128x128xf32>
    %25 = vector.broadcast %17 : vector<1x128xf32> to vector<128x128xf32>
    %26 = arith.addf %24, %25 : vector<128x128xf32>
    %cst_13 = arith.constant 2.000000e-01 : f32
    %27 = vector.broadcast %cst_13 : f32 to vector<128x128xf32>
    %28 = arith.mulf %27, %26 : vector<128x128xf32>
    %29 = arith.maximumf %26, %28 : vector<128x128xf32>
    %30 = vector.broadcast %23 : vector<128x1xf32> to vector<128x128xf32>
    %31 = arith.subf %29, %30 : vector<128x128xf32>
    %32 = math.exp %31 : vector<128x128xf32>
    %33 = arith.extf %0 : vector<128x128xbf16> to vector<128x128xf32>
    %34 = arith.mulf %32, %33 : vector<128x128xf32>
    %cst_14 = arith.constant dense<0.000000e+00> : vector<128x128xf32>
    %35 = tpu.matmul %34, %8, %cst_14 {dimension_numbers = #tpu.dot_dimension_numbers<[1], [0], [0], [1], [0, 0, 1, 1], [], []>} : vector<128x128xf32>, vector<128x128xf32>, vector<128x128xf32> -> vector<128x128xf32>
    %36 = vector.extract_strided_slice %35 {offsets = [0, 127], sizes = [128, 1], strides = [1, 1]} : vector<128x128xf32> to vector<128x1xf32>
    %cst_15 = arith.constant 1.000000e+00 : f32
    %37 = vector.broadcast %cst_15 : f32 to vector<128x1xf32>
    %38 = arith.divf %37, %36 : vector<128x1xf32>
    %39 = vector.extract_strided_slice %35 {offsets = [0, 0], sizes = [128, 16], strides = [1, 1]} : vector<128x128xf32> to vector<128x16xf32>
    %40 = vector.broadcast %38 : vector<128x1xf32> to vector<128x16xf32>
    %41 = arith.mulf %39, %40 : vector<128x16xf32>
    %42 = vector.extract_strided_slice %15 {offsets = [0, 0], sizes = [1, 16], strides = [1, 1]} : vector<1x128xf32> to vector<1x16xf32>
    %43 = vector.broadcast %42 : vector<1x16xf32> to vector<128x16xf32>
    %44 = arith.addf %41, %43 : vector<128x16xf32>
    %cst_16 = arith.constant 0.000000e+00 : f32
    %45 = vector.broadcast %cst_16 : f32 to vector<128x16xf32>
    %46 = arith.cmpf ogt, %44, %45 : vector<128x16xf32>
    %47 = math.exp %44 : vector<128x16xf32>
    %cst_17 = arith.constant 1.000000e+00 : f32
    %48 = vector.broadcast %cst_17 : f32 to vector<128x16xf32>
    %49 = arith.subf %47, %48 : vector<128x16xf32>
    %50 = arith.select %46, %44, %49 : vector<128x16xi1>, vector<128x16xf32>
    %51 = vector.extract_strided_slice %10 {offsets = [0, 1], sizes = [128, 1], strides = [1, 1]} : vector<128x128xf32> to vector<128x1xf32>
    %52 = vector.extract_strided_slice %11 {offsets = [3, 0], sizes = [1, 128], strides = [1, 1]} : vector<128x128xf32> to vector<1x128xf32>
    %53 = vector.extract_strided_slice %14 {offsets = [1, 0], sizes = [1, 1], strides = [1, 1]} : vector<2x1xf32> to vector<1x1xf32>
    %54 = vector.broadcast %53 : vector<1x1xf32> to vector<128x1xf32>
    %55 = arith.addf %51, %54 : vector<128x1xf32>
    %cst_18 = arith.constant 2.000000e-01 : f32
    %56 = vector.broadcast %cst_18 : f32 to vector<128x1xf32>
    %57 = arith.mulf %56, %55 : vector<128x1xf32>
    %58 = arith.maximumf %55, %57 : vector<128x1xf32>
    %59 = vector.broadcast %51 : vector<128x1xf32> to vector<128x128xf32>
    %60 = vector.broadcast %52 : vector<1x128xf32> to vector<128x128xf32>
    %61 = arith.addf %59, %60 : vector<128x128xf32>
    %cst_19 = arith.constant 2.000000e-01 : f32
    %62 = vector.broadcast %cst_19 : f32 to vector<128x128xf32>
    %63 = arith.mulf %62, %61 : vector<128x128xf32>
    %64 = arith.maximumf %61, %63 : vector<128x128xf32>
    %65 = vector.broadcast %58 : vector<128x1xf32> to vector<128x128xf32>
    %66 = arith.subf %64, %65 : vector<128x128xf32>
    %67 = math.exp %66 : vector<128x128xf32>
    %68 = arith.extf %0 : vector<128x128xbf16> to vector<128x128xf32>
    %69 = arith.mulf %67, %68 : vector<128x128xf32>
    %cst_20 = arith.constant dense<0.000000e+00> : vector<128x128xf32>
    %70 = tpu.matmul %69, %8, %cst_20 {dimension_numbers = #tpu.dot_dimension_numbers<[1], [0], [0], [1], [0, 0, 1, 1], [], []>} : vector<128x128xf32>, vector<128x128xf32>, vector<128x128xf32> -> vector<128x128xf32>
    %71 = vector.extract_strided_slice %70 {offsets = [0, 127], sizes = [128, 1], strides = [1, 1]} : vector<128x128xf32> to vector<128x1xf32>
    %cst_21 = arith.constant 1.000000e+00 : f32
    %72 = vector.broadcast %cst_21 : f32 to vector<128x1xf32>
    %73 = arith.divf %72, %71 : vector<128x1xf32>
    %74 = vector.extract_strided_slice %70 {offsets = [0, 16], sizes = [128, 16], strides = [1, 1]} : vector<128x128xf32> to vector<128x16xf32>
    %75 = vector.broadcast %73 : vector<128x1xf32> to vector<128x16xf32>
    %76 = arith.mulf %74, %75 : vector<128x16xf32>
    %77 = vector.extract_strided_slice %15 {offsets = [0, 16], sizes = [1, 16], strides = [1, 1]} : vector<1x128xf32> to vector<1x16xf32>
    %78 = vector.broadcast %77 : vector<1x16xf32> to vector<128x16xf32>
    %79 = arith.addf %76, %78 : vector<128x16xf32>
    %cst_22 = arith.constant 0.000000e+00 : f32
    %80 = vector.broadcast %cst_22 : f32 to vector<128x16xf32>
    %81 = arith.cmpf ogt, %79, %80 : vector<128x16xf32>
    %82 = math.exp %79 : vector<128x16xf32>
    %cst_23 = arith.constant 1.000000e+00 : f32
    %83 = vector.broadcast %cst_23 : f32 to vector<128x16xf32>
    %84 = arith.subf %82, %83 : vector<128x16xf32>
    %85 = arith.select %81, %79, %84 : vector<128x16xi1>, vector<128x16xf32>
    %cst_24 = arith.constant 0.000000e+00 : f32
    %86 = vector.broadcast %cst_24 : f32 to vector<128x96xf32>
    %87 = tpu.concatenate %50, %85, %86 in 1 : vector<128x16xf32>, vector<128x16xf32>, vector<128x96xf32> -> vector<128x128xf32>
    %c0_25 = arith.constant 0 : index
    %c0_26 = arith.constant 0 : index
    %88 = vector.load %arg5[%c0_25, %c0_26] : memref<128x128xf32, #tpu.memory_space<vmem>>, vector<128x128xf32>
    %cst_27 = arith.constant dense<0.000000e+00> : vector<128x128xf32>
    %89 = tpu.matmul %87, %88, %cst_27 {dimension_numbers = #tpu.dot_dimension_numbers<[1], [0], [0], [1], [0, 0, 1, 1], [], []>} : vector<128x128xf32>, vector<128x128xf32>, vector<128x128xf32> -> vector<128x128xf32>
    %90 = tpu.iota {dimensions = array<i32: 1>} : vector<128x128xi32>
    %c127_i32_28 = arith.constant 127 : i32
    %91 = vector.broadcast %c127_i32_28 : i32 to vector<128x128xi32>
    %92 = arith.cmpi eq, %90, %91 : vector<128x128xi32>
    %cst_29 = arith.constant 1.000000e+00 : f32
    %93 = vector.broadcast %cst_29 : f32 to vector<128x128xf32>
    %94 = arith.select %92, %93, %89 : vector<128x128xi1>, vector<128x128xf32>
    %c0_30 = arith.constant 0 : index
    %c0_31 = arith.constant 0 : index
    %95 = vector.load %arg6[%c0_30, %c0_31] : memref<128x128xf32, #tpu.memory_space<vmem>>, vector<128x128xf32>
    %cst_32 = arith.constant dense<0.000000e+00> : vector<128x128xf32>
    %96 = tpu.matmul %89, %95, %cst_32 {dimension_numbers = #tpu.dot_dimension_numbers<[1], [0], [0], [1], [0, 0, 1, 1], [], []>} : vector<128x128xf32>, vector<128x128xf32>, vector<128x128xf32> -> vector<128x128xf32>
    %97 = tpu.transpose %96, [1, 0] : vector<128x128xf32> -> vector<128x128xf32>
    %98 = vector.extract_strided_slice %97 {offsets = [2, 0], sizes = [2, 128], strides = [1, 1]} : vector<128x128xf32> to vector<2x128xf32>
    %cst_33 = arith.constant dense<0xFF800000> : vector<2xf32>
    %99 = vector.multi_reduction <maximumf>, %98, %cst_33 [1] : vector<2x128xf32> to vector<2xf32>
    %100 = vector.shape_cast %99 : vector<2xf32> to vector<2x1xf32>
    %c0_34 = arith.constant 0 : index
    %c0_35 = arith.constant 0 : index
    %101 = vector.load %arg7[%c0_34, %c0_35] : memref<1x128xf32, #tpu.memory_space<vmem>>, vector<1x128xf32>
    %102 = vector.extract_strided_slice %96 {offsets = [0, 0], sizes = [128, 1], strides = [1, 1]} : vector<128x128xf32> to vector<128x1xf32>
    %103 = vector.extract_strided_slice %97 {offsets = [2, 0], sizes = [1, 128], strides = [1, 1]} : vector<128x128xf32> to vector<1x128xf32>
    %104 = vector.extract_strided_slice %100 {offsets = [0, 0], sizes = [1, 1], strides = [1, 1]} : vector<2x1xf32> to vector<1x1xf32>
    %105 = vector.broadcast %104 : vector<1x1xf32> to vector<128x1xf32>
    %106 = arith.addf %102, %105 : vector<128x1xf32>
    %cst_36 = arith.constant 2.000000e-01 : f32
    %107 = vector.broadcast %cst_36 : f32 to vector<128x1xf32>
    %108 = arith.mulf %107, %106 : vector<128x1xf32>
    %109 = arith.maximumf %106, %108 : vector<128x1xf32>
    %110 = vector.broadcast %102 : vector<128x1xf32> to vector<128x128xf32>
    %111 = vector.broadcast %103 : vector<1x128xf32> to vector<128x128xf32>
    %112 = arith.addf %110, %111 : vector<128x128xf32>
    %cst_37 = arith.constant 2.000000e-01 : f32
    %113 = vector.broadcast %cst_37 : f32 to vector<128x128xf32>
    %114 = arith.mulf %113, %112 : vector<128x128xf32>
    %115 = arith.maximumf %112, %114 : vector<128x128xf32>
    %116 = vector.broadcast %109 : vector<128x1xf32> to vector<128x128xf32>
    %117 = arith.subf %115, %116 : vector<128x128xf32>
    %118 = math.exp %117 : vector<128x128xf32>
    %119 = arith.extf %0 : vector<128x128xbf16> to vector<128x128xf32>
    %120 = arith.mulf %118, %119 : vector<128x128xf32>
    %cst_38 = arith.constant dense<0.000000e+00> : vector<128x128xf32>
    %121 = tpu.matmul %120, %94, %cst_38 {dimension_numbers = #tpu.dot_dimension_numbers<[1], [0], [0], [1], [0, 0, 1, 1], [], []>} : vector<128x128xf32>, vector<128x128xf32>, vector<128x128xf32> -> vector<128x128xf32>
    %122 = vector.extract_strided_slice %121 {offsets = [0, 127], sizes = [128, 1], strides = [1, 1]} : vector<128x128xf32> to vector<128x1xf32>
    %cst_39 = arith.constant 1.000000e+00 : f32
    %123 = vector.broadcast %cst_39 : f32 to vector<128x1xf32>
    %124 = arith.divf %123, %122 : vector<128x1xf32>
    %125 = vector.extract_strided_slice %121 {offsets = [0, 0], sizes = [128, 8], strides = [1, 1]} : vector<128x128xf32> to vector<128x8xf32>
    %126 = vector.broadcast %124 : vector<128x1xf32> to vector<128x8xf32>
    %127 = arith.mulf %125, %126 : vector<128x8xf32>
    %128 = vector.extract_strided_slice %101 {offsets = [0, 0], sizes = [1, 8], strides = [1, 1]} : vector<1x128xf32> to vector<1x8xf32>
    %129 = vector.broadcast %128 : vector<1x8xf32> to vector<128x8xf32>
    %130 = arith.addf %127, %129 : vector<128x8xf32>
    %cst_40 = arith.constant 0.000000e+00 : f32
    %131 = vector.broadcast %cst_40 : f32 to vector<128x8xf32>
    %132 = arith.cmpf ogt, %130, %131 : vector<128x8xf32>
    %133 = math.exp %130 : vector<128x8xf32>
    %cst_41 = arith.constant 1.000000e+00 : f32
    %134 = vector.broadcast %cst_41 : f32 to vector<128x8xf32>
    %135 = arith.subf %133, %134 : vector<128x8xf32>
    %136 = arith.select %132, %130, %135 : vector<128x8xi1>, vector<128x8xf32>
    %137 = vector.extract_strided_slice %96 {offsets = [0, 1], sizes = [128, 1], strides = [1, 1]} : vector<128x128xf32> to vector<128x1xf32>
    %138 = vector.extract_strided_slice %97 {offsets = [3, 0], sizes = [1, 128], strides = [1, 1]} : vector<128x128xf32> to vector<1x128xf32>
    %139 = vector.extract_strided_slice %100 {offsets = [1, 0], sizes = [1, 1], strides = [1, 1]} : vector<2x1xf32> to vector<1x1xf32>
    %140 = vector.broadcast %139 : vector<1x1xf32> to vector<128x1xf32>
    %141 = arith.addf %137, %140 : vector<128x1xf32>
    %cst_42 = arith.constant 2.000000e-01 : f32
    %142 = vector.broadcast %cst_42 : f32 to vector<128x1xf32>
    %143 = arith.mulf %142, %141 : vector<128x1xf32>
    %144 = arith.maximumf %141, %143 : vector<128x1xf32>
    %145 = vector.broadcast %137 : vector<128x1xf32> to vector<128x128xf32>
    %146 = vector.broadcast %138 : vector<1x128xf32> to vector<128x128xf32>
    %147 = arith.addf %145, %146 : vector<128x128xf32>
    %cst_43 = arith.constant 2.000000e-01 : f32
    %148 = vector.broadcast %cst_43 : f32 to vector<128x128xf32>
    %149 = arith.mulf %148, %147 : vector<128x128xf32>
    %150 = arith.maximumf %147, %149 : vector<128x128xf32>
    %151 = vector.broadcast %144 : vector<128x1xf32> to vector<128x128xf32>
    %152 = arith.subf %150, %151 : vector<128x128xf32>
    %153 = math.exp %152 : vector<128x128xf32>
    %154 = arith.extf %0 : vector<128x128xbf16> to vector<128x128xf32>
    %155 = arith.mulf %153, %154 : vector<128x128xf32>
    %cst_44 = arith.constant dense<0.000000e+00> : vector<128x128xf32>
    %156 = tpu.matmul %155, %94, %cst_44 {dimension_numbers = #tpu.dot_dimension_numbers<[1], [0], [0], [1], [0, 0, 1, 1], [], []>} : vector<128x128xf32>, vector<128x128xf32>, vector<128x128xf32> -> vector<128x128xf32>
    %157 = vector.extract_strided_slice %156 {offsets = [0, 127], sizes = [128, 1], strides = [1, 1]} : vector<128x128xf32> to vector<128x1xf32>
    %cst_45 = arith.constant 1.000000e+00 : f32
    %158 = vector.broadcast %cst_45 : f32 to vector<128x1xf32>
    %159 = arith.divf %158, %157 : vector<128x1xf32>
    %160 = vector.extract_strided_slice %156 {offsets = [0, 8], sizes = [128, 8], strides = [1, 1]} : vector<128x128xf32> to vector<128x8xf32>
    %161 = vector.broadcast %159 : vector<128x1xf32> to vector<128x8xf32>
    %162 = arith.mulf %160, %161 : vector<128x8xf32>
    %163 = vector.extract_strided_slice %101 {offsets = [0, 8], sizes = [1, 8], strides = [1, 1]} : vector<1x128xf32> to vector<1x8xf32>
    %164 = vector.broadcast %163 : vector<1x8xf32> to vector<128x8xf32>
    %165 = arith.addf %162, %164 : vector<128x8xf32>
    %cst_46 = arith.constant 0.000000e+00 : f32
    %166 = vector.broadcast %cst_46 : f32 to vector<128x8xf32>
    %167 = arith.cmpf ogt, %165, %166 : vector<128x8xf32>
    %168 = math.exp %165 : vector<128x8xf32>
    %cst_47 = arith.constant 1.000000e+00 : f32
    %169 = vector.broadcast %cst_47 : f32 to vector<128x8xf32>
    %170 = arith.subf %168, %169 : vector<128x8xf32>
    %171 = arith.select %167, %165, %170 : vector<128x8xi1>, vector<128x8xf32>
    %cst_48 = arith.constant 0.000000e+00 : f32
    %172 = vector.broadcast %cst_48 : f32 to vector<128x112xf32>
    %173 = tpu.concatenate %136, %171, %172 in 1 : vector<128x8xf32>, vector<128x8xf32>, vector<128x112xf32> -> vector<128x128xf32>
    %c0_49 = arith.constant 0 : index
    %c0_50 = arith.constant 0 : index
    %174 = vector.load %arg8[%c0_49, %c0_50] : memref<128x128xf32, #tpu.memory_space<vmem>>, vector<128x128xf32>
    %cst_51 = arith.constant dense<0.000000e+00> : vector<128x128xf32>
    %175 = tpu.matmul %173, %174, %cst_51 {dimension_numbers = #tpu.dot_dimension_numbers<[1], [0], [0], [1], [0, 0, 1, 1], [], []>} : vector<128x128xf32>, vector<128x128xf32>, vector<128x128xf32> -> vector<128x128xf32>
    %176 = tpu.iota {dimensions = array<i32: 1>} : vector<128x128xi32>
    %c127_i32_52 = arith.constant 127 : i32
    %177 = vector.broadcast %c127_i32_52 : i32 to vector<128x128xi32>
    %178 = arith.cmpi eq, %176, %177 : vector<128x128xi32>
    %cst_53 = arith.constant 1.000000e+00 : f32
    %179 = vector.broadcast %cst_53 : f32 to vector<128x128xf32>
    %180 = arith.select %178, %179, %175 : vector<128x128xi1>, vector<128x128xf32>
    %c0_54 = arith.constant 0 : index
    %c0_55 = arith.constant 0 : index
    %181 = vector.load %arg9[%c0_54, %c0_55] : memref<128x128xf32, #tpu.memory_space<vmem>>, vector<128x128xf32>
    %cst_56 = arith.constant dense<0.000000e+00> : vector<128x128xf32>
    %182 = tpu.matmul %175, %181, %cst_56 {dimension_numbers = #tpu.dot_dimension_numbers<[1], [0], [0], [1], [0, 0, 1, 1], [], []>} : vector<128x128xf32>, vector<128x128xf32>, vector<128x128xf32> -> vector<128x128xf32>
    %183 = tpu.transpose %182, [1, 0] : vector<128x128xf32> -> vector<128x128xf32>
    %184 = vector.extract_strided_slice %183 {offsets = [1, 0], sizes = [1, 128], strides = [1, 1]} : vector<128x128xf32> to vector<1x128xf32>
    %cst_57 = arith.constant dense<0xFF800000> : vector<1xf32>
    %185 = vector.multi_reduction <maximumf>, %184, %cst_57 [1] : vector<1x128xf32> to vector<1xf32>
    %186 = vector.shape_cast %185 : vector<1xf32> to vector<1x1xf32>
    %187 = vector.extract_strided_slice %182 {offsets = [0, 0], sizes = [128, 1], strides = [1, 1]} : vector<128x128xf32> to vector<128x1xf32>
    %188 = vector.extract_strided_slice %183 {offsets = [1, 0], sizes = [1, 128], strides = [1, 1]} : vector<128x128xf32> to vector<1x128xf32>
    %189 = vector.broadcast %186 : vector<1x1xf32> to vector<128x1xf32>
    %190 = arith.addf %187, %189 : vector<128x1xf32>
    %cst_58 = arith.constant 2.000000e-01 : f32
    %191 = vector.broadcast %cst_58 : f32 to vector<128x1xf32>
    %192 = arith.mulf %191, %190 : vector<128x1xf32>
    %193 = arith.maximumf %190, %192 : vector<128x1xf32>
    %194 = vector.broadcast %187 : vector<128x1xf32> to vector<128x128xf32>
    %195 = vector.broadcast %188 : vector<1x128xf32> to vector<128x128xf32>
    %196 = arith.addf %194, %195 : vector<128x128xf32>
    %cst_59 = arith.constant 2.000000e-01 : f32
    %197 = vector.broadcast %cst_59 : f32 to vector<128x128xf32>
    %198 = arith.mulf %197, %196 : vector<128x128xf32>
    %199 = arith.maximumf %196, %198 : vector<128x128xf32>
    %200 = vector.broadcast %193 : vector<128x1xf32> to vector<128x128xf32>
    %201 = arith.subf %199, %200 : vector<128x128xf32>
    %202 = math.exp %201 : vector<128x128xf32>
    %203 = arith.extf %0 : vector<128x128xbf16> to vector<128x128xf32>
    %204 = arith.mulf %202, %203 : vector<128x128xf32>
    %cst_60 = arith.constant dense<0.000000e+00> : vector<128x128xf32>
    %205 = tpu.matmul %204, %180, %cst_60 {dimension_numbers = #tpu.dot_dimension_numbers<[1], [0], [0], [1], [0, 0, 1, 1], [], []>} : vector<128x128xf32>, vector<128x128xf32>, vector<128x128xf32> -> vector<128x128xf32>
    %206 = vector.extract_strided_slice %205 {offsets = [0, 127], sizes = [128, 1], strides = [1, 1]} : vector<128x128xf32> to vector<128x1xf32>
    %cst_61 = arith.constant 1.000000e+00 : f32
    %207 = vector.broadcast %cst_61 : f32 to vector<128x1xf32>
    %208 = arith.divf %207, %206 : vector<128x1xf32>
    %209 = vector.broadcast %208 : vector<128x1xf32> to vector<128x128xf32>
    %210 = arith.mulf %205, %209 : vector<128x128xf32>
    %c0_62 = arith.constant 0 : index
    %c0_63 = arith.constant 0 : index
    %211 = vector.load %arg10[%c0_62, %c0_63] : memref<1x128xf32, #tpu.memory_space<vmem>>, vector<1x128xf32>
    %212 = vector.broadcast %211 : vector<1x128xf32> to vector<128x128xf32>
    %213 = arith.addf %210, %212 : vector<128x128xf32>
    %c4_i32 = arith.constant 4 : i32
    %214 = vector.broadcast %c4_i32 : i32 to vector<128x128xi32>
    %215 = arith.cmpi slt, %176, %214 : vector<128x128xi32>
    %cst_64 = arith.constant -1.000000e+30 : f32
    %216 = vector.broadcast %cst_64 : f32 to vector<128x128xf32>
    %217 = arith.select %215, %213, %216 : vector<128x128xi1>, vector<128x128xf32>
    %cst_65 = arith.constant dense<0xFF800000> : vector<128xf32>
    %218 = vector.multi_reduction <maximumf>, %217, %cst_65 [1] : vector<128x128xf32> to vector<128xf32>
    %219 = vector.shape_cast %218 : vector<128xf32> to vector<128x1xf32>
    %220 = vector.broadcast %219 : vector<128x1xf32> to vector<128x128xf32>
    %221 = arith.subf %217, %220 : vector<128x128xf32>
    %222 = math.exp %221 : vector<128x128xf32>
    %cst_66 = arith.constant dense<0.000000e+00> : vector<128xf32>
    %223 = vector.multi_reduction <add>, %222, %cst_66 [1] : vector<128x128xf32> to vector<128xf32>
    %224 = vector.shape_cast %223 : vector<128xf32> to vector<128x1xf32>
    %225 = math.log %224 : vector<128x1xf32>
    %226 = vector.broadcast %219 : vector<128x1xf32> to vector<128x128xf32>
    %227 = arith.subf %217, %226 : vector<128x128xf32>
    %228 = vector.broadcast %225 : vector<128x1xf32> to vector<128x128xf32>
    %229 = arith.subf %227, %228 : vector<128x128xf32>
    %c0_67 = arith.constant 0 : index
    %c0_68 = arith.constant 0 : index
    %230 = vector.load %arg11[%c0_67, %c0_68] : memref<128x128xf32, #tpu.memory_space<vmem>>, vector<128x128xf32>
    tpu.vector_store %arg11[%c0_67, %c0_68], %229 {strides = array<i32>} : memref<128x128xf32, #tpu.memory_space<vmem>>, vector<128x128xf32>,
    return
  }
}

</mosaic_0001>

<llo_original>
// kernel: net_amazon_gat_heads.1
$region0: #{net_amazon_gat_heads.1}
  #allocation0 [shape = 'u32[]', space=smem, size = 0x4, offset = 0x4, fixed_abs, tag = 'smem constant byte address 0x4 - core index']
  #allocation1 [shape = 'u32[144,128]{1,0:T(1,128)}', space=vmem, size = 0x12000, scoped, tag = 'internal scratch']
  %s0 = inlined_call_operand.vmem [shape: f32[128,128], index: 0, kind: input, shape index: {}]
  %s1 = inlined_call_operand.vmem [shape: bf16[128,128], index: 1, kind: input, shape index: {}]
  %s2 = inlined_call_operand.vmem [shape: f32[128,128], index: 2, kind: input, shape index: {}]
  %s3 = inlined_call_operand.vmem [shape: f32[128,128], index: 3, kind: input, shape index: {}]
  %s4 = inlined_call_operand.vmem [shape: f32[1,128], index: 4, kind: input, shape index: {}]
  %s5 = inlined_call_operand.vmem [shape: f32[128,128], index: 5, kind: input, shape index: {}]
  %s6 = inlined_call_operand.vmem [shape: f32[128,128], index: 6, kind: input, shape index: {}]
  %s7 = inlined_call_operand.vmem [shape: f32[1,128], index: 7, kind: input, shape index: {}]
  %s8 = inlined_call_operand.vmem [shape: f32[128,128], index: 8, kind: input, shape index: {}]
  %s9 = inlined_call_operand.vmem [shape: f32[128,128], index: 9, kind: input, shape index: {}]
  %s10 = inlined_call_operand.vmem [shape: f32[1,128], index: 10, kind: input, shape index: {}]
  %s11 = inlined_call_operand.vmem [shape: f32[128,128], index: 11, kind: output, shape index: {}]
  %s12 = sld [smem:[#allocation0]]
  $region54: #{net_amazon_gat_heads.1} parent=0
    _
  %s14 = ssub.s32 1, %s12
  %s15 = scalar_select 0, %s14, %s12
  // Predicated region
  $region2: #{net_amazon_gat_heads.1} parent=0 // pred_check
    _
  $region3: #{net_amazon_gat_heads.1} parent=0 // pred_check_branch
    %17 = sbr.rel (0) target = $region5
  $region4: #{net_amazon_gat_heads.1} parent=0 // pred_region
    _
  $region5: #{net_amazon_gat_heads.1} parent=0 // pred_fallthru
    _
  // Predicated region
  $region6: #{net_amazon_gat_heads.1} parent=0 // pred_check
    _
  $region7: #{net_amazon_gat_heads.1} parent=0 // pred_check_branch
    %19 = sbr.rel (0) target = $region9
  $region8: #{net_amazon_gat_heads.1} parent=0 // pred_region
    _
  $region9: #{net_amazon_gat_heads.1} parent=0 // pred_fallthru
    _
  // Predicated region
  $region10: #{net_amazon_gat_heads.1} parent=0 // pred_check
    _
  $region11: #{net_amazon_gat_heads.1} parent=0 // pred_check_branch
    %21 = sbr.rel (0) target = $region13
  $region12: #{net_amazon_gat_heads.1} parent=0 // pred_region
    _
  $region13: #{net_amazon_gat_heads.1} parent=0 // pred_fallthru
    _
  // Predicated region
  $region14: #{net_amazon_gat_heads.1} parent=0 // pred_check
    _
  $region15: #{net_amazon_gat_heads.1} parent=0 // pred_check_branch
    %23 = sbr.rel (0) target = $region17
  $region16: #{net_amazon_gat_heads.1} parent=0 // pred_region
    _
  $region17: #{net_amazon_gat_heads.1} parent=0 // pred_fallthru
    _
  // Predicated region
  $region18: #{net_amazon_gat_heads.1} parent=0 // pred_check
    _
  $region19: #{net_amazon_gat_heads.1} parent=0 // pred_check_branch
    %25 = sbr.rel (0) target = $region21
  $region20: #{net_amazon_gat_heads.1} parent=0 // pred_region
    _
  $region21: #{net_amazon_gat_heads.1} parent=0 // pred_fallthru
    _
  // Predicated region
  $region22: #{net_amazon_gat_heads.1} parent=0 // pred_check
    _
  $region23: #{net_amazon_gat_heads.1} parent=0 // pred_check_branch
    %27 = sbr.rel (0) target = $region25
  $region24: #{net_amazon_gat_heads.1} parent=0 // pred_region
    _
  $region25: #{net_amazon_gat_heads.1} parent=0 // pred_fallthru
    _
  // Predicated region
  $region26: #{net_amazon_gat_heads.1} parent=0 // pred_check
    _
  $region27: #{net_amazon_gat_heads.1} parent=0 // pred_check_branch
    %29 = sbr.rel (0) target = $region29
  $region28: #{net_amazon_gat_heads.1} parent=0 // pred_region
    _
  $region29: #{net_amazon_gat_heads.1} parent=0 // pred_fallthru
    _
  // Predicated region
  $region30: #{net_amazon_gat_heads.1} parent=0 // pred_check
    _
  $region31: #{net_amazon_gat_heads.1} parent=0 // pred_check_branch
    %31 = sbr.rel (0) target = $region33
  $region32: #{net_amazon_gat_heads.1} parent=0 // pred_region
    _
  $region33: #{net_amazon_gat_heads.1} parent=0 // pred_fallthru
    _
  // Predicated region
  $region34: #{net_amazon_gat_heads.1} parent=0 // pred_check
    _
  $region35: #{net_amazon_gat_heads.1} parent=0 // pred_check_branch
    %33 = sbr.rel (0) target = $region37
  $region36: #{net_amazon_gat_heads.1} parent=0 // pred_region
    _
  $region37: #{net_amazon_gat_heads.1} parent=0 // pred_fallthru
    _
  // Predicated region
  $region38: #{net_amazon_gat_heads.1} parent=0 // pred_check
    _
  $region39: #{net_amazon_gat_heads.1} parent=0 // pred_check_branch
    %35 = sbr.rel (0) target = $region41
  $region40: #{net_amazon_gat_heads.1} parent=0 // pred_region
    _
  $region41: #{net_amazon_gat_heads.1} parent=0 // pred_fallthru
    _
  // Predicated region
  $region42: #{net_amazon_gat_heads.1} parent=0 // pred_check
    _
  $region43: #{net_amazon_gat_heads.1} parent=0 // pred_check_branch
    %37 = sbr.rel (0) target = $region45
  $region44: #{net_amazon_gat_heads.1} parent=0 // pred_region
    _
  $region45: #{net_amazon_gat_heads.1} parent=0 // pred_fallthru
    _
  %v38 = vld [vmem:[%s1] sm:$0xf]
  %v39 = vld [vmem:[%s1 + $0x4] sm:$0xf]
  %v40 = vld [vmem:[%s1 + $0x8] sm:$0xf]
  %v41 = vld [vmem:[%s1 + $0xc] sm:$0xf]
  %v42 = vld [vmem:[%s1 + $0x10] sm:$0xf]
  %v43 = vld [vmem:[%s1 + $0x14] sm:$0xf]
  %v44 = vld [vmem:[%s1 + $0x18] sm:$0xf]
  %v45 = vld [vmem:[%s1 + $0x1c] sm:$0xf]
  %v46 = vld [vmem:[%s1 + $0x20] sm:$0xf]
  %v47 = vld [vmem:[%s1 + $0x24] sm:$0xf]
  %v48 = vld [vmem:[%s1 + $0x28] sm:$0xf]
  %v49 = vld [vmem:[%s1 + $0x2c] sm:$0xf]
  %v50 = vld [vmem:[%s1 + $0x30] sm:$0xf]
  %v51 = vld [vmem:[%s1 + $0x34] sm:$0xf]
  %v52 = vld [vmem:[%s1 + $0x38] sm:$0xf]
  %v53 = vld [vmem:[%s1 + $0x3c] sm:$0xf]
  %v54 = vld [vmem:[%s0] sm:$0xff]
  %v55 = vld [vmem:[%s0 + $0x8] sm:$0xff]
  %v56 = vld [vmem:[%s0 + $0x10] sm:$0xff]
  %v57 = vld [vmem:[%s0 + $0x18] sm:$0xff]
  %v58 = vld [vmem:[%s0 + $0x20] sm:$0xff]
  %v59 = vld [vmem:[%s0 + $0x28] sm:$0xff]
  %v60 = vld [vmem:[%s0 + $0x30] sm:$0xff]
  %v61 = vld [vmem:[%s0 + $0x38] sm:$0xff]
  %v62 = vld [vmem:[%s0 + $0x40] sm:$0xff]
  %v63 = vld [vmem:[%s0 + $0x48] sm:$0xff]
  %v64 = vld [vmem:[%s0 + $0x50] sm:$0xff]
  %v65 = vld [vmem:[%s0 + $0x58] sm:$0xff]
  %v66 = vld [vmem:[%s0 + $0x60] sm:$0xff]
  %v67 = vld [vmem:[%s0 + $0x68] sm:$0xff]
  %v68 = vld [vmem:[%s0 + $0x70] sm:$0xff]
  %v69 = vld [vmem:[%s0 + $0x78] sm:$0xff]
  %v70 = vld [vmem:[%s2] sm:$0xff]
  %v71 = vld [vmem:[%s2 + $0x8] sm:$0xff]
  %v72 = vld [vmem:[%s2 + $0x10] sm:$0xff]
  %v73 = vld [vmem:[%s2 + $0x18] sm:$0xff]
  %v74 = vld [vmem:[%s2 + $0x20] sm:$0xff]
  %v75 = vld [vmem:[%s2 + $0x28] sm:$0xff]
  %v76 = vld [vmem:[%s2 + $0x30] sm:$0xff]
  %v77 = vld [vmem:[%s2 + $0x38] sm:$0xff]
  %v78 = vld [vmem:[%s2 + $0x40] sm:$0xff]
  %v79 = vld [vmem:[%s2 + $0x48] sm:$0xff]
  %v80 = vld [vmem:[%s2 + $0x50] sm:$0xff]
  %v81 = vld [vmem:[%s2 + $0x58] sm:$0xff]
  %v82 = vld [vmem:[%s2 + $0x60] sm:$0xff]
  %v83 = vld [vmem:[%s2 + $0x68] sm:$0xff]
  %v84 = vld [vmem:[%s2 + $0x70] sm:$0xff]
  %v85 = vld [vmem:[%s2 + $0x78] sm:$0xff]
  %86 = vmatprep.subr.mxu0 0.0
  %87 = vmatpush1.msra.mxu0 %v70
  %88 = vmatprep.subr.mxu0 0.0
  %89 = vmatpush1.msra.mxu0 %v71
  %90 = vmatprep.subr.mxu0 0.0
  %91 = vmatpush1.msra.mxu0 %v72
  %92 = vmatprep.subr.mxu0 0.0
  %93 = vmatpush1.msra.mxu0 %v73
  %94 = vmatprep.subr.mxu0 0.0
  %95 = vmatpush1.msra.mxu0 %v74
  %96 = vmatprep.subr.mxu0 0.0
  %97 = vmatpush1.msra.mxu0 %v75
  %98 = vmatprep.subr.mxu0 0.0
  %99 = vmatpush1.msra.mxu0 %v76
  %100 = vmatprep.subr.mxu0 0.0
  %101 = vmatpush1.msra.mxu0 %v77
  %102 = vmatprep.subr.mxu0 0.0
  %103 = vmatpush1.msra.mxu0 %v78
  %104 = vmatprep.subr.mxu0 0.0
  %105 = vmatpush1.msra.mxu0 %v79
  %106 = vmatprep.subr.mxu0 0.0
  %107 = vmatpush1.msra.mxu0 %v80
  %108 = vmatprep.subr.mxu0 0.0
  %109 = vmatpush1.msra.mxu0 %v81
  %110 = vmatprep.subr.mxu0 0.0
  %111 = vmatpush1.msra.mxu0 %v82
  %112 = vmatprep.subr.mxu0 0.0
  %113 = vmatpush1.msra.mxu0 %v83
  %114 = vmatprep.subr.mxu0 0.0
  %115 = vmatpush1.msra.mxu0 %v84
  %116 = vmatprep.subr.mxu0 0.0
  %117 = vmatpush1.msra.mxu0 %v85
  %118 = vmatprep.subr.mxu0 0.0
  %119 = vmatpush1.msra.mxu0 0.0
  %120 = vmatprep.subr.mxu0 0.0
  %121 = vmatpush1.msra.mxu0 0.0
  %122 = vmatprep.subr.mxu0 0.0
  %123 = vmatpush1.msra.mxu0 0.0
  %124 = vmatprep.subr.mxu0 0.0
  %125 = vmatpush1.msra.mxu0 0.0
  %126 = vmatprep.subr.mxu0 0.0
  %127 = vmatpush1.msra.mxu0 0.0
  %128 = vmatprep.subr.mxu0 0.0
  %129 = vmatpush1.msra.mxu0 0.0
  %130 = vmatprep.subr.mxu0 0.0
  %131 = vmatpush1.msra.mxu0 0.0
  %132 = vmatprep.subr.mxu0 0.0
  %133 = vmatpush1.msra.mxu0 0.0
  %134 = vmatprep.subr.mxu0 0.0
  %135 = vmatpush1.msra.mxu0 0.0
  %136 = vmatprep.subr.mxu0 0.0
  %137 = vmatpush1.msra.mxu0 0.0
  %138 = vmatprep.subr.mxu0 0.0
  %139 = vmatpush1.msra.mxu0 0.0
  %140 = vmatprep.subr.mxu0 0.0
  %141 = vmatpush1.msra.mxu0 0.0
  %142 = vmatprep.subr.mxu0 0.0
  %143 = vmatpush1.msra.mxu0 0.0
  %144 = vmatprep.subr.mxu0 0.0
  %145 = vmatpush1.msra.mxu0 0.0
  %146 = vmatprep.subr.mxu0 0.0
  %147 = vmatpush1.msra.mxu0 0.0
  %148 = vmatprep.subr.mxu0 0.0
  %149 = vmatpush1.msra.mxu0 0.0
  %150 = vmatprep.mubr.f32.mxu0 0.0
  %151 = vmatmul.mubr.f32.gmra.mrb[0].mxu0 %v54
  %v152 = vpop.f32.mrb[0].mxu0
  %v153 = vadd.f32 0.0, %v152
  %v154 = vpop.f32.mrb[0].mxu0
  %155 = vmatprep.mubr.f32.mxu0 0.0
  %156 = vmatmul.mubr.f32.gmra.mrb[0].mxu0 %v55
  %v157 = vpop.f32.mrb[0].mxu0
  %v158 = vadd.f32 0.0, %v157
  %v159 = vpop.f32.mrb[0].mxu0
  %160 = vmatprep.mubr.f32.mxu0 0.0
  %161 = vmatmul.mubr.f32.gmra.mrb[0].mxu0 %v56
  %v162 = vpop.f32.mrb[0].mxu0
  %v163 = vadd.f32 0.0, %v162
  %v164 = vpop.f32.mrb[0].mxu0
  %165 = vmatprep.mubr.f32.mxu0 0.0
  %166 = vmatmul.mubr.f32.gmra.mrb[0].mxu0 %v57
  %v167 = vpop.f32.mrb[0].mxu0
  %v168 = vadd.f32 0.0, %v167
  %v169 = vpop.f32.mrb[0].mxu0
  %170 = vmatprep.mubr.f32.mxu0 0.0
  %171 = vmatmul.mubr.f32.gmra.mrb[0].mxu0 %v58
  %v172 = vpop.f32.mrb[0].mxu0
  %v173 = vadd.f32 0.0, %v172
  %v174 = vpop.f32.mrb[0].mxu0
  %175 = vmatprep.mubr.f32.mxu0 0.0
  %176 = vmatmul.mubr.f32.gmra.mrb[0].mxu0 %v59
  %v177 = vpop.f32.mrb[0].mxu0
  %v178 = vadd.f32 0.0, %v177
  %v179 = vpop.f32.mrb[0].mxu0
  %180 = vmatprep.mubr.f32.mxu0 0.0
  %181 = vmatmul.mubr.f32.gmra.mrb[0].mxu0 %v60
  %v182 = vpop.f32.mrb[0].mxu0
  %v183 = vadd.f32 0.0, %v182
  %v184 = vpop.f32.mrb[0].mxu0
  %185 = vmatprep.mubr.f32.mxu0 0.0
  %186 = vmatmul.mubr.f32.gmra.mrb[0].mxu0 %v61
  %v187 = vpop.f32.mrb[0].mxu0
  %v188 = vadd.f32 0.0, %v187
  %v189 = vpop.f32.mrb[0].mxu0
  %190 = vmatprep.mubr.f32.mxu0 0.0
  %191 = vmatmul.mubr.f32.gmra.mrb[0].mxu0 %v62
  %v192 = vpop.f32.mrb[0].mxu0
  %v193 = vadd.f32 0.0, %v192
  %v194 = vpop.f32.mrb[0].mxu0
  %195 = vmatprep.mubr.f32.mxu0 0.0
  %196 = vmatmul.mubr.f32.gmra.mrb[0].mxu0 %v63
  %v197 = vpop.f32.mrb[0].mxu0
  %v198 = vadd.f32 0.0, %v197
  %v199 = vpop.f32.mrb[0].mxu0
  %200 = vmatprep.mubr.f32.mxu0 0.0
  %201 = vmatmul.mubr.f32.gmra.mrb[0].mxu0 %v64
  %v202 = vpop.f32.mrb[0].mxu0
  %v203 = vadd.f32 0.0, %v202
  %v204 = vpop.f32.mrb[0].mxu0
  %205 = vmatprep.mubr.f32.mxu0 0.0
  %206 = vmatmul.mubr.f32.gmra.mrb[0].mxu0 %v65
  %v207 = vpop.f32.mrb[0].mxu0
  %v208 = vadd.f32 0.0, %v207
  %v209 = vpop.f32.mrb[0].mxu0
  %210 = vmatprep.mubr.f32.mxu0 0.0
  %211 = vmatmul.mubr.f32.gmra.mrb[0].mxu0 %v66
  %v212 = vpop.f32.mrb[0].mxu0
  %v213 = vadd.f32 0.0, %v212
  %v214 = vpop.f32.mrb[0].mxu0
  %215 = vmatprep.mubr.f32.mxu0 0.0
  %216 = vmatmul.mubr.f32.gmra.mrb[0].mxu0 %v67
  %v217 = vpop.f32.mrb[0].mxu0
  %v218 = vadd.f32 0.0, %v217
  %v219 = vpop.f32.mrb[0].mxu0
  %220 = vmatprep.mubr.f32.mxu0 0.0
  %221 = vmatmul.mubr.f32.gmra.mrb[0].mxu0 %v68
  %v222 = vpop.f32.mrb[0].mxu0
  %v223 = vadd.f32 0.0, %v222
  %v224 = vpop.f32.mrb[0].mxu0
  %225 = vmatprep.mubr.f32.mxu0 0.0
  %226 = vmatmul.mubr.f32.gmra.mrb[0].mxu0 %v69
  %v227 = vpop.f32.mrb[0].mxu0
  %v228 = vadd.f32 0.0, %v227
  %v229 = vpop.f32.mrb[0].mxu0
  %230 = vdwg.mxu0
  %v231 = vlaneseq
  %v232 = vand.u32 %v231, 127
  %vm233 = vcmp.eq.s32.totalorder %v232, 127
  %v234 = vsel %vm233, 1.0, %v153
  %v235 = vsel %vm233, 1.0, %v158
  %v236 = vsel %vm233, 1.0, %v163
  %v237 = vsel %vm233, 1.0, %v168
  %v238 = vsel %vm233, 1.0, %v173
  %v239 = vsel %vm233, 1.0, %v178
  %v240 = vsel %vm233, 1.0, %v183
  %v241 = vsel %vm233, 1.0, %v188
  %v242 = vsel %vm233, 1.0, %v193
  %v243 = vsel %vm233, 1.0, %v198
  %v244 = vsel %vm233, 1.0, %v203
  %v245 = vsel %vm233, 1.0, %v208
  %v246 = vsel %vm233, 1.0, %v213
  %v247 = vsel %vm233, 1.0, %v218
  %v248 = vsel %vm233, 1.0, %v223
  %v249 = vsel %vm233, 1.0, %v228
  %v250 = vld [vmem:[%s3] sm:$0xff]
  %v251 = vld [vmem:[%s3 + $0x8] sm:$0xff]
  %v252 = vld [vmem:[%s3 + $0x10] sm:$0xff]
  %v253 = vld [vmem:[%s3 + $0x18] sm:$0xff]
  %v254 = vld [vmem:[%s3 + $0x20] sm:$0xff]
  %v255 = vld [vmem:[%s3 + $0x28] sm:$0xff]
  %v256 = vld [vmem:[%s3 + $0x30] sm:$0xff]
  %v257 = vld [vmem:[%s3 + $0x38] sm:$0xff]
  %v258 = vld [vmem:[%s3 + $0x40] sm:$0xff]
  %v259 = vld [vmem:[%s3 + $0x48] sm:$0xff]
  %v260 = vld [vmem:[%s3 + $0x50] sm:$0xff]
  %v261 = vld [vmem:[%s3 + $0x58] sm:$0xff]
  %v262 = vld [vmem:[%s3 + $0x60] sm:$0xff]
  %v263 = vld [vmem:[%s3 + $0x68] sm:$0xff]
  %v264 = vld [vmem:[%s3 + $0x70] sm:$0xff]
  %v265 = vld [vmem:[%s3 + $0x78] sm:$0xff]
  %266 = vmatprep.subr.mxu0 0.0
  %267 = vmatpush1.msra.mxu0 %v250
  %268 = vmatprep.subr.mxu0 0.0
  %269 = vmatpush1.msra.mxu0 %v251
  %270 = vmatprep.subr.mxu0 0.0
  %271 = vmatpush1.msra.mxu0 %v252
  %272 = vmatprep.subr.mxu0 0.0
  %273 = vmatpush1.msra.mxu0 %v253
  %274 = vmatprep.subr.mxu0 0.0
  %275 = vmatpush1.msra.mxu0 %v254
  %276 = vmatprep.subr.mxu0 0.0
  %277 = vmatpush1.msra.mxu0 %v255
  %278 = vmatprep.subr.mxu0 0.0
  %279 = vmatpush1.msra.mxu0 %v256
  %280 = vmatprep.subr.mxu0 0.0
  %281 = vmatpush1.msra.mxu0 %v257
  %282 = vmatprep.subr.mxu0 0.0
  %283 = vmatpush1.msra.mxu0 %v258
  %284 = vmatprep.subr.mxu0 0.0
  %285 = vmatpush1.msra.mxu0 %v259
  %286 = vmatprep.subr.mxu0 0.0
  %287 = vmatpush1.msra.mxu0 %v260
  %288 = vmatprep.subr.mxu0 0.0
  %289 = vmatpush1.msra.mxu0 %v261
  %290 = vmatprep.subr.mxu0 0.0
  %291 = vmatpush1.msra.mxu0 %v262
  %292 = vmatprep.subr.mxu0 0.0
  %293 = vmatpush1.msra.mxu0 %v263
  %294 = vmatprep.subr.mxu0 0.0
  %295 = vmatpush1.msra.mxu0 %v264
  %296 = vmatprep.subr.mxu0 0.0
  %297 = vmatpush1.msra.mxu0 %v265
  %298 = vmatprep.subr.mxu0 0.0
  %299 = vmatpush1.msra.mxu0 0.0
  %300 = vmatprep.subr.mxu0 0.0
  %301 = vmatpush1.msra.mxu0 0.0
  %302 = vmatprep.subr.mxu0 0.0
  %303 = vmatpush1.msra.mxu0 0.0
  %304 = vmatprep.subr.mxu0 0.0
  %305 = vmatpush1.msra.mxu0 0.0
  %306 = vmatprep.subr.mxu0 0.0
  %307 = vmatpush1.msra.mxu0 0.0
  %308 = vmatprep.subr.mxu0 0.0
  %309 = vmatpush1.msra.mxu0 0.0
  %310 = vmatprep.subr.mxu0 0.0
  %311 = vmatpush1.msra.mxu0 0.0
  %312 = vmatprep.subr.mxu0 0.0
  %313 = vmatpush1.msra.mxu0 0.0
  %314 = vmatprep.subr.mxu0 0.0
  %315 = vmatpush1.msra.mxu0 0.0
  %316 = vmatprep.subr.mxu0 0.0
  %317 = vmatpush1.msra.mxu0 0.0
  %318 = vmatprep.subr.mxu0 0.0
  %319 = vmatpush1.msra.mxu0 0.0
  %320 = vmatprep.subr.mxu0 0.0
  %321 = vmatpush1.msra.mxu0 0.0
  %322 = vmatprep.subr.mxu0 0.0
  %323 = vmatpush1.msra.mxu0 0.0
  %324 = vmatprep.subr.mxu0 0.0
  %325 = vmatpush1.msra.mxu0 0.0
  %326 = vmatprep.subr.mxu0 0.0
  %327 = vmatpush1.msra.mxu0 0.0
  %328 = vmatprep.subr.mxu0 0.0
  %329 = vmatpush1.msra.mxu0 0.0
  %330 = vmatprep.mubr.f32.mxu0 0.0
  %331 = vmatmul.mubr.f32.gmra.mrb[0].mxu0 %v153
  %v332 = vpop.f32.mrb[0].mxu0
  %v333 = vadd.f32 0.0, %v332
  %v334 = vpop.f32.mrb[0].mxu0
  %335 = vmatprep.mubr.f32.mxu0 0.0
  %336 = vmatmul.mubr.f32.gmra.mrb[0].mxu0 %v158
  %v337 = vpop.f32.mrb[0].mxu0
  %v338 = vadd.f32 0.0, %v337
  %v339 = vpop.f32.mrb[0].mxu0
  %340 = vmatprep.mubr.f32.mxu0 0.0
  %341 = vmatmul.mubr.f32.gmra.mrb[0].mxu0 %v163
  %v342 = vpop.f32.mrb[0].mxu0
  %v343 = vadd.f32 0.0, %v342
  %v344 = vpop.f32.mrb[0].mxu0
  %345 = vmatprep.mubr.f32.mxu0 0.0
  %346 = vmatmul.mubr.f32.gmra.mrb[0].mxu0 %v168
  %v347 = vpop.f32.mrb[0].mxu0
  %v348 = vadd.f32 0.0, %v347
  %v349 = vpop.f32.mrb[0].mxu0
  %350 = vmatprep.mubr.f32.mxu0 0.0
  %351 = vmatmul.mubr.f32.gmra.mrb[0].mxu0 %v173
  %v352 = vpop.f32.mrb[0].mxu0
  %v353 = vadd.f32 0.0, %v352
  %v354 = vpop.f32.mrb[0].mxu0
  %355 = vmatprep.mubr.f32.mxu0 0.0
  %356 = vmatmul.mubr.f32.gmra.mrb[0].mxu0 %v178
  %v357 = vpop.f32.mrb[0].mxu0
  %v358 = vadd.f32 0.0, %v357
  %v359 = vpop.f32.mrb[0].mxu0
  %360 = vmatprep.mubr.f32.mxu0 0.0
  %361 = vmatmul.mubr.f32.gmra.mrb[0].mxu0 %v183
  %v362 = vpop.f32.mrb[0].mxu0
  %v363 = vadd.f32 0.0, %v362
  %v364 = vpop.f32.mrb[0].mxu0
  %365 = vmatprep.mubr.f32.mxu0 0.0
  %366 = vmatmul.mubr.f32.gmra.mrb[0].mxu0 %v188
  %v367 = vpop.f32.mrb[0].mxu0
  %v368 = vadd.f32 0.0, %v367
  %v369 = vpop.f32.mrb[0].mxu0
  %370 = vmatprep.mubr.f32.mxu0 0.0
  %371 = vmatmul.mubr.f32.gmra.mrb[0].mxu0 %v193
  %v372 = vpop.f32.mrb[0].mxu0
  %v373 = vadd.f32 0.0, %v372
  %v374 = vpop.f32.mrb[0].mxu0
  %375 = vmatprep.mubr.f32.mxu0 0.0
  %376 = vmatmul.mubr.f32.gmra.mrb[0].mxu0 %v198
  %v377 = vpop.f32.mrb[0].mxu0
  %v378 = vadd.f32 0.0, %v377
  %v379 = vpop.f32.mrb[0].mxu0
  %380 = vmatprep.mubr.f32.mxu0 0.0
  %381 = vmatmul.mubr.f32.gmra.mrb[0].mxu0 %v203
  %v382 = vpop.f32.mrb[0].mxu0
  %v383 = vadd.f32 0.0, %v382
  %v384 = vpop.f32.mrb[0].mxu0
  %385 = vmatprep.mubr.f32.mxu0 0.0
  %386 = vmatmul.mubr.f32.gmra.mrb[0].mxu0 %v208
  %v387 = vpop.f32.mrb[0].mxu0
  %v388 = vadd.f32 0.0, %v387
  %v389 = vpop.f32.mrb[0].mxu0
  %390 = vmatprep.mubr.f32.mxu0 0.0
  %391 = vmatmul.mubr.f32.gmra.mrb[0].mxu0 %v213
  %v392 = vpop.f32.mrb[0].mxu0
  %v393 = vadd.f32 0.0, %v392
  %v394 = vpop.f32.mrb[0].mxu0
  %395 = vmatprep.mubr.f32.mxu0 0.0
  %396 = vmatmul.mubr.f32.gmra.mrb[0].mxu0 %v218
  %v397 = vpop.f32.mrb[0].mxu0
  %v398 = vadd.f32 0.0, %v397
  %v399 = vpop.f32.mrb[0].mxu0
  %400 = vmatprep.mubr.f32.mxu0 0.0
  %401 = vmatmul.mubr.f32.gmra.mrb[0].mxu0 %v223
  %v402 = vpop.f32.mrb[0].mxu0
  %v403 = vadd.f32 0.0, %v402
  %v404 = vpop.f32.mrb[0].mxu0
  %405 = vmatprep.mubr.f32.mxu0 0.0
  %406 = vmatmul.mubr.f32.gmra.mrb[0].mxu0 %v228
  %v407 = vpop.f32.mrb[0].mxu0
  %v408 = vadd.f32 0.0, %v407
  %v409 = vpop.f32.mrb[0].mxu0
  %410 = vdwg.mxu0
  %411 = vxpose.xlu0.b32.start [1/16] %v333, 128
  %412 = vxpose.xlu0.b32.cont [2/16] %v338, 128
  %413 = vxpose.xlu0.b32.cont [3/16] %v343, 128
  %414 = vxpose.xlu0.b32.cont [4/16] %v348, 128
  %415 = vxpose.xlu0.b32.cont [5/16] %v353, 128
  %416 = vxpose.xlu0.b32.cont [6/16] %v358, 128
  %417 = vxpose.xlu0.b32.cont [7/16] %v363, 128
  %418 = vxpose.xlu0.b32.cont [8/16] %v368, 128
  %419 = vxpose.xlu0.b32.cont [9/16] %v373, 128
  %420 = vxpose.xlu0.b32.cont [10/16] %v378, 128
  %421 = vxpose.xlu0.b32.cont [11/16] %v383, 128
  %422 = vxpose.xlu0.b32.cont [12/16] %v388, 128
  %423 = vxpose.xlu0.b32.cont [13/16] %v393, 128
  %424 = vxpose.xlu0.b32.cont [14/16] %v398, 128
  %425 = vxpose.xlu0.b32.cont [15/16] %v403, 128
  %426 = vxpose.xlu0.b32.end [16/16] %v408, 128
  %v427 = vpop.trf.xlu0
  %v428 = vpop.trf.xlu0
  %v429 = vpop.trf.xlu0
  %v430 = vpop.trf.xlu0
  %v431 = vpop.trf.xlu0
  %v432 = vpop.trf.xlu0
  %v433 = vpop.trf.xlu0
  %v434 = vpop.trf.xlu0
  %v435 = vpop.trf.xlu0
  %v436 = vpop.trf.xlu0
  %v437 = vpop.trf.xlu0
  %v438 = vpop.trf.xlu0
  %v439 = vpop.trf.xlu0
  %v440 = vpop.trf.xlu0
  %v441 = vpop.trf.xlu0
  %v442 = vpop.trf.xlu0
  %vm443 = vcmask 1043458
  %v444 = vsel %vm443, %v427, -inf
  %445 = vmax.xlane.f32.xlu0 %v444
  %v446 = vpop.xlane.xlu0 %445
  %v447 = vld [vmem:[%s4] sm:$0x1]
  %v448 = vlaneseq
  %v449 = vshrl.u32 %v448, 7
  %v450 = vsub.s32 2, %v449
  %v451 = vrot.slane %v446, %v450
  %v452 = vadd.f32 %v333, %v451
  %v453 = vadd.f32 %v338, %v451
  %v454 = vadd.f32 %v343, %v451
  %v455 = vadd.f32 %v348, %v451
  %v456 = vadd.f32 %v353, %v451
  %v457 = vadd.f32 %v358, %v451
  %v458 = vadd.f32 %v363, %v451
  %v459 = vadd.f32 %v368, %v451
  %v460 = vadd.f32 %v373, %v451
  %v461 = vadd.f32 %v378, %v451
  %v462 = vadd.f32 %v383, %v451
  %v463 = vadd.f32 %v388, %v451
  %v464 = vadd.f32 %v393, %v451
  %v465 = vadd.f32 %v398, %v451
  %v466 = vadd.f32 %v403, %v451
  %v467 = vadd.f32 %v408, %v451
  %v468 = vmul.f32 %v452, 0.2
  %v469 = vmul.f32 %v453, 0.2
  %v470 = vmul.f32 %v454, 0.2
  %v471 = vmul.f32 %v455, 0.2
  %v472 = vmul.f32 %v456, 0.2
  %v473 = vmul.f32 %v457, 0.2
  %v474 = vmul.f32 %v458, 0.2
  %v475 = vmul.f32 %v459, 0.2
  %v476 = vmul.f32 %v460, 0.2
  %v477 = vmul.f32 %v461, 0.2
  %v478 = vmul.f32 %v462, 0.2
  %v479 = vmul.f32 %v463, 0.2
  %v480 = vmul.f32 %v464, 0.2
  %v481 = vmul.f32 %v465, 0.2
  %v482 = vmul.f32 %v466, 0.2
  %v483 = vmul.f32 %v467, 0.2
  %v484 = vmax.f32 %v452, %v468
  %v485 = vmax.f32 %v453, %v469
  %v486 = vmax.f32 %v454, %v470
  %v487 = vmax.f32 %v455, %v471
  %v488 = vmax.f32 %v456, %v472
  %v489 = vmax.f32 %v457, %v473
  %v490 = vmax.f32 %v458, %v474
  %v491 = vmax.f32 %v459, %v475
  %v492 = vmax.f32 %v460, %v476
  %v493 = vmax.f32 %v461, %v477
  %v494 = vmax.f32 %v462, %v478
  %v495 = vmax.f32 %v463, %v479
  %v496 = vmax.f32 %v464, %v480
  %v497 = vmax.f32 %v465, %v481
  %v498 = vmax.f32 %v466, %v482
  %v499 = vmax.f32 %v467, %v483
  %501 = vset.pattern.permute.xlu0 0
  %502 = vperm.xlu0 %501, %v333
  %v503 = vpop.permute.xlu0 %502
  %506 = vset.pattern.permute.xlu0 0
  %507 = vperm.xlu0 %506, %v338
  %v508 = vpop.permute.xlu0 %507
  %511 = vset.pattern.permute.xlu0 0
  %512 = vperm.xlu0 %511, %v343
  %v513 = vpop.permute.xlu0 %512
  %516 = vset.pattern.permute.xlu0 0
  %517 = vperm.xlu0 %516, %v348
  %v518 = vpop.permute.xlu0 %517
  %521 = vset.pattern.permute.xlu0 0
  %522 = vperm.xlu0 %521, %v353
  %v523 = vpop.permute.xlu0 %522
  %526 = vset.pattern.permute.xlu0 0
  %527 = vperm.xlu0 %526, %v358
  %v528 = vpop.permute.xlu0 %527
  %531 = vset.pattern.permute.xlu0 0
  %532 = vperm.xlu0 %531, %v363
  %v533 = vpop.permute.xlu0 %532
  %536 = vset.pattern.permute.xlu0 0
  %537 = vperm.xlu0 %536, %v368
  %v538 = vpop.permute.xlu0 %537
  %541 = vset.pattern.permute.xlu0 0
  %542 = vperm.xlu0 %541, %v373
  %v543 = vpop.permute.xlu0 %542
  %546 = vset.pattern.permute.xlu0 0
  %547 = vperm.xlu0 %546, %v378
  %v548 = vpop.permute.xlu0 %547
  %551 = vset.pattern.permute.xlu0 0
  %552 = vperm.xlu0 %551, %v383
  %v553 = vpop.permute.xlu0 %552
  %556 = vset.pattern.permute.xlu0 0
  %557 = vperm.xlu0 %556, %v388
  %v558 = vpop.permute.xlu0 %557
  %561 = vset.pattern.permute.xlu0 0
  %562 = vperm.xlu0 %561, %v393
  %v563 = vpop.permute.xlu0 %562
  %566 = vset.pattern.permute.xlu0 0
  %567 = vperm.xlu0 %566, %v398
  %v568 = vpop.permute.xlu0 %567
  %571 = vset.pattern.permute.xlu0 0
  %572 = vperm.xlu0 %571, %v403
  %v573 = vpop.permute.xlu0 %572
  %576 = vset.pattern.permute.xlu0 0
  %577 = vperm.xlu0 %576, %v408
  %v578 = vpop.permute.xlu0 %577
  %v580 = vlaneseq
  %v581 = vshrl.u32 %v580, 7
  %v582 = vsub.s32 2, %v581
  %v583 = vrot.slane %v427, %v582
  %v584 = vadd.f32 %v503, %v583
  %v585 = vadd.f32 %v508, %v583
  %v586 = vadd.f32 %v513, %v583
  %v587 = vadd.f32 %v518, %v583
  %v588 = vadd.f32 %v523, %v583
  %v589 = vadd.f32 %v528, %v583
  %v590 = vadd.f32 %v533, %v583
  %v591 = vadd.f32 %v538, %v583
  %v592 = vadd.f32 %v543, %v583
  %v593 = vadd.f32 %v548, %v583
  %v594 = vadd.f32 %v553, %v583
  %v595 = vadd.f32 %v558, %v583
  %v596 = vadd.f32 %v563, %v583
  %v597 = vadd.f32 %v568, %v583
  %v598 = vadd.f32 %v573, %v583
  %v599 = vadd.f32 %v578, %v583
  %v600 = vmul.f32 %v584, 0.2
  %v601 = vmul.f32 %v585, 0.2
  %v602 = vmul.f32 %v586, 0.2
  %v603 = vmul.f32 %v587, 0.2
  %v604 = vmul.f32 %v588, 0.2
  %v605 = vmul.f32 %v589, 0.2
  %v606 = vmul.f32 %v590, 0.2
  %v607 = vmul.f32 %v591, 0.2
  %v608 = vmul.f32 %v592, 0.2
  %v609 = vmul.f32 %v593, 0.2
  %v610 = vmul.f32 %v594, 0.2
  %v611 = vmul.f32 %v595, 0.2
  %v612 = vmul.f32 %v596, 0.2
  %v613 = vmul.f32 %v597, 0.2
  %v614 = vmul.f32 %v598, 0.2
  %v615 = vmul.f32 %v599, 0.2
  %v616 = vmax.f32 %v584, %v600
  %v617 = vmax.f32 %v585, %v601
  %v618 = vmax.f32 %v586, %v602
  %v619 = vmax.f32 %v587, %v603
  %v620 = vmax.f32 %v588, %v604
  %v621 = vmax.f32 %v589, %v605
  %v622 = vmax.f32 %v590, %v606
  %v623 = vmax.f32 %v591, %v607
  %v624 = vmax.f32 %v592, %v608
  %v625 = vmax.f32 %v593, %v609
  %v626 = vmax.f32 %v594, %v610
  %v627 = vmax.f32 %v595, %v611
  %v628 = vmax.f32 %v596, %v612
  %v629 = vmax.f32 %v597, %v613
  %v630 = vmax.f32 %v598, %v614
  %v631 = vmax.f32 %v599, %v615
  %633 = vset.pattern.permute.xlu0 0
  %634 = vperm.xlu0 %633, %v484
  %v635 = vpop.permute.xlu0 %634
  %638 = vset.pattern.permute.xlu0 0
  %639 = vperm.xlu0 %638, %v485
  %v640 = vpop.permute.xlu0 %639
  %643 = vset.pattern.permute.xlu0 0
  %644 = vperm.xlu0 %643, %v486
  %v645 = vpop.permute.xlu0 %644
  %648 = vset.pattern.permute.xlu0 0
  %649 = vperm.xlu0 %648, %v487
  %v650 = vpop.permute.xlu0 %649
  %653 = vset.pattern.permute.xlu0 0
  %654 = vperm.xlu0 %653, %v488
  %v655 = vpop.permute.xlu0 %654
  %658 = vset.pattern.permute.xlu0 0
  %659 = vperm.xlu0 %658, %v489
  %v660 = vpop.permute.xlu0 %659
  %663 = vset.pattern.permute.xlu0 0
  %664 = vperm.xlu0 %663, %v490
  %v665 = vpop.permute.xlu0 %664
  %668 = vset.pattern.permute.xlu0 0
  %669 = vperm.xlu0 %668, %v491
  %v670 = vpop.permute.xlu0 %669
  %673 = vset.pattern.permute.xlu0 0
  %674 = vperm.xlu0 %673, %v492
  %v675 = vpop.permute.xlu0 %674
  %678 = vset.pattern.permute.xlu0 0
  %679 = vperm.xlu0 %678, %v493
  %v680 = vpop.permute.xlu0 %679
  %683 = vset.pattern.permute.xlu0 0
  %684 = vperm.xlu0 %683, %v494
  %v685 = vpop.permute.xlu0 %684
  %688 = vset.pattern.permute.xlu0 0
  %689 = vperm.xlu0 %688, %v495
  %v690 = vpop.permute.xlu0 %689
  %693 = vset.pattern.permute.xlu0 0
  %694 = vperm.xlu0 %693, %v496
  %v695 = vpop.permute.xlu0 %694
  %698 = vset.pattern.permute.xlu0 0
  %699 = vperm.xlu0 %698, %v497
  %v700 = vpop.permute.xlu0 %699
  %703 = vset.pattern.permute.xlu0 0
  %704 = vperm.xlu0 %703, %v498
  %v705 = vpop.permute.xlu0 %704
  %708 = vset.pattern.permute.xlu0 0
  %709 = vperm.xlu0 %708, %v499
  %v710 = vpop.permute.xlu0 %709
  %v712 = vsub.f32 %v616, %v635
  %v713 = vsub.f32 %v617, %v640
  %v714 = vsub.f32 %v618, %v645
  %v715 = vsub.f32 %v619, %v650
  %v716 = vsub.f32 %v620, %v655
  %v717 = vsub.f32 %v621, %v660
  %v718 = vsub.f32 %v622, %v665
  %v719 = vsub.f32 %v623, %v670
  %v720 = vsub.f32 %v624, %v675
  %v721 = vsub.f32 %v625, %v680
  %v722 = vsub.f32 %v626, %v685
  %v723 = vsub.f32 %v627, %v690
  %v724 = vsub.f32 %v628, %v695
  %v725 = vsub.f32 %v629, %v700
  %v726 = vsub.f32 %v630, %v705
  %v727 = vsub.f32 %v631, %v710
  %v728 = vmul.f32 %v712, 1.442695
  %v729 = vpow.pop %v728
  %v730 = vmul.f32 %v713, 1.442695
  %v731 = vpow.pop %v730
  %v732 = vmul.f32 %v714, 1.442695
  %v733 = vpow.pop %v732
  %v734 = vmul.f32 %v715, 1.442695
  %v735 = vpow.pop %v734
  %v736 = vmul.f32 %v716, 1.442695
  %v737 = vpow.pop %v736
  %v738 = vmul.f32 %v717, 1.442695
  %v739 = vpow.pop %v738
  %v740 = vmul.f32 %v718, 1.442695
  %v741 = vpow.pop %v740
  %v742 = vmul.f32 %v719, 1.442695
  %v743 = vpow.pop %v742
  %v744 = vmul.f32 %v720, 1.442695
  %v745 = vpow.pop %v744
  %v746 = vmul.f32 %v721, 1.442695
  %v747 = vpow.pop %v746
  %v748 = vmul.f32 %v722, 1.442695
  %v749 = vpow.pop %v748
  %v750 = vmul.f32 %v723, 1.442695
  %v751 = vpow.pop %v750
  %v752 = vmul.f32 %v724, 1.442695
  %v753 = vpow.pop %v752
  %v754 = vmul.f32 %v725, 1.442695
  %v755 = vpow.pop %v754
  %v756 = vmul.f32 %v726, 1.442695
  %v757 = vpow.pop %v756
  %v758 = vmul.f32 %v727, 1.442695
  %v759 = vpow.pop %v758
  %v760 = vunpack.c.l.bf16 %v38
  %v761 = vunpack.c.l.bf16 %v39
  %v762 = vunpack.c.l.bf16 %v40
  %v763 = vunpack.c.l.bf16 %v41
  %v764 = vunpack.c.l.bf16 %v42
  %v765 = vunpack.c.l.bf16 %v43
  %v766 = vunpack.c.l.bf16 %v44
  %v767 = vunpack.c.l.bf16 %v45
  %v768 = vunpack.c.l.bf16 %v46
  %v769 = vunpack.c.l.bf16 %v47
  %v770 = vunpack.c.l.bf16 %v48
  %v771 = vunpack.c.l.bf16 %v49
  %v772 = vunpack.c.l.bf16 %v50
  %v773 = vunpack.c.l.bf16 %v51
  %v774 = vunpack.c.l.bf16 %v52
  %v775 = vunpack.c.l.bf16 %v53
  %v776 = vmul.f32 %v729, %v760
  %v777 = vmul.f32 %v731, %v761
  %v778 = vmul.f32 %v733, %v762
  %v779 = vmul.f32 %v735, %v763
  %v780 = vmul.f32 %v737, %v764
  %v781 = vmul.f32 %v739, %v765
  %v782 = vmul.f32 %v741, %v766
  %v783 = vmul.f32 %v743, %v767
  %v784 = vmul.f32 %v745, %v768
  %v785 = vmul.f32 %v747, %v769
  %v786 = vmul.f32 %v749, %v770
  %v787 = vmul.f32 %v751, %v771
  %v788 = vmul.f32 %v753, %v772
  %v789 = vmul.f32 %v755, %v773
  %v790 = vmul.f32 %v757, %v774
  %v791 = vmul.f32 %v759, %v775
  %792 = vmatprep.subr.mxu0 0.0
  %793 = vmatpush1.msra.mxu0 %v234
  %794 = vmatprep.subr.mxu0 0.0
  %795 = vmatpush1.msra.mxu0 %v235
  %796 = vmatprep.subr.mxu0 0.0
  %797 = vmatpush1.msra.mxu0 %v236
  %798 = vmatprep.subr.mxu0 0.0
  %799 = vmatpush1.msra.mxu0 %v237
  %800 = vmatprep.subr.mxu0 0.0
  %801 = vmatpush1.msra.mxu0 %v238
  %802 = vmatprep.subr.mxu0 0.0
  %803 = vmatpush1.msra.mxu0 %v239
  %804 = vmatprep.subr.mxu0 0.0
  %805 = vmatpush1.msra.mxu0 %v240
  %806 = vmatprep.subr.mxu0 0.0
  %807 = vmatpush1.msra.mxu0 %v241
  %808 = vmatprep.subr.mxu0 0.0
  %809 = vmatpush1.msra.mxu0 %v242
  %810 = vmatprep.subr.mxu0 0.0
  %811 = vmatpush1.msra.mxu0 %v243
  %812 = vmatprep.subr.mxu0 0.0
  %813 = vmatpush1.msra.mxu0 %v244
  %814 = vmatprep.subr.mxu0 0.0
  %815 = vmatpush1.msra.mxu0 %v245
  %816 = vmatprep.subr.mxu0 0.0
  %817 = vmatpush1.msra.mxu0 %v246
  %818 = vmatprep.subr.mxu0 0.0
  %819 = vmatpush1.msra.mxu0 %v247
  %820 = vmatprep.subr.mxu0 0.0
  %821 = vmatpush1.msra.mxu0 %v248
  %822 = vmatprep.subr.mxu0 0.0
  %823 = vmatpush1.msra.mxu0 %v249
  %824 = vmatprep.subr.mxu0 0.0
  %825 = vmatpush1.msra.mxu0 0.0
  %826 = vmatprep.subr.mxu0 0.0
  %827 = vmatpush1.msra.mxu0 0.0
  %828 = vmatprep.subr.mxu0 0.0
  %829 = vmatpush1.msra.mxu0 0.0
  %830 = vmatprep.subr.mxu0 0.0
  %831 = vmatpush1.msra.mxu0 0.0
  %832 = vmatprep.subr.mxu0 0.0
  %833 = vmatpush1.msra.mxu0 0.0
  %834 = vmatprep.subr.mxu0 0.0
  %835 = vmatpush1.msra.mxu0 0.0
  %836 = vmatprep.subr.mxu0 0.0
  %837 = vmatpush1.msra.mxu0 0.0
  %838 = vmatprep.subr.mxu0 0.0
  %839 = vmatpush1.msra.mxu0 0.0
  %840 = vmatprep.subr.mxu0 0.0
  %841 = vmatpush1.msra.mxu0 0.0
  %842 = vmatprep.subr.mxu0 0.0
  %843 = vmatpush1.msra.mxu0 0.0
  %844 = vmatprep.subr.mxu0 0.0
  %845 = vmatpush1.msra.mxu0 0.0
  %846 = vmatprep.subr.mxu0 0.0
  %847 = vmatpush1.msra.mxu0 0.0
  %848 = vmatprep.subr.mxu0 0.0
  %849 = vmatpush1.msra.mxu0 0.0
  %850 = vmatprep.subr.mxu0 0.0
  %851 = vmatpush1.msra.mxu0 0.0
  %852 = vmatprep.subr.mxu0 0.0
  %853 = vmatpush1.msra.mxu0 0.0
  %854 = vmatprep.subr.mxu0 0.0
  %855 = vmatpush1.msra.mxu0 0.0
  %856 = vmatprep.mubr.f32.mxu0 0.0
  %857 = vmatmul.mubr.f32.gmra.mrb[0].mxu0 %v776
  %v858 = vpop.f32.mrb[0].mxu0
  %v859 = vadd.f32 0.0, %v858
  %v860 = vpop.f32.mrb[0].mxu0
  %861 = vmatprep.mubr.f32.mxu0 0.0
  %862 = vmatmul.mubr.f32.gmra.mrb[0].mxu0 %v777
  %v863 = vpop.f32.mrb[0].mxu0
  %v864 = vadd.f32 0.0, %v863
  %v865 = vpop.f32.mrb[0].mxu0
  %866 = vmatprep.mubr.f32.mxu0 0.0
  %867 = vmatmul.mubr.f32.gmra.mrb[0].mxu0 %v778
  %v868 = vpop.f32.mrb[0].mxu0
  %v869 = vadd.f32 0.0, %v868
  %v870 = vpop.f32.mrb[0].mxu0
  %871 = vmatprep.mubr.f32.mxu0 0.0
  %872 = vmatmul.mubr.f32.gmra.mrb[0].mxu0 %v779
  %v873 = vpop.f32.mrb[0].mxu0
  %v874 = vadd.f32 0.0, %v873
  %v875 = vpop.f32.mrb[0].mxu0
  %876 = vmatprep.mubr.f32.mxu0 0.0
  %877 = vmatmul.mubr.f32.gmra.mrb[0].mxu0 %v780
  %v878 = vpop.f32.mrb[0].mxu0
  %v879 = vadd.f32 0.0, %v878
  %v880 = vpop.f32.mrb[0].mxu0
  %881 = vmatprep.mubr.f32.mxu0 0.0
  %882 = vmatmul.mubr.f32.gmra.mrb[0].mxu0 %v781
  %v883 = vpop.f32.mrb[0].mxu0
  %v884 = vadd.f32 0.0, %v883
  %v885 = vpop.f32.mrb[0].mxu0
  %886 = vmatprep.mubr.f32.mxu0 0.0
  %887 = vmatmul.mubr.f32.gmra.mrb[0].mxu0 %v782
  %v888 = vpop.f32.mrb[0].mxu0
  %v889 = vadd.f32 0.0, %v888
  %v890 = vpop.f32.mrb[0].mxu0
  %891 = vmatprep.mubr.f32.mxu0 0.0
  %892 = vmatmul.mubr.f32.gmra.mrb[0].mxu0 %v783
  %v893 = vpop.f32.mrb[0].mxu0
  %v894 = vadd.f32 0.0, %v893
  %v895 = vpop.f32.mrb[0].mxu0
  %896 = vmatprep.mubr.f32.mxu0 0.0
  %897 = vmatmul.mubr.f32.gmra.mrb[0].mxu0 %v784
  %v898 = vpop.f32.mrb[0].mxu0
  %v899 = vadd.f32 0.0, %v898
  %v900 = vpop.f32.mrb[0].mxu0
  %901 = vmatprep.mubr.f32.mxu0 0.0
  %902 = vmatmul.mubr.f32.gmra.mrb[0].mxu0 %v785
  %v903 = vpop.f32.mrb[0].mxu0
  %v904 = vadd.f32 0.0, %v903
  %v905 = vpop.f32.mrb[0].mxu0
  %906 = vmatprep.mubr.f32.mxu0 0.0
  %907 = vmatmul.mubr.f32.gmra.mrb[0].mxu0 %v786
  %v908 = vpop.f32.mrb[0].mxu0
  %v909 = vadd.f32 0.0, %v908
  %v910 = vpop.f32.mrb[0].mxu0
  %911 = vmatprep.mubr.f32.mxu0 0.0
  %912 = vmatmul.mubr.f32.gmra.mrb[0].mxu0 %v787
  %v913 = vpop.f32.mrb[0].mxu0
  %v914 = vadd.f32 0.0, %v913
  %v915 = vpop.f32.mrb[0].mxu0
  %916 = vmatprep.mubr.f32.mxu0 0.0
  %917 = vmatmul.mubr.f32.gmra.mrb[0].mxu0 %v788
  %v918 = vpop.f32.mrb[0].mxu0
  %v919 = vadd.f32 0.0, %v918
  %v920 = vpop.f32.mrb[0].mxu0
  %921 = vmatprep.mubr.f32.mxu0 0.0
  %922 = vmatmul.mubr.f32.gmra.mrb[0].mxu0 %v789
  %v923 = vpop.f32.mrb[0].mxu0
  %v924 = vadd.f32 0.0, %v923
  %v925 = vpop.f32.mrb[0].mxu0
  %926 = vmatprep.mubr.f32.mxu0 0.0
  %927 = vmatmul.mubr.f32.gmra.mrb[0].mxu0 %v790
  %v928 = vpop.f32.mrb[0].mxu0
  %v929 = vadd.f32 0.0, %v928
  %v930 = vpop.f32.mrb[0].mxu0
  %931 = vmatprep.mubr.f32.mxu0 0.0
  %932 = vmatmul.mubr.f32.gmra.mrb[0].mxu0 %v791
  %v933 = vpop.f32.mrb[0].mxu0
  %v934 = vadd.f32 0.0, %v933
  %v935 = vpop.f32.mrb[0].mxu0
  %936 = vdwg.mxu0
  %v937 = vrcp.pop %v859
  %v938 = vmul.f32 1.0, %v937
  %v939 = vrcp.pop %v864
  %v940 = vmul.f32 1.0, %v939
  %v941 = vrcp.pop %v869
  %v942 = vmul.f32 1.0, %v941
  %v943 = vrcp.pop %v874
  %v944 = vmul.f32 1.0, %v943
  %v945 = vrcp.pop %v879
  %v946 = vmul.f32 1.0, %v945
  %v947 = vrcp.pop %v884
  %v948 = vmul.f32 1.0, %v947
  %v949 = vrcp.pop %v889
  %v950 = vmul.f32 1.0, %v949
  %v951 = vrcp.pop %v894
  %v952 = vmul.f32 1.0, %v951
  %v953 = vrcp.pop %v899
  %v954 = vmul.f32 1.0, %v953
  %v955 = vrcp.pop %v904
  %v956 = vmul.f32 1.0, %v955
  %v957 = vrcp.pop %v909
  %v958 = vmul.f32 1.0, %v957
  %v959 = vrcp.pop %v914
  %v960 = vmul.f32 1.0, %v959
  %v961 = vrcp.pop %v919
  %v962 = vmul.f32 1.0, %v961
  %v963 = vrcp.pop %v924
  %v964 = vmul.f32 1.0, %v963
  %v965 = vrcp.pop %v929
  %v966 = vmul.f32 1.0, %v965
  %v967 = vrcp.pop %v934
  %v968 = vmul.f32 1.0, %v967
  %970 = vset.pattern.permute.xlu0 127
  %971 = vperm.xlu0 %970, %v938
  %v972 = vpop.permute.xlu0 %971
  %975 = vset.pattern.permute.xlu0 127
  %976 = vperm.xlu0 %975, %v940
  %v977 = vpop.permute.xlu0 %976
  %980 = vset.pattern.permute.xlu0 127
  %981 = vperm.xlu0 %980, %v942
  %v982 = vpop.permute.xlu0 %981
  %985 = vset.pattern.permute.xlu0 127
  %986 = vperm.xlu0 %985, %v944
  %v987 = vpop.permute.xlu0 %986
  %990 = vset.pattern.permute.xlu0 127
  %991 = vperm.xlu0 %990, %v946
  %v992 = vpop.permute.xlu0 %991
  %995 = vset.pattern.permute.xlu0 127
  %996 = vperm.xlu0 %995, %v948
  %v997 = vpop.permute.xlu0 %996
  %1000 = vset.pattern.permute.xlu0 127
  %1001 = vperm.xlu0 %1000, %v950
  %v1002 = vpop.permute.xlu0 %1001
  %1005 = vset.pattern.permute.xlu0 127
  %1006 = vperm.xlu0 %1005, %v952
  %v1007 = vpop.permute.xlu0 %1006
  %1010 = vset.pattern.permute.xlu0 127
  %1011 = vperm.xlu0 %1010, %v954
  %v1012 = vpop.permute.xlu0 %1011
  %1015 = vset.pattern.permute.xlu0 127
  %1016 = vperm.xlu0 %1015, %v956
  %v1017 = vpop.permute.xlu0 %1016
  %1020 = vset.pattern.permute.xlu0 127
  %1021 = vperm.xlu0 %1020, %v958
  %v1022 = vpop.permute.xlu0 %1021
  %1025 = vset.pattern.permute.xlu0 127
  %1026 = vperm.xlu0 %1025, %v960
  %v1027 = vpop.permute.xlu0 %1026
  %1030 = vset.pattern.permute.xlu0 127
  %1031 = vperm.xlu0 %1030, %v962
  %v1032 = vpop.permute.xlu0 %1031
  %1035 = vset.pattern.permute.xlu0 127
  %1036 = vperm.xlu0 %1035, %v964
  %v1037 = vpop.permute.xlu0 %1036
  %1040 = vset.pattern.permute.xlu0 127
  %1041 = vperm.xlu0 %1040, %v966
  %v1042 = vpop.permute.xlu0 %1041
  %1045 = vset.pattern.permute.xlu0 127
  %1046 = vperm.xlu0 %1045, %v968
  %v1047 = vpop.permute.xlu0 %1046
  %v1049 = vmul.f32 %v859, %v972
  %v1050 = vmul.f32 %v864, %v977
  %v1051 = vmul.f32 %v869, %v982
  %v1052 = vmul.f32 %v874, %v987
  %v1053 = vmul.f32 %v879, %v992
  %v1054 = vmul.f32 %v884, %v997
  %v1055 = vmul.f32 %v889, %v1002
  %v1056 = vmul.f32 %v894, %v1007
  %v1057 = vmul.f32 %v899, %v1012
  %v1058 = vmul.f32 %v904, %v1017
  %v1059 = vmul.f32 %v909, %v1022
  %v1060 = vmul.f32 %v914, %v1027
  %v1061 = vmul.f32 %v919, %v1032
  %v1062 = vmul.f32 %v924, %v1037
  %v1063 = vmul.f32 %v929, %v1042
  %v1064 = vmul.f32 %v934, %v1047
  %v1066 = vlaneseq
  %v1067 = vshrl.u32 %v1066, 7
  %v1068 = vsub.s32 0, %v1067
  %v1069 = vrot.slane %v447, %v1068
  %v1071 = vadd.f32 %v1049, %v1069
  %v1072 = vadd.f32 %v1050, %v1069
  %v1073 = vadd.f32 %v1051, %v1069
  %v1074 = vadd.f32 %v1052, %v1069
  %v1075 = vadd.f32 %v1053, %v1069
  %v1076 = vadd.f32 %v1054, %v1069
  %v1077 = vadd.f32 %v1055, %v1069
  %v1078 = vadd.f32 %v1056, %v1069
  %v1079 = vadd.f32 %v1057, %v1069
  %v1080 = vadd.f32 %v1058, %v1069
  %v1081 = vadd.f32 %v1059, %v1069
  %v1082 = vadd.f32 %v1060, %v1069
  %v1083 = vadd.f32 %v1061, %v1069
  %v1084 = vadd.f32 %v1062, %v1069
  %v1085 = vadd.f32 %v1063, %v1069
  %v1086 = vadd.f32 %v1064, %v1069
  %vm1087 = vcmp.gt.f32.partialorder %v1071, 0.0
  %vm1088 = vcmp.gt.f32.partialorder %v1072, 0.0
  %vm1089 = vcmp.gt.f32.partialorder %v1073, 0.0
  %vm1090 = vcmp.gt.f32.partialorder %v1074, 0.0
  %vm1091 = vcmp.gt.f32.partialorder %v1075, 0.0
  %vm1092 = vcmp.gt.f32.partialorder %v1076, 0.0
  %vm1093 = vcmp.gt.f32.partialorder %v1077, 0.0
  %vm1094 = vcmp.gt.f32.partialorder %v1078, 0.0
  %vm1095 = vcmp.gt.f32.partialorder %v1079, 0.0
  %vm1096 = vcmp.gt.f32.partialorder %v1080, 0.0
  %vm1097 = vcmp.gt.f32.partialorder %v1081, 0.0
  %vm1098 = vcmp.gt.f32.partialorder %v1082, 0.0
  %vm1099 = vcmp.gt.f32.partialorder %v1083, 0.0
  %vm1100 = vcmp.gt.f32.partialorder %v1084, 0.0
  %vm1101 = vcmp.gt.f32.partialorder %v1085, 0.0
  %vm1102 = vcmp.gt.f32.partialorder %v1086, 0.0
  %v1103 = vmul.f32 %v1071, 1.442695
  %v1104 = vpow.pop %v1103
  %v1105 = vmul.f32 %v1072, 1.442695
  %v1106 = vpow.pop %v1105
  %v1107 = vmul.f32 %v1073, 1.442695
  %v1108 = vpow.pop %v1107
  %v1109 = vmul.f32 %v1074, 1.442695
  %v1110 = vpow.pop %v1109
  %v1111 = vmul.f32 %v1075, 1.442695
  %v1112 = vpow.pop %v1111
  %v1113 = vmul.f32 %v1076, 1.442695
  %v1114 = vpow.pop %v1113
  %v1115 = vmul.f32 %v1077, 1.442695
  %v1116 = vpow.pop %v1115
  %v1117 = vmul.f32 %v1078, 1.442695
  %v1118 = vpow.pop %v1117
  %v1119 = vmul.f32 %v1079, 1.442695
  %v1120 = vpow.pop %v1119
  %v1121 = vmul.f32 %v1080, 1.442695
  %v1122 = vpow.pop %v1121
  %v1123 = vmul.f32 %v1081, 1.442695
  %v1124 = vpow.pop %v1123
  %v1125 = vmul.f32 %v1082, 1.442695
  %v1126 = vpow.pop %v1125
  %v1127 = vmul.f32 %v1083, 1.442695
  %v1128 = vpow.pop %v1127
  %v1129 = vmul.f32 %v1084, 1.442695
  %v1130 = vpow.pop %v1129
  %v1131 = vmul.f32 %v1085, 1.442695
  %v1132 = vpow.pop %v1131
  %v1133 = vmul.f32 %v1086, 1.442695
  %v1134 = vpow.pop %v1133
  %v1135 = vsub.f32 %v1104, 1.0
  %v1136 = vsub.f32 %v1106, 1.0
  %v1137 = vsub.f32 %v1108, 1.0
  %v1138 = vsub.f32 %v1110, 1.0
  %v1139 = vsub.f32 %v1112, 1.0
  %v1140 = vsub.f32 %v1114, 1.0
  %v1141 = vsub.f32 %v1116, 1.0
  %v1142 = vsub.f32 %v1118, 1.0
  %v1143 = vsub.f32 %v1120, 1.0
  %v1144 = vsub.f32 %v1122, 1.0
  %v1145 = vsub.f32 %v1124, 1.0
  %v1146 = vsub.f32 %v1126, 1.0
  %v1147 = vsub.f32 %v1128, 1.0
  %v1148 = vsub.f32 %v1130, 1.0
  %v1149 = vsub.f32 %v1132, 1.0
  %v1150 = vsub.f32 %v1134, 1.0
  %v1151 = vsel %vm1087, %v1071, %v1135
  %v1152 = vsel %vm1088, %v1072, %v1136
  %v1153 = vsel %vm1089, %v1073, %v1137
  %v1154 = vsel %vm1090, %v1074, %v1138
  %v1155 = vsel %vm1091, %v1075, %v1139
  %v1156 = vsel %vm1092, %v1076, %v1140
  %v1157 = vsel %vm1093, %v1077, %v1141
  %v1158 = vsel %vm1094, %v1078, %v1142
  %v1159 = vsel %vm1095, %v1079, %v1143
  %v1160 = vsel %vm1096, %v1080, %v1144
  %v1161 = vsel %vm1097, %v1081, %v1145
  %v1162 = vsel %vm1098, %v1082, %v1146
  %v1163 = vsel %vm1099, %v1083, %v1147
  %v1164 = vsel %vm1100, %v1084, %v1148
  %v1165 = vsel %vm1101, %v1085, %v1149
  %v1166 = vsel %vm1102, %v1086, %v1150
  %v1167 = vlaneseq
  %v1168 = vshrl.u32 %v1167, 7
  %v1169 = vsub.s32 3, %v1168
  %v1170 = vrot.slane %v446, %v1169
  %v1171 = vadd.f32 %v333, %v1170
  %v1172 = vadd.f32 %v338, %v1170
  %v1173 = vadd.f32 %v343, %v1170
  %v1174 = vadd.f32 %v348, %v1170
  %v1175 = vadd.f32 %v353, %v1170
  %v1176 = vadd.f32 %v358, %v1170
  %v1177 = vadd.f32 %v363, %v1170
  %v1178 = vadd.f32 %v368, %v1170
  %v1179 = vadd.f32 %v373, %v1170
  %v1180 = vadd.f32 %v378, %v1170
  %v1181 = vadd.f32 %v383, %v1170
  %v1182 = vadd.f32 %v388, %v1170
  %v1183 = vadd.f32 %v393, %v1170
  %v1184 = vadd.f32 %v398, %v1170
  %v1185 = vadd.f32 %v403, %v1170
  %v1186 = vadd.f32 %v408, %v1170
  %v1187 = vmul.f32 %v1171, 0.2
  %v1188 = vmul.f32 %v1172, 0.2
  %v1189 = vmul.f32 %v1173, 0.2
  %v1190 = vmul.f32 %v1174, 0.2
  %v1191 = vmul.f32 %v1175, 0.2
  %v1192 = vmul.f32 %v1176, 0.2
  %v1193 = vmul.f32 %v1177, 0.2
  %v1194 = vmul.f32 %v1178, 0.2
  %v1195 = vmul.f32 %v1179, 0.2
  %v1196 = vmul.f32 %v1180, 0.2
  %v1197 = vmul.f32 %v1181, 0.2
  %v1198 = vmul.f32 %v1182, 0.2
  %v1199 = vmul.f32 %v1183, 0.2
  %v1200 = vmul.f32 %v1184, 0.2
  %v1201 = vmul.f32 %v1185, 0.2
  %v1202 = vmul.f32 %v1186, 0.2
  %v1203 = vmax.f32 %v1171, %v1187
  %v1204 = vmax.f32 %v1172, %v1188
  %v1205 = vmax.f32 %v1173, %v1189
  %v1206 = vmax.f32 %v1174, %v1190
  %v1207 = vmax.f32 %v1175, %v1191
  %v1208 = vmax.f32 %v1176, %v1192
  %v1209 = vmax.f32 %v1177, %v1193
  %v1210 = vmax.f32 %v1178, %v1194
  %v1211 = vmax.f32 %v1179, %v1195
  %v1212 = vmax.f32 %v1180, %v1196
  %v1213 = vmax.f32 %v1181, %v1197
  %v1214 = vmax.f32 %v1182, %v1198
  %v1215 = vmax.f32 %v1183, %v1199
  %v1216 = vmax.f32 %v1184, %v1200
  %v1217 = vmax.f32 %v1185, %v1201
  %v1218 = vmax.f32 %v1186, %v1202
  %1219 = vset.pattern.permute.xlu0 1
  %1220 = vperm.xlu0 %1219, %v333
  %v1221 = vpop.permute.xlu0 %1220
  %1223 = vset.pattern.permute.xlu0 1
  %1224 = vperm.xlu0 %1223, %v338
  %v1225 = vpop.permute.xlu0 %1224
  %1227 = vset.pattern.permute.xlu0 1
  %1228 = vperm.xlu0 %1227, %v343
  %v1229 = vpop.permute.xlu0 %1228
  %1231 = vset.pattern.permute.xlu0 1
  %1232 = vperm.xlu0 %1231, %v348
  %v1233 = vpop.permute.xlu0 %1232
  %1235 = vset.pattern.permute.xlu0 1
  %1236 = vperm.xlu0 %1235, %v353
  %v1237 = vpop.permute.xlu0 %1236
  %1239 = vset.pattern.permute.xlu0 1
  %1240 = vperm.xlu0 %1239, %v358
  %v1241 = vpop.permute.xlu0 %1240
  %1243 = vset.pattern.permute.xlu0 1
  %1244 = vperm.xlu0 %1243, %v363
  %v1245 = vpop.permute.xlu0 %1244
  %1247 = vset.pattern.permute.xlu0 1
  %1248 = vperm.xlu0 %1247, %v368
  %v1249 = vpop.permute.xlu0 %1248
  %1251 = vset.pattern.permute.xlu0 1
  %1252 = vperm.xlu0 %1251, %v373
  %v1253 = vpop.permute.xlu0 %1252
  %1255 = vset.pattern.permute.xlu0 1
  %1256 = vperm.xlu0 %1255, %v378
  %v1257 = vpop.permute.xlu0 %1256
  %1259 = vset.pattern.permute.xlu0 1
  %1260 = vperm.xlu0 %1259, %v383
  %v1261 = vpop.permute.xlu0 %1260
  %1263 = vset.pattern.permute.xlu0 1
  %1264 = vperm.xlu0 %1263, %v388
  %v1265 = vpop.permute.xlu0 %1264
  %1267 = vset.pattern.permute.xlu0 1
  %1268 = vperm.xlu0 %1267, %v393
  %v1269 = vpop.permute.xlu0 %1268
  %1271 = vset.pattern.permute.xlu0 1
  %1272 = vperm.xlu0 %1271, %v398
  %v1273 = vpop.permute.xlu0 %1272
  %1275 = vset.pattern.permute.xlu0 1
  %1276 = vperm.xlu0 %1275, %v403
  %v1277 = vpop.permute.xlu0 %1276
  %1279 = vset.pattern.permute.xlu0 1
  %1280 = vperm.xlu0 %1279, %v408
  %v1281 = vpop.permute.xlu0 %1280
  %v1283 = vlaneseq
  %v1284 = vshrl.u32 %v1283, 7
  %v1285 = vsub.s32 3, %v1284
  %v1286 = vrot.slane %v427, %v1285
  %v1287 = vadd.f32 %v1221, %v1286
  %v1288 = vadd.f32 %v1225, %v1286
  %v1289 = vadd.f32 %v1229, %v1286
  %v1290 = vadd.f32 %v1233, %v1286
  %v1291 = vadd.f32 %v1237, %v1286
  %v1292 = vadd.f32 %v1241, %v1286
  %v1293 = vadd.f32 %v1245, %v1286
  %v1294 = vadd.f32 %v1249, %v1286
  %v1295 = vadd.f32 %v1253, %v1286
  %v1296 = vadd.f32 %v1257, %v1286
  %v1297 = vadd.f32 %v1261, %v1286
  %v1298 = vadd.f32 %v1265, %v1286
  %v1299 = vadd.f32 %v1269, %v1286
  %v1300 = vadd.f32 %v1273, %v1286
  %v1301 = vadd.f32 %v1277, %v1286
  %v1302 = vadd.f32 %v1281, %v1286
  %v1303 = vmul.f32 %v1287, 0.2
  %v1304 = vmul.f32 %v1288, 0.2
  %v1305 = vmul.f32 %v1289, 0.2
  %v1306 = vmul.f32 %v1290, 0.2
  %v1307 = vmul.f32 %v1291, 0.2
  %v1308 = vmul.f32 %v1292, 0.2
  %v1309 = vmul.f32 %v1293, 0.2
  %v1310 = vmul.f32 %v1294, 0.2
  %v1311 = vmul.f32 %v1295, 0.2
  %v1312 = vmul.f32 %v1296, 0.2
  %v1313 = vmul.f32 %v1297, 0.2
  %v1314 = vmul.f32 %v1298, 0.2
  %v1315 = vmul.f32 %v1299, 0.2
  %v1316 = vmul.f32 %v1300, 0.2
  %v1317 = vmul.f32 %v1301, 0.2
  %v1318 = vmul.f32 %v1302, 0.2
  %v1319 = vmax.f32 %v1287, %v1303
  %v1320 = vmax.f32 %v1288, %v1304
  %v1321 = vmax.f32 %v1289, %v1305
  %v1322 = vmax.f32 %v1290, %v1306
  %v1323 = vmax.f32 %v1291, %v1307
  %v1324 = vmax.f32 %v1292, %v1308
  %v1325 = vmax.f32 %v1293, %v1309
  %v1326 = vmax.f32 %v1294, %v1310
  %v1327 = vmax.f32 %v1295, %v1311
  %v1328 = vmax.f32 %v1296, %v1312
  %v1329 = vmax.f32 %v1297, %v1313
  %v1330 = vmax.f32 %v1298, %v1314
  %v1331 = vmax.f32 %v1299, %v1315
  %v1332 = vmax.f32 %v1300, %v1316
  %v1333 = vmax.f32 %v1301, %v1317
  %v1334 = vmax.f32 %v1302, %v1318
  %1336 = vset.pattern.permute.xlu0 1
  %1337 = vperm.xlu0 %1336, %v1203
  %v1338 = vpop.permute.xlu0 %1337
  %1341 = vset.pattern.permute.xlu0 1
  %1342 = vperm.xlu0 %1341, %v1204
  %v1343 = vpop.permute.xlu0 %1342
  %1346 = vset.pattern.permute.xlu0 1
  %1347 = vperm.xlu0 %1346, %v1205
  %v1348 = vpop.permute.xlu0 %1347
  %1351 = vset.pattern.permute.xlu0 1
  %1352 = vperm.xlu0 %1351, %v1206
  %v1353 = vpop.permute.xlu0 %1352
  %1356 = vset.pattern.permute.xlu0 1
  %1357 = vperm.xlu0 %1356, %v1207
  %v1358 = vpop.permute.xlu0 %1357
  %1361 = vset.pattern.permute.xlu0 1
  %1362 = vperm.xlu0 %1361, %v1208
  %v1363 = vpop.permute.xlu0 %1362
  %1366 = vset.pattern.permute.xlu0 1
  %1367 = vperm.xlu0 %1366, %v1209
  %v1368 = vpop.permute.xlu0 %1367
  %1371 = vset.pattern.permute.xlu0 1
  %1372 = vperm.xlu0 %1371, %v1210
  %v1373 = vpop.permute.xlu0 %1372
  %1376 = vset.pattern.permute.xlu0 1
  %1377 = vperm.xlu0 %1376, %v1211
  %v1378 = vpop.permute.xlu0 %1377
  %1381 = vset.pattern.permute.xlu0 1
  %1382 = vperm.xlu0 %1381, %v1212
  %v1383 = vpop.permute.xlu0 %1382
  %1386 = vset.pattern.permute.xlu0 1
  %1387 = vperm.xlu0 %1386, %v1213
  %v1388 = vpop.permute.xlu0 %1387
  %1391 = vset.pattern.permute.xlu0 1
  %1392 = vperm.xlu0 %1391, %v1214
  %v1393 = vpop.permute.xlu0 %1392
  %1396 = vset.pattern.permute.xlu0 1
  %1397 = vperm.xlu0 %1396, %v1215
  %v1398 = vpop.permute.xlu0 %1397
  %1401 = vset.pattern.permute.xlu0 1
  %1402 = vperm.xlu0 %1401, %v1216
  %v1403 = vpop.permute.xlu0 %1402
  %1406 = vset.pattern.permute.xlu0 1
  %1407 = vperm.xlu0 %1406, %v1217
  %v1408 = vpop.permute.xlu0 %1407
  %1411 = vset.pattern.permute.xlu0 1
  %1412 = vperm.xlu0 %1411, %v1218
  %v1413 = vpop.permute.xlu0 %1412
  %v1415 = vsub.f32 %v1319, %v1338
  %v1416 = vsub.f32 %v1320, %v1343
  %v1417 = vsub.f32 %v1321, %v1348
  %v1418 = vsub.f32 %v1322, %v1353
  %v1419 = vsub.f32 %v1323, %v1358
  %v1420 = vsub.f32 %v1324, %v1363
  %v1421 = vsub.f32 %v1325, %v1368
  %v1422 = vsub.f32 %v1326, %v1373
  %v1423 = vsub.f32 %v1327, %v1378
  %v1424 = vsub.f32 %v1328, %v1383
  %v1425 = vsub.f32 %v1329, %v1388
  %v1426 = vsub.f32 %v1330, %v1393
  %v1427 = vsub.f32 %v1331, %v1398
  %v1428 = vsub.f32 %v1332, %v1403
  %v1429 = vsub.f32 %v1333, %v1408
  %v1430 = vsub.f32 %v1334, %v1413
  %v1431 = vmul.f32 %v1415, 1.442695
  %v1432 = vpow.pop %v1431
  %v1433 = vmul.f32 %v1416, 1.442695
  %v1434 = vpow.pop %v1433
  %v1435 = vmul.f32 %v1417, 1.442695
  %v1436 = vpow.pop %v1435
  %v1437 = vmul.f32 %v1418, 1.442695
  %v1438 = vpow.pop %v1437
  %v1439 = vmul.f32 %v1419, 1.442695
  %v1440 = vpow.pop %v1439
  %v1441 = vmul.f32 %v1420, 1.442695
  %v1442 = vpow.pop %v1441
  %v1443 = vmul.f32 %v1421, 1.442695
  %v1444 = vpow.pop %v1443
  %v1445 = vmul.f32 %v1422, 1.442695
  %v1446 = vpow.pop %v1445
  %v1447 = vmul.f32 %v1423, 1.442695
  %v1448 = vpow.pop %v1447
  %v1449 = vmul.f32 %v1424, 1.442695
  %v1450 = vpow.pop %v1449
  %v1451 = vmul.f32 %v1425, 1.442695
  %v1452 = vpow.pop %v1451
  %v1453 = vmul.f32 %v1426, 1.442695
  %v1454 = vpow.pop %v1453
  %v1455 = vmul.f32 %v1427, 1.442695
  %v1456 = vpow.pop %v1455
  %v1457 = vmul.f32 %v1428, 1.442695
  %v1458 = vpow.pop %v1457
  %v1459 = vmul.f32 %v1429, 1.442695
  %v1460 = vpow.pop %v1459
  %v1461 = vmul.f32 %v1430, 1.442695
  %v1462 = vpow.pop %v1461
  %v1463 = vmul.f32 %v1432, %v760
  %v1464 = vmul.f32 %v1434, %v761
  %v1465 = vmul.f32 %v1436, %v762
  %v1466 = vmul.f32 %v1438, %v763
  %v1467 = vmul.f32 %v1440, %v764
  %v1468 = vmul.f32 %v1442, %v765
  %v1469 = vmul.f32 %v1444, %v766
  %v1470 = vmul.f32 %v1446, %v767
  %v1471 = vmul.f32 %v1448, %v768
  %v1472 = vmul.f32 %v1450, %v769
  %v1473 = vmul.f32 %v1452, %v770
  %v1474 = vmul.f32 %v1454, %v771
  %v1475 = vmul.f32 %v1456, %v772
  %v1476 = vmul.f32 %v1458, %v773
  %v1477 = vmul.f32 %v1460, %v774
  %v1478 = vmul.f32 %v1462, %v775
  %1479 = vmatprep.subr.mxu0 0.0
  %1480 = vmatpush1.msra.mxu0 %v234
  %1481 = vmatprep.subr.mxu0 0.0
  %1482 = vmatpush1.msra.mxu0 %v235
  %1483 = vmatprep.subr.mxu0 0.0
  %1484 = vmatpush1.msra.mxu0 %v236
  %1485 = vmatprep.subr.mxu0 0.0
  %1486 = vmatpush1.msra.mxu0 %v237
  %1487 = vmatprep.subr.mxu0 0.0
  %1488 = vmatpush1.msra.mxu0 %v238
  %1489 = vmatprep.subr.mxu0 0.0
  %1490 = vmatpush1.msra.mxu0 %v239
  %1491 = vmatprep.subr.mxu0 0.0
  %1492 = vmatpush1.msra.mxu0 %v240
  %1493 = vmatprep.subr.mxu0 0.0
  %1494 = vmatpush1.msra.mxu0 %v241
  %1495 = vmatprep.subr.mxu0 0.0
  %1496 = vmatpush1.msra.mxu0 %v242
  %1497 = vmatprep.subr.mxu0 0.0
  %1498 = vmatpush1.msra.mxu0 %v243
  %1499 = vmatprep.subr.mxu0 0.0
  %1500 = vmatpush1.msra.mxu0 %v244
  %1501 = vmatprep.subr.mxu0 0.0
  %1502 = vmatpush1.msra.mxu0 %v245
  %1503 = vmatprep.subr.mxu0 0.0
  %1504 = vmatpush1.msra.mxu0 %v246
  %1505 = vmatprep.subr.mxu0 0.0
  %1506 = vmatpush1.msra.mxu0 %v247
  %1507 = vmatprep.subr.mxu0 0.0
  %1508 = vmatpush1.msra.mxu0 %v248
  %1509 = vmatprep.subr.mxu0 0.0
  %1510 = vmatpush1.msra.mxu0 %v249
  %1511 = vmatprep.subr.mxu0 0.0
  %1512 = vmatpush1.msra.mxu0 0.0
  %1513 = vmatprep.subr.mxu0 0.0
  %1514 = vmatpush1.msra.mxu0 0.0
  %1515 = vmatprep.subr.mxu0 0.0
  %1516 = vmatpush1.msra.mxu0 0.0
  %1517 = vmatprep.subr.mxu0 0.0
  %1518 = vmatpush1.msra.mxu0 0.0
  %1519 = vmatprep.subr.mxu0 0.0
  %1520 = vmatpush1.msra.mxu0 0.0
  %1521 = vmatprep.subr.mxu0 0.0
  %1522 = vmatpush1.msra.mxu0 0.0
  %1523 = vmatprep.subr.mxu0 0.0
  %1524 = vmatpush1.msra.mxu0 0.0
  %1525 = vmatprep.subr.mxu0 0.0
  %1526 = vmatpush1.msra.mxu0 0.0
  %1527 = vmatprep.subr.mxu0 0.0
  %1528 = vmatpush1.msra.mxu0 0.0
  %1529 = vmatprep.subr.mxu0 0.0
  %1530 = vmatpush1.msra.mxu0 0.0
  %1531 = vmatprep.subr.mxu0 0.0
  %1532 = vmatpush1.msra.mxu0 0.0
  %1533 = vmatprep.subr.mxu0 0.0
  %1534 = vmatpush1.msra.mxu0 0.0
  %1535 = vmatprep.subr.mxu0 0.0
  %1536 = vmatpush1.msra.mxu0 0.0
  %1537 = vmatprep.subr.mxu0 0.0
  %1538 = vmatpush1.msra.mxu0 0.0
  %1539 = vmatprep.subr.mxu0 0.0
  %1540 = vmatpush1.msra.mxu0 0.0
  %1541 = vmatprep.subr.mxu0 0.0
  %1542 = vmatpush1.msra.mxu0 0.0
  %1543 = vmatprep.mubr.f32.mxu0 0.0
  %1544 = vmatmul.mubr.f32.gmra.mrb[0].mxu0 %v1463
  %v1545 = vpop.f32.mrb[0].mxu0
  %v1546 = vadd.f32 0.0, %v1545
  %v1547 = vpop.f32.mrb[0].mxu0
  %1548 = vmatprep.mubr.f32.mxu0 0.0
  %1549 = vmatmul.mubr.f32.gmra.mrb[0].mxu0 %v1464
  %v1550 = vpop.f32.mrb[0].mxu0
  %v1551 = vadd.f32 0.0, %v1550
  %v1552 = vpop.f32.mrb[0].mxu0
  %1553 = vmatprep.mubr.f32.mxu0 0.0
  %1554 = vmatmul.mubr.f32.gmra.mrb[0].mxu0 %v1465
  %v1555 = vpop.f32.mrb[0].mxu0
  %v1556 = vadd.f32 0.0, %v1555
  %v1557 = vpop.f32.mrb[0].mxu0
  %1558 = vmatprep.mubr.f32.mxu0 0.0
  %1559 = vmatmul.mubr.f32.gmra.mrb[0].mxu0 %v1466
  %v1560 = vpop.f32.mrb[0].mxu0
  %v1561 = vadd.f32 0.0, %v1560
  %v1562 = vpop.f32.mrb[0].mxu0
  %1563 = vmatprep.mubr.f32.mxu0 0.0
  %1564 = vmatmul.mubr.f32.gmra.mrb[0].mxu0 %v1467
  %v1565 = vpop.f32.mrb[0].mxu0
  %v1566 = vadd.f32 0.0, %v1565
  %v1567 = vpop.f32.mrb[0].mxu0
  %1568 = vmatprep.mubr.f32.mxu0 0.0
  %1569 = vmatmul.mubr.f32.gmra.mrb[0].mxu0 %v1468
  %v1570 = vpop.f32.mrb[0].mxu0
  %v1571 = vadd.f32 0.0, %v1570
  %v1572 = vpop.f32.mrb[0].mxu0
  %1573 = vmatprep.mubr.f32.mxu0 0.0
  %1574 = vmatmul.mubr.f32.gmra.mrb[0].mxu0 %v1469
  %v1575 = vpop.f32.mrb[0].mxu0
  %v1576 = vadd.f32 0.0, %v1575
  %v1577 = vpop.f32.mrb[0].mxu0
  %1578 = vmatprep.mubr.f32.mxu0 0.0
  %1579 = vmatmul.mubr.f32.gmra.mrb[0].mxu0 %v1470
  %v1580 = vpop.f32.mrb[0].mxu0
  %v1581 = vadd.f32 0.0, %v1580
  %v1582 = vpop.f32.mrb[0].mxu0
  %1583 = vmatprep.mubr.f32.mxu0 0.0
  %1584 = vmatmul.mubr.f32.gmra.mrb[0].mxu0 %v1471
  %v1585 = vpop.f32.mrb[0].mxu0
  %v1586 = vadd.f32 0.0, %v1585
  %v1587 = vpop.f32.mrb[0].mxu0
  %1588 = vmatprep.mubr.f32.mxu0 0.0
  %1589 = vmatmul.mubr.f32.gmra.mrb[0].mxu0 %v1472
  %v1590 = vpop.f32.mrb[0].mxu0
  %v1591 = vadd.f32 0.0, %v1590
  %v1592 = vpop.f32.mrb[0].mxu0
  %1593 = vmatprep.mubr.f32.mxu0 0.0
  %1594 = vmatmul.mubr.f32.gmra.mrb[0].mxu0 %v1473
  %v1595 = vpop.f32.mrb[0].mxu0
  %v1596 = vadd.f32 0.0, %v1595
  %v1597 = vpop.f32.mrb[0].mxu0
  %1598 = vmatprep.mubr.f32.mxu0 0.0
  %1599 = vmatmul.mubr.f32.gmra.mrb[0].mxu0 %v1474
  %v1600 = vpop.f32.mrb[0].mxu0
  %v1601 = vadd.f32 0.0, %v1600
  %v1602 = vpop.f32.mrb[0].mxu0
  %1603 = vmatprep.mubr.f32.mxu0 0.0
  %1604 = vmatmul.mubr.f32.gmra.mrb[0].mxu0 %v1475
  %v1605 = vpop.f32.mrb[0].mxu0
  %v1606 = vadd.f32 0.0, %v1605
  %v1607 = vpop.f32.mrb[0].mxu0
  %1608 = vmatprep.mubr.f32.mxu0 0.0
  %1609 = vmatmul.mubr.f32.gmra.mrb[0].mxu0 %v1476
  %v1610 = vpop.f32.mrb[0].mxu0
  %v1611 = vadd.f32 0.0, %v1610
  %v1612 = vpop.f32.mrb[0].mxu0
  %1613 = vmatprep.mubr.f32.mxu0 0.0
  %1614 = vmatmul.mubr.f32.gmra.mrb[0].mxu0 %v1477
  %v1615 = vpop.f32.mrb[0].mxu0
  %v1616 = vadd.f32 0.0, %v1615
  %v1617 = vpop.f32.mrb[0].mxu0
  %1618 = vmatprep.mubr.f32.mxu0 0.0
  %1619 = vmatmul.mubr.f32.gmra.mrb[0].mxu0 %v1478
  %v1620 = vpop.f32.mrb[0].mxu0
  %v1621 = vadd.f32 0.0, %v1620
  %v1622 = vpop.f32.mrb[0].mxu0
  %1623 = vdwg.mxu0
  %v1624 = vrcp.pop %v1546
  %v1625 = vmul.f32 1.0, %v1624
  %v1626 = vrcp.pop %v1551
  %v1627 = vmul.f32 1.0, %v1626
  %v1628 = vrcp.pop %v1556
  %v1629 = vmul.f32 1.0, %v1628
  %v1630 = vrcp.pop %v1561
  %v1631 = vmul.f32 1.0, %v1630
  %v1632 = vrcp.pop %v1566
  %v1633 = vmul.f32 1.0, %v1632
  %v1634 = vrcp.pop %v1571
  %v1635 = vmul.f32 1.0, %v1634
  %v1636 = vrcp.pop %v1576
  %v1637 = vmul.f32 1.0, %v1636
  %v1638 = vrcp.pop %v1581
  %v1639 = vmul.f32 1.0, %v1638
  %v1640 = vrcp.pop %v1586
  %v1641 = vmul.f32 1.0, %v1640
  %v1642 = vrcp.pop %v1591
  %v1643 = vmul.f32 1.0, %v1642
  %v1644 = vrcp.pop %v1596
  %v1645 = vmul.f32 1.0, %v1644
  %v1646 = vrcp.pop %v1601
  %v1647 = vmul.f32 1.0, %v1646
  %v1648 = vrcp.pop %v1606
  %v1649 = vmul.f32 1.0, %v1648
  %v1650 = vrcp.pop %v1611
  %v1651 = vmul.f32 1.0, %v1650
  %v1652 = vrcp.pop %v1616
  %v1653 = vmul.f32 1.0, %v1652
  %v1654 = vrcp.pop %v1621
  %v1655 = vmul.f32 1.0, %v1654
  %1657 = vset.pattern.permute.xlu0 127
  %1658 = vperm.xlu0 %1657, %v1625
  %v1659 = vpop.permute.xlu0 %1658
  %1662 = vset.pattern.permute.xlu0 127
  %1663 = vperm.xlu0 %1662, %v1627
  %v1664 = vpop.permute.xlu0 %1663
  %1667 = vset.pattern.permute.xlu0 127
  %1668 = vperm.xlu0 %1667, %v1629
  %v1669 = vpop.permute.xlu0 %1668
  %1672 = vset.pattern.permute.xlu0 127
  %1673 = vperm.xlu0 %1672, %v1631
  %v1674 = vpop.permute.xlu0 %1673
  %1677 = vset.pattern.permute.xlu0 127
  %1678 = vperm.xlu0 %1677, %v1633
  %v1679 = vpop.permute.xlu0 %1678
  %1682 = vset.pattern.permute.xlu0 127
  %1683 = vperm.xlu0 %1682, %v1635
  %v1684 = vpop.permute.xlu0 %1683
  %1687 = vset.pattern.permute.xlu0 127
  %1688 = vperm.xlu0 %1687, %v1637
  %v1689 = vpop.permute.xlu0 %1688
  %1692 = vset.pattern.permute.xlu0 127
  %1693 = vperm.xlu0 %1692, %v1639
  %v1694 = vpop.permute.xlu0 %1693
  %1697 = vset.pattern.permute.xlu0 127
  %1698 = vperm.xlu0 %1697, %v1641
  %v1699 = vpop.permute.xlu0 %1698
  %1702 = vset.pattern.permute.xlu0 127
  %1703 = vperm.xlu0 %1702, %v1643
  %v1704 = vpop.permute.xlu0 %1703
  %1707 = vset.pattern.permute.xlu0 127
  %1708 = vperm.xlu0 %1707, %v1645
  %v1709 = vpop.permute.xlu0 %1708
  %1712 = vset.pattern.permute.xlu0 127
  %1713 = vperm.xlu0 %1712, %v1647
  %v1714 = vpop.permute.xlu0 %1713
  %1717 = vset.pattern.permute.xlu0 127
  %1718 = vperm.xlu0 %1717, %v1649
  %v1719 = vpop.permute.xlu0 %1718
  %1722 = vset.pattern.permute.xlu0 127
  %1723 = vperm.xlu0 %1722, %v1651
  %v1724 = vpop.permute.xlu0 %1723
  %1727 = vset.pattern.permute.xlu0 127
  %1728 = vperm.xlu0 %1727, %v1653
  %v1729 = vpop.permute.xlu0 %1728
  %1732 = vset.pattern.permute.xlu0 127
  %1733 = vperm.xlu0 %1732, %v1655
  %v1734 = vpop.permute.xlu0 %1733
  %v1736 = vmul.f32 %v1546, %v1659
  %v1737 = vmul.f32 %v1551, %v1664
  %v1738 = vmul.f32 %v1556, %v1669
  %v1739 = vmul.f32 %v1561, %v1674
  %v1740 = vmul.f32 %v1566, %v1679
  %v1741 = vmul.f32 %v1571, %v1684
  %v1742 = vmul.f32 %v1576, %v1689
  %v1743 = vmul.f32 %v1581, %v1694
  %v1744 = vmul.f32 %v1586, %v1699
  %v1745 = vmul.f32 %v1591, %v1704
  %v1746 = vmul.f32 %v1596, %v1709
  %v1747 = vmul.f32 %v1601, %v1714
  %v1748 = vmul.f32 %v1606, %v1719
  %v1749 = vmul.f32 %v1611, %v1724
  %v1750 = vmul.f32 %v1616, %v1729
  %v1751 = vmul.f32 %v1621, %v1734
  %v1752 = vadd.f32 %v1736, %v1069
  %v1753 = vadd.f32 %v1737, %v1069
  %v1754 = vadd.f32 %v1738, %v1069
  %v1755 = vadd.f32 %v1739, %v1069
  %v1756 = vadd.f32 %v1740, %v1069
  %v1757 = vadd.f32 %v1741, %v1069
  %v1758 = vadd.f32 %v1742, %v1069
  %v1759 = vadd.f32 %v1743, %v1069
  %v1760 = vadd.f32 %v1744, %v1069
  %v1761 = vadd.f32 %v1745, %v1069
  %v1762 = vadd.f32 %v1746, %v1069
  %v1763 = vadd.f32 %v1747, %v1069
  %v1764 = vadd.f32 %v1748, %v1069
  %v1765 = vadd.f32 %v1749, %v1069
  %v1766 = vadd.f32 %v1750, %v1069
  %v1767 = vadd.f32 %v1751, %v1069
  %vm1768 = vcmp.gt.f32.partialorder %v1752, 0.0
  %vm1769 = vcmp.gt.f32.partialorder %v1753, 0.0
  %vm1770 = vcmp.gt.f32.partialorder %v1754, 0.0
  %vm1771 = vcmp.gt.f32.partialorder %v1755, 0.0
  %vm1772 = vcmp.gt.f32.partialorder %v1756, 0.0
  %vm1773 = vcmp.gt.f32.partialorder %v1757, 0.0
  %vm1774 = vcmp.gt.f32.partialorder %v1758, 0.0
  %vm1775 = vcmp.gt.f32.partialorder %v1759, 0.0
  %vm1776 = vcmp.gt.f32.partialorder %v1760, 0.0
  %vm1777 = vcmp.gt.f32.partialorder %v1761, 0.0
  %vm1778 = vcmp.gt.f32.partialorder %v1762, 0.0
  %vm1779 = vcmp.gt.f32.partialorder %v1763, 0.0
  %vm1780 = vcmp.gt.f32.partialorder %v1764, 0.0
  %vm1781 = vcmp.gt.f32.partialorder %v1765, 0.0
  %vm1782 = vcmp.gt.f32.partialorder %v1766, 0.0
  %vm1783 = vcmp.gt.f32.partialorder %v1767, 0.0
  %v1784 = vmul.f32 %v1752, 1.442695
  %v1785 = vpow.pop %v1784
  %v1786 = vmul.f32 %v1753, 1.442695
  %v1787 = vpow.pop %v1786
  %v1788 = vmul.f32 %v1754, 1.442695
  %v1789 = vpow.pop %v1788
  %v1790 = vmul.f32 %v1755, 1.442695
  %v1791 = vpow.pop %v1790
  %v1792 = vmul.f32 %v1756, 1.442695
  %v1793 = vpow.pop %v1792
  %v1794 = vmul.f32 %v1757, 1.442695
  %v1795 = vpow.pop %v1794
  %v1796 = vmul.f32 %v1758, 1.442695
  %v1797 = vpow.pop %v1796
  %v1798 = vmul.f32 %v1759, 1.442695
  %v1799 = vpow.pop %v1798
  %v1800 = vmul.f32 %v1760, 1.442695
  %v1801 = vpow.pop %v1800
  %v1802 = vmul.f32 %v1761, 1.442695
  %v1803 = vpow.pop %v1802
  %v1804 = vmul.f32 %v1762, 1.442695
  %v1805 = vpow.pop %v1804
  %v1806 = vmul.f32 %v1763, 1.442695
  %v1807 = vpow.pop %v1806
  %v1808 = vmul.f32 %v1764, 1.442695
  %v1809 = vpow.pop %v1808
  %v1810 = vmul.f32 %v1765, 1.442695
  %v1811 = vpow.pop %v1810
  %v1812 = vmul.f32 %v1766, 1.442695
  %v1813 = vpow.pop %v1812
  %v1814 = vmul.f32 %v1767, 1.442695
  %v1815 = vpow.pop %v1814
  %v1816 = vsub.f32 %v1785, 1.0
  %v1817 = vsub.f32 %v1787, 1.0
  %v1818 = vsub.f32 %v1789, 1.0
  %v1819 = vsub.f32 %v1791, 1.0
  %v1820 = vsub.f32 %v1793, 1.0
  %v1821 = vsub.f32 %v1795, 1.0
  %v1822 = vsub.f32 %v1797, 1.0
  %v1823 = vsub.f32 %v1799, 1.0
  %v1824 = vsub.f32 %v1801, 1.0
  %v1825 = vsub.f32 %v1803, 1.0
  %v1826 = vsub.f32 %v1805, 1.0
  %v1827 = vsub.f32 %v1807, 1.0
  %v1828 = vsub.f32 %v1809, 1.0
  %v1829 = vsub.f32 %v1811, 1.0
  %v1830 = vsub.f32 %v1813, 1.0
  %v1831 = vsub.f32 %v1815, 1.0
  %v1832 = vsel %vm1768, %v1752, %v1816
  %v1833 = vsel %vm1769, %v1753, %v1817
  %v1834 = vsel %vm1770, %v1754, %v1818
  %v1835 = vsel %vm1771, %v1755, %v1819
  %v1836 = vsel %vm1772, %v1756, %v1820
  %v1837 = vsel %vm1773, %v1757, %v1821
  %v1838 = vsel %vm1774, %v1758, %v1822
  %v1839 = vsel %vm1775, %v1759, %v1823
  %v1840 = vsel %vm1776, %v1760, %v1824
  %v1841 = vsel %vm1777, %v1761, %v1825
  %v1842 = vsel %vm1778, %v1762, %v1826
  %v1843 = vsel %vm1779, %v1763, %v1827
  %v1844 = vsel %vm1780, %v1764, %v1828
  %v1845 = vsel %vm1781, %v1765, %v1829
  %v1846 = vsel %vm1782, %v1766, %v1830
  %v1847 = vsel %vm1783, %v1767, %v1831
  %vm1848 = vcmask 130048
  %v1849 = vsel %vm1848, %v1151, %v1832
  %v1850 = vsel %vm1848, %v1152, %v1833
  %v1851 = vsel %vm1848, %v1153, %v1834
  %v1852 = vsel %vm1848, %v1154, %v1835
  %v1853 = vsel %vm1848, %v1155, %v1836
  %v1854 = vsel %vm1848, %v1156, %v1837
  %v1855 = vsel %vm1848, %v1157, %v1838
  %v1856 = vsel %vm1848, %v1158, %v1839
  %v1857 = vsel %vm1848, %v1159, %v1840
  %v1858 = vsel %vm1848, %v1160, %v1841
  %v1859 = vsel %vm1848, %v1161, %v1842
  %v1860 = vsel %vm1848, %v1162, %v1843
  %v1861 = vsel %vm1848, %v1163, %v1844
  %v1862 = vsel %vm1848, %v1164, %v1845
  %v1863 = vsel %vm1848, %v1165, %v1846
  %v1864 = vsel %vm1848, %v1166, %v1847
  %vm1865 = vcmask 261120
  %v1866 = vsel %vm1865, %v1849, 0.0
  %v1867 = vsel %vm1865, %v1850, 0.0
  %v1868 = vsel %vm1865, %v1851, 0.0
  %v1869 = vsel %vm1865, %v1852, 0.0
  %v1870 = vsel %vm1865, %v1853, 0.0
  %v1871 = vsel %vm1865, %v1854, 0.0
  %v1872 = vsel %vm1865, %v1855, 0.0
  %v1873 = vsel %vm1865, %v1856, 0.0
  %v1874 = vsel %vm1865, %v1857, 0.0
  %v1875 = vsel %vm1865, %v1858, 0.0
  %v1876 = vsel %vm1865, %v1859, 0.0
  %v1877 = vsel %vm1865, %v1860, 0.0
  %v1878 = vsel %vm1865, %v1861, 0.0
  %v1879 = vsel %vm1865, %v1862, 0.0
  %v1880 = vsel %vm1865, %v1863, 0.0
  %v1881 = vsel %vm1865, %v1864, 0.0
  %v1882 = vld [vmem:[%s5] sm:$0xff]
  %v1883 = vld [vmem:[%s5 + $0x8] sm:$0xff]
  %v1884 = vld [vmem:[%s5 + $0x10] sm:$0xff]
  %v1885 = vld [vmem:[%s5 + $0x18] sm:$0xff]
  %v1886 = vld [vmem:[%s5 + $0x20] sm:$0xff]
  %v1887 = vld [vmem:[%s5 + $0x28] sm:$0xff]
  %v1888 = vld [vmem:[%s5 + $0x30] sm:$0xff]
  %v1889 = vld [vmem:[%s5 + $0x38] sm:$0xff]
  %v1890 = vld [vmem:[%s5 + $0x40] sm:$0xff]
  %v1891 = vld [vmem:[%s5 + $0x48] sm:$0xff]
  %v1892 = vld [vmem:[%s5 + $0x50] sm:$0xff]
  %v1893 = vld [vmem:[%s5 + $0x58] sm:$0xff]
  %v1894 = vld [vmem:[%s5 + $0x60] sm:$0xff]
  %v1895 = vld [vmem:[%s5 + $0x68] sm:$0xff]
  %v1896 = vld [vmem:[%s5 + $0x70] sm:$0xff]
  %v1897 = vld [vmem:[%s5 + $0x78] sm:$0xff]
  %1898 = vmatprep.subr.mxu0 0.0
  %1899 = vmatpush1.msra.mxu0 %v1882
  %1900 = vmatprep.subr.mxu0 0.0
  %1901 = vmatpush1.msra.mxu0 %v1883
  %1902 = vmatprep.subr.mxu0 0.0
  %1903 = vmatpush1.msra.mxu0 %v1884
  %1904 = vmatprep.subr.mxu0 0.0
  %1905 = vmatpush1.msra.mxu0 %v1885
  %1906 = vmatprep.subr.mxu0 0.0
  %1907 = vmatpush1.msra.mxu0 %v1886
  %1908 = vmatprep.subr.mxu0 0.0
  %1909 = vmatpush1.msra.mxu0 %v1887
  %1910 = vmatprep.subr.mxu0 0.0
  %1911 = vmatpush1.msra.mxu0 %v1888
  %1912 = vmatprep.subr.mxu0 0.0
  %1913 = vmatpush1.msra.mxu0 %v1889
  %1914 = vmatprep.subr.mxu0 0.0
  %1915 = vmatpush1.msra.mxu0 %v1890
  %1916 = vmatprep.subr.mxu0 0.0
  %1917 = vmatpush1.msra.mxu0 %v1891
  %1918 = vmatprep.subr.mxu0 0.0
  %1919 = vmatpush1.msra.mxu0 %v1892
  %1920 = vmatprep.subr.mxu0 0.0
  %1921 = vmatpush1.msra.mxu0 %v1893
  %1922 = vmatprep.subr.mxu0 0.0
  %1923 = vmatpush1.msra.mxu0 %v1894
  %1924 = vmatprep.subr.mxu0 0.0
  %1925 = vmatpush1.msra.mxu0 %v1895
  %1926 = vmatprep.subr.mxu0 0.0
  %1927 = vmatpush1.msra.mxu0 %v1896
  %1928 = vmatprep.subr.mxu0 0.0
  %1929 = vmatpush1.msra.mxu0 %v1897
  %1930 = vmatprep.subr.mxu0 0.0
  %1931 = vmatpush1.msra.mxu0 0.0
  %1932 = vmatprep.subr.mxu0 0.0
  %1933 = vmatpush1.msra.mxu0 0.0
  %1934 = vmatprep.subr.mxu0 0.0
  %1935 = vmatpush1.msra.mxu0 0.0
  %1936 = vmatprep.subr.mxu0 0.0
  %1937 = vmatpush1.msra.mxu0 0.0
  %1938 = vmatprep.subr.mxu0 0.0
  %1939 = vmatpush1.msra.mxu0 0.0
  %1940 = vmatprep.subr.mxu0 0.0
  %1941 = vmatpush1.msra.mxu0 0.0
  %1942 = vmatprep.subr.mxu0 0.0
  %1943 = vmatpush1.msra.mxu0 0.0
  %1944 = vmatprep.subr.mxu0 0.0
  %1945 = vmatpush1.msra.mxu0 0.0
  %1946 = vmatprep.subr.mxu0 0.0
  %1947 = vmatpush1.msra.mxu0 0.0
  %1948 = vmatprep.subr.mxu0 0.0
  %1949 = vmatpush1.msra.mxu0 0.0
  %1950 = vmatprep.subr.mxu0 0.0
  %1951 = vmatpush1.msra.mxu0 0.0
  %1952 = vmatprep.subr.mxu0 0.0
  %1953 = vmatpush1.msra.mxu0 0.0
  %1954 = vmatprep.subr.mxu0 0.0
  %1955 = vmatpush1.msra.mxu0 0.0
  %1956 = vmatprep.subr.mxu0 0.0
  %1957 = vmatpush1.msra.mxu0 0.0
  %1958 = vmatprep.subr.mxu0 0.0
  %1959 = vmatpush1.msra.mxu0 0.0
  %1960 = vmatprep.subr.mxu0 0.0
  %1961 = vmatpush1.msra.mxu0 0.0
  %1962 = vmatprep.mubr.f32.mxu0 0.0
  %1963 = vmatmul.mubr.f32.gmra.mrb[0].mxu0 %v1866
  %v1964 = vpop.f32.mrb[0].mxu0
  %v1965 = vadd.f32 0.0, %v1964
  %v1966 = vpop.f32.mrb[0].mxu0
  %1967 = vmatprep.mubr.f32.mxu0 0.0
  %1968 = vmatmul.mubr.f32.gmra.mrb[0].mxu0 %v1867
  %v1969 = vpop.f32.mrb[0].mxu0
  %v1970 = vadd.f32 0.0, %v1969
  %v1971 = vpop.f32.mrb[0].mxu0
  %1972 = vmatprep.mubr.f32.mxu0 0.0
  %1973 = vmatmul.mubr.f32.gmra.mrb[0].mxu0 %v1868
  %v1974 = vpop.f32.mrb[0].mxu0
  %v1975 = vadd.f32 0.0, %v1974
  %v1976 = vpop.f32.mrb[0].mxu0
  %1977 = vmatprep.mubr.f32.mxu0 0.0
  %1978 = vmatmul.mubr.f32.gmra.mrb[0].mxu0 %v1869
  %v1979 = vpop.f32.mrb[0].mxu0
  %v1980 = vadd.f32 0.0, %v1979
  %v1981 = vpop.f32.mrb[0].mxu0
  %1982 = vmatprep.mubr.f32.mxu0 0.0
  %1983 = vmatmul.mubr.f32.gmra.mrb[0].mxu0 %v1870
  %v1984 = vpop.f32.mrb[0].mxu0
  %v1985 = vadd.f32 0.0, %v1984
  %v1986 = vpop.f32.mrb[0].mxu0
  %1987 = vmatprep.mubr.f32.mxu0 0.0
  %1988 = vmatmul.mubr.f32.gmra.mrb[0].mxu0 %v1871
  %v1989 = vpop.f32.mrb[0].mxu0
  %v1990 = vadd.f32 0.0, %v1989
  %v1991 = vpop.f32.mrb[0].mxu0
  %1992 = vmatprep.mubr.f32.mxu0 0.0
  %1993 = vmatmul.mubr.f32.gmra.mrb[0].mxu0 %v1872
  %v1994 = vpop.f32.mrb[0].mxu0
  %v1995 = vadd.f32 0.0, %v1994
  %v1996 = vpop.f32.mrb[0].mxu0
  %1997 = vmatprep.mubr.f32.mxu0 0.0
  %1998 = vmatmul.mubr.f32.gmra.mrb[0].mxu0 %v1873
  %v1999 = vpop.f32.mrb[0].mxu0
  %v2000 = vadd.f32 0.0, %v1999
  %v2001 = vpop.f32.mrb[0].mxu0
  %2002 = vmatprep.mubr.f32.mxu0 0.0
  %2003 = vmatmul.mubr.f32.gmra.mrb[0].mxu0 %v1874
  %v2004 = vpop.f32.mrb[0].mxu0
  %v2005 = vadd.f32 0.0, %v2004
  %v2006 = vpop.f32.mrb[0].mxu0
  %2007 = vmatprep.mubr.f32.mxu0 0.0
  %2008 = vmatmul.mubr.f32.gmra.mrb[0].mxu0 %v1875
  %v2009 = vpop.f32.mrb[0].mxu0
  %v2010 = vadd.f32 0.0, %v2009
  %v2011 = vpop.f32.mrb[0].mxu0
  %2012 = vmatprep.mubr.f32.mxu0 0.0
  %2013 = vmatmul.mubr.f32.gmra.mrb[0].mxu0 %v1876
  %v2014 = vpop.f32.mrb[0].mxu0
  %v2015 = vadd.f32 0.0, %v2014
  %v2016 = vpop.f32.mrb[0].mxu0
  %2017 = vmatprep.mubr.f32.mxu0 0.0
  %2018 = vmatmul.mubr.f32.gmra.mrb[0].mxu0 %v1877
  %v2019 = vpop.f32.mrb[0].mxu0
  %v2020 = vadd.f32 0.0, %v2019
  %v2021 = vpop.f32.mrb[0].mxu0
  %2022 = vmatprep.mubr.f32.mxu0 0.0
  %2023 = vmatmul.mubr.f32.gmra.mrb[0].mxu0 %v1878
  %v2024 = vpop.f32.mrb[0].mxu0
  %v2025 = vadd.f32 0.0, %v2024
  %v2026 = vpop.f32.mrb[0].mxu0
  %2027 = vmatprep.mubr.f32.mxu0 0.0
  %2028 = vmatmul.mubr.f32.gmra.mrb[0].mxu0 %v1879
  %v2029 = vpop.f32.mrb[0].mxu0
  %v2030 = vadd.f32 0.0, %v2029
  %v2031 = vpop.f32.mrb[0].mxu0
  %2032 = vmatprep.mubr.f32.mxu0 0.0
  %2033 = vmatmul.mubr.f32.gmra.mrb[0].mxu0 %v1880
  %v2034 = vpop.f32.mrb[0].mxu0
  %v2035 = vadd.f32 0.0, %v2034
  %v2036 = vpop.f32.mrb[0].mxu0
  %2037 = vmatprep.mubr.f32.mxu0 0.0
  %2038 = vmatmul.mubr.f32.gmra.mrb[0].mxu0 %v1881
  %v2039 = vpop.f32.mrb[0].mxu0
  %v2040 = vadd.f32 0.0, %v2039
  %v2041 = vpop.f32.mrb[0].mxu0
  %2042 = vdwg.mxu0
  %v2043 = vsel %vm233, 1.0, %v1965
  %v2044 = vsel %vm233, 1.0, %v1970
  %v2045 = vsel %vm233, 1.0, %v1975
  %v2046 = vsel %vm233, 1.0, %v1980
  %v2047 = vsel %vm233, 1.0, %v1985
  %v2048 = vsel %vm233, 1.0, %v1990
  %v2049 = vsel %vm233, 1.0, %v1995
  %v2050 = vsel %vm233, 1.0, %v2000
  %v2051 = vsel %vm233, 1.0, %v2005
  %v2052 = vsel %vm233, 1.0, %v2010
  %v2053 = vsel %vm233, 1.0, %v2015
  %v2054 = vsel %vm233, 1.0, %v2020
  %v2055 = vsel %vm233, 1.0, %v2025
  %v2056 = vsel %vm233, 1.0, %v2030
  %v2057 = vsel %vm233, 1.0, %v2035
  %v2058 = vsel %vm233, 1.0, %v2040
  %v2059 = vld [vmem:[%s6] sm:$0xff]
  %v2060 = vld [vmem:[%s6 + $0x8] sm:$0xff]
  %v2061 = vld [vmem:[%s6 + $0x10] sm:$0xff]
  %v2062 = vld [vmem:[%s6 + $0x18] sm:$0xff]
  %v2063 = vld [vmem:[%s6 + $0x20] sm:$0xff]
  %v2064 = vld [vmem:[%s6 + $0x28] sm:$0xff]
  %v2065 = vld [vmem:[%s6 + $0x30] sm:$0xff]
  %v2066 = vld [vmem:[%s6 + $0x38] sm:$0xff]
  %v2067 = vld [vmem:[%s6 + $0x40] sm:$0xff]
  %v2068 = vld [vmem:[%s6 + $0x48] sm:$0xff]
  %v2069 = vld [vmem:[%s6 + $0x50] sm:$0xff]
  %v2070 = vld [vmem:[%s6 + $0x58] sm:$0xff]
  %v2071 = vld [vmem:[%s6 + $0x60] sm:$0xff]
  %v2072 = vld [vmem:[%s6 + $0x68] sm:$0xff]
  %v2073 = vld [vmem:[%s6 + $0x70] sm:$0xff]
  %v2074 = vld [vmem:[%s6 + $0x78] sm:$0xff]
  %2075 = vmatprep.subr.mxu0 0.0
  %2076 = vmatpush1.msra.mxu0 %v2059
  %2077 = vmatprep.subr.mxu0 0.0
  %2078 = vmatpush1.msra.mxu0 %v2060
  %2079 = vmatprep.subr.mxu0 0.0
  %2080 = vmatpush1.msra.mxu0 %v2061
  %2081 = vmatprep.subr.mxu0 0.0
  %2082 = vmatpush1.msra.mxu0 %v2062
  %2083 = vmatprep.subr.mxu0 0.0
  %2084 = vmatpush1.msra.mxu0 %v2063
  %2085 = vmatprep.subr.mxu0 0.0
  %2086 = vmatpush1.msra.mxu0 %v2064
  %2087 = vmatprep.subr.mxu0 0.0
  %2088 = vmatpush1.msra.mxu0 %v2065
  %2089 = vmatprep.subr.mxu0 0.0
  %2090 = vmatpush1.msra.mxu0 %v2066
  %2091 = vmatprep.subr.mxu0 0.0
  %2092 = vmatpush1.msra.mxu0 %v2067
  %2093 = vmatprep.subr.mxu0 0.0
  %2094 = vmatpush1.msra.mxu0 %v2068
  %2095 = vmatprep.subr.mxu0 0.0
  %2096 = vmatpush1.msra.mxu0 %v2069
  %2097 = vmatprep.subr.mxu0 0.0
  %2098 = vmatpush1.msra.mxu0 %v2070
  %2099 = vmatprep.subr.mxu0 0.0
  %2100 = vmatpush1.msra.mxu0 %v2071
  %2101 = vmatprep.subr.mxu0 0.0
  %2102 = vmatpush1.msra.mxu0 %v2072
  %2103 = vmatprep.subr.mxu0 0.0
  %2104 = vmatpush1.msra.mxu0 %v2073
  %2105 = vmatprep.subr.mxu0 0.0
  %2106 = vmatpush1.msra.mxu0 %v2074
  %2107 = vmatprep.subr.mxu0 0.0
  %2108 = vmatpush1.msra.mxu0 0.0
  %2109 = vmatprep.subr.mxu0 0.0
  %2110 = vmatpush1.msra.mxu0 0.0
  %2111 = vmatprep.subr.mxu0 0.0
  %2112 = vmatpush1.msra.mxu0 0.0
  %2113 = vmatprep.subr.mxu0 0.0
  %2114 = vmatpush1.msra.mxu0 0.0
  %2115 = vmatprep.subr.mxu0 0.0
  %2116 = vmatpush1.msra.mxu0 0.0
  %2117 = vmatprep.subr.mxu0 0.0
  %2118 = vmatpush1.msra.mxu0 0.0
  %2119 = vmatprep.subr.mxu0 0.0
  %2120 = vmatpush1.msra.mxu0 0.0
  %2121 = vmatprep.subr.mxu0 0.0
  %2122 = vmatpush1.msra.mxu0 0.0
  %2123 = vmatprep.subr.mxu0 0.0
  %2124 = vmatpush1.msra.mxu0 0.0
  %2125 = vmatprep.subr.mxu0 0.0
  %2126 = vmatpush1.msra.mxu0 0.0
  %2127 = vmatprep.subr.mxu0 0.0
  %2128 = vmatpush1.msra.mxu0 0.0
  %2129 = vmatprep.subr.mxu0 0.0
  %2130 = vmatpush1.msra.mxu0 0.0
  %2131 = vmatprep.subr.mxu0 0.0
  %2132 = vmatpush1.msra.mxu0 0.0
  %2133 = vmatprep.subr.mxu0 0.0
  %2134 = vmatpush1.msra.mxu0 0.0
  %2135 = vmatprep.subr.mxu0 0.0
  %2136 = vmatpush1.msra.mxu0 0.0
  %2137 = vmatprep.subr.mxu0 0.0
  %2138 = vmatpush1.msra.mxu0 0.0
  %2139 = vmatprep.mubr.f32.mxu0 0.0
  %2140 = vmatmul.mubr.f32.gmra.mrb[0].mxu0 %v1965
  %v2141 = vpop.f32.mrb[0].mxu0
  %v2142 = vadd.f32 0.0, %v2141
  %v2143 = vpop.f32.mrb[0].mxu0
  %2144 = vmatprep.mubr.f32.mxu0 0.0
  %2145 = vmatmul.mubr.f32.gmra.mrb[0].mxu0 %v1970
  %v2146 = vpop.f32.mrb[0].mxu0
  %v2147 = vadd.f32 0.0, %v2146
  %v2148 = vpop.f32.mrb[0].mxu0
  %2149 = vmatprep.mubr.f32.mxu0 0.0
  %2150 = vmatmul.mubr.f32.gmra.mrb[0].mxu0 %v1975
  %v2151 = vpop.f32.mrb[0].mxu0
  %v2152 = vadd.f32 0.0, %v2151
  %v2153 = vpop.f32.mrb[0].mxu0
  %2154 = vmatprep.mubr.f32.mxu0 0.0
  %2155 = vmatmul.mubr.f32.gmra.mrb[0].mxu0 %v1980
  %v2156 = vpop.f32.mrb[0].mxu0
  %v2157 = vadd.f32 0.0, %v2156
  %v2158 = vpop.f32.mrb[0].mxu0
  %2159 = vmatprep.mubr.f32.mxu0 0.0
  %2160 = vmatmul.mubr.f32.gmra.mrb[0].mxu0 %v1985
  %v2161 = vpop.f32.mrb[0].mxu0
  %v2162 = vadd.f32 0.0, %v2161
  %v2163 = vpop.f32.mrb[0].mxu0
  %2164 = vmatprep.mubr.f32.mxu0 0.0
  %2165 = vmatmul.mubr.f32.gmra.mrb[0].mxu0 %v1990
  %v2166 = vpop.f32.mrb[0].mxu0
  %v2167 = vadd.f32 0.0, %v2166
  %v2168 = vpop.f32.mrb[0].mxu0
  %2169 = vmatprep.mubr.f32.mxu0 0.0
  %2170 = vmatmul.mubr.f32.gmra.mrb[0].mxu0 %v1995
  %v2171 = vpop.f32.mrb[0].mxu0
  %v2172 = vadd.f32 0.0, %v2171
  %v2173 = vpop.f32.mrb[0].mxu0
  %2174 = vmatprep.mubr.f32.mxu0 0.0
  %2175 = vmatmul.mubr.f32.gmra.mrb[0].mxu0 %v2000
  %v2176 = vpop.f32.mrb[0].mxu0
  %v2177 = vadd.f32 0.0, %v2176
  %v2178 = vpop.f32.mrb[0].mxu0
  %2179 = vmatprep.mubr.f32.mxu0 0.0
  %2180 = vmatmul.mubr.f32.gmra.mrb[0].mxu0 %v2005
  %v2181 = vpop.f32.mrb[0].mxu0
  %v2182 = vadd.f32 0.0, %v2181
  %v2183 = vpop.f32.mrb[0].mxu0
  %2184 = vmatprep.mubr.f32.mxu0 0.0
  %2185 = vmatmul.mubr.f32.gmra.mrb[0].mxu0 %v2010
  %v2186 = vpop.f32.mrb[0].mxu0
  %v2187 = vadd.f32 0.0, %v2186
  %v2188 = vpop.f32.mrb[0].mxu0
  %2189 = vmatprep.mubr.f32.mxu0 0.0
  %2190 = vmatmul.mubr.f32.gmra.mrb[0].mxu0 %v2015
  %v2191 = vpop.f32.mrb[0].mxu0
  %v2192 = vadd.f32 0.0, %v2191
  %v2193 = vpop.f32.mrb[0].mxu0
  %2194 = vmatprep.mubr.f32.mxu0 0.0
  %2195 = vmatmul.mubr.f32.gmra.mrb[0].mxu0 %v2020
  %v2196 = vpop.f32.mrb[0].mxu0
  %v2197 = vadd.f32 0.0, %v2196
  %v2198 = vpop.f32.mrb[0].mxu0
  %2199 = vmatprep.mubr.f32.mxu0 0.0
  %2200 = vmatmul.mubr.f32.gmra.mrb[0].mxu0 %v2025
  %v2201 = vpop.f32.mrb[0].mxu0
  %v2202 = vadd.f32 0.0, %v2201
  %v2203 = vpop.f32.mrb[0].mxu0
  %2204 = vmatprep.mubr.f32.mxu0 0.0
  %2205 = vmatmul.mubr.f32.gmra.mrb[0].mxu0 %v2030
  %v2206 = vpop.f32.mrb[0].mxu0
  %v2207 = vadd.f32 0.0, %v2206
  %v2208 = vpop.f32.mrb[0].mxu0
  %2209 = vmatprep.mubr.f32.mxu0 0.0
  %2210 = vmatmul.mubr.f32.gmra.mrb[0].mxu0 %v2035
  %v2211 = vpop.f32.mrb[0].mxu0
  %v2212 = vadd.f32 0.0, %v2211
  %v2213 = vpop.f32.mrb[0].mxu0
  %2214 = vmatprep.mubr.f32.mxu0 0.0
  %2215 = vmatmul.mubr.f32.gmra.mrb[0].mxu0 %v2040
  %v2216 = vpop.f32.mrb[0].mxu0
  %v2217 = vadd.f32 0.0, %v2216
  %v2218 = vpop.f32.mrb[0].mxu0
  %2219 = vdwg.mxu0
  %2220 = vxpose.xlu0.b32.start [1/16] %v2142, 128
  %2221 = vxpose.xlu0.b32.cont [2/16] %v2147, 128
  %2222 = vxpose.xlu0.b32.cont [3/16] %v2152, 128
  %2223 = vxpose.xlu0.b32.cont [4/16] %v2157, 128
  %2224 = vxpose.xlu0.b32.cont [5/16] %v2162, 128
  %2225 = vxpose.xlu0.b32.cont [6/16] %v2167, 128
  %2226 = vxpose.xlu0.b32.cont [7/16] %v2172, 128
  %2227 = vxpose.xlu0.b32.cont [8/16] %v2177, 128
  %2228 = vxpose.xlu0.b32.cont [9/16] %v2182, 128
  %2229 = vxpose.xlu0.b32.cont [10/16] %v2187, 128
  %2230 = vxpose.xlu0.b32.cont [11/16] %v2192, 128
  %2231 = vxpose.xlu0.b32.cont [12/16] %v2197, 128
  %2232 = vxpose.xlu0.b32.cont [13/16] %v2202, 128
  %2233 = vxpose.xlu0.b32.cont [14/16] %v2207, 128
  %2234 = vxpose.xlu0.b32.cont [15/16] %v2212, 128
  %2235 = vxpose.xlu0.b32.end [16/16] %v2217, 128
  %v2236 = vpop.trf.xlu0
  %v2237 = vpop.trf.xlu0
  %v2238 = vpop.trf.xlu0
  %v2239 = vpop.trf.xlu0
  %v2240 = vpop.trf.xlu0
  %v2241 = vpop.trf.xlu0
  %v2242 = vpop.trf.xlu0
  %v2243 = vpop.trf.xlu0
  %v2244 = vpop.trf.xlu0
  %v2245 = vpop.trf.xlu0
  %v2246 = vpop.trf.xlu0
  %v2247 = vpop.trf.xlu0
  %v2248 = vpop.trf.xlu0
  %v2249 = vpop.trf.xlu0
  %v2250 = vpop.trf.xlu0
  %v2251 = vpop.trf.xlu0
  %v2252 = vsel %vm443, %v2236, -inf
  %2253 = vmax.xlane.f32.xlu0 %v2252
  %v2254 = vpop.xlane.xlu0 %2253
  %v2255 = vld [vmem:[%s7] sm:$0x1]
  %v2256 = vlaneseq
  %v2257 = vshrl.u32 %v2256, 7
  %v2258 = vsub.s32 2, %v2257
  %v2259 = vrot.slane %v2254, %v2258
  %v2260 = vadd.f32 %v2142, %v2259
  %v2261 = vadd.f32 %v2147, %v2259
  %v2262 = vadd.f32 %v2152, %v2259
  %v2263 = vadd.f32 %v2157, %v2259
  %v2264 = vadd.f32 %v2162, %v2259
  %v2265 = vadd.f32 %v2167, %v2259
  %v2266 = vadd.f32 %v2172, %v2259
  %v2267 = vadd.f32 %v2177, %v2259
  %v2268 = vadd.f32 %v2182, %v2259
  %v2269 = vadd.f32 %v2187, %v2259
  %v2270 = vadd.f32 %v2192, %v2259
  %v2271 = vadd.f32 %v2197, %v2259
  %v2272 = vadd.f32 %v2202, %v2259
  %v2273 = vadd.f32 %v2207, %v2259
  %v2274 = vadd.f32 %v2212, %v2259
  %v2275 = vadd.f32 %v2217, %v2259
  %v2276 = vmul.f32 %v2260, 0.2
  %v2277 = vmul.f32 %v2261, 0.2
  %v2278 = vmul.f32 %v2262, 0.2
  %v2279 = vmul.f32 %v2263, 0.2
  %v2280 = vmul.f32 %v2264, 0.2
  %v2281 = vmul.f32 %v2265, 0.2
  %v2282 = vmul.f32 %v2266, 0.2
  %v2283 = vmul.f32 %v2267, 0.2
  %v2284 = vmul.f32 %v2268, 0.2
  %v2285 = vmul.f32 %v2269, 0.2
  %v2286 = vmul.f32 %v2270, 0.2
  %v2287 = vmul.f32 %v2271, 0.2
  %v2288 = vmul.f32 %v2272, 0.2
  %v2289 = vmul.f32 %v2273, 0.2
  %v2290 = vmul.f32 %v2274, 0.2
  %v2291 = vmul.f32 %v2275, 0.2
  %v2292 = vmax.f32 %v2260, %v2276
  %v2293 = vmax.f32 %v2261, %v2277
  %v2294 = vmax.f32 %v2262, %v2278
  %v2295 = vmax.f32 %v2263, %v2279
  %v2296 = vmax.f32 %v2264, %v2280
  %v2297 = vmax.f32 %v2265, %v2281
  %v2298 = vmax.f32 %v2266, %v2282
  %v2299 = vmax.f32 %v2267, %v2283
  %v2300 = vmax.f32 %v2268, %v2284
  %v2301 = vmax.f32 %v2269, %v2285
  %v2302 = vmax.f32 %v2270, %v2286
  %v2303 = vmax.f32 %v2271, %v2287
  %v2304 = vmax.f32 %v2272, %v2288
  %v2305 = vmax.f32 %v2273, %v2289
  %v2306 = vmax.f32 %v2274, %v2290
  %v2307 = vmax.f32 %v2275, %v2291
  %2309 = vset.pattern.permute.xlu0 0
  %2310 = vperm.xlu0 %2309, %v2142
  %v2311 = vpop.permute.xlu0 %2310
  %2314 = vset.pattern.permute.xlu0 0
  %2315 = vperm.xlu0 %2314, %v2147
  %v2316 = vpop.permute.xlu0 %2315
  %2319 = vset.pattern.permute.xlu0 0
  %2320 = vperm.xlu0 %2319, %v2152
  %v2321 = vpop.permute.xlu0 %2320
  %2324 = vset.pattern.permute.xlu0 0
  %2325 = vperm.xlu0 %2324, %v2157
  %v2326 = vpop.permute.xlu0 %2325
  %2329 = vset.pattern.permute.xlu0 0
  %2330 = vperm.xlu0 %2329, %v2162
  %v2331 = vpop.permute.xlu0 %2330
  %2334 = vset.pattern.permute.xlu0 0
  %2335 = vperm.xlu0 %2334, %v2167
  %v2336 = vpop.permute.xlu0 %2335
  %2339 = vset.pattern.permute.xlu0 0
  %2340 = vperm.xlu0 %2339, %v2172
  %v2341 = vpop.permute.xlu0 %2340
  %2344 = vset.pattern.permute.xlu0 0
  %2345 = vperm.xlu0 %2344, %v2177
  %v2346 = vpop.permute.xlu0 %2345
  %2349 = vset.pattern.permute.xlu0 0
  %2350 = vperm.xlu0 %2349, %v2182
  %v2351 = vpop.permute.xlu0 %2350
  %2354 = vset.pattern.permute.xlu0 0
  %2355 = vperm.xlu0 %2354, %v2187
  %v2356 = vpop.permute.xlu0 %2355
  %2359 = vset.pattern.permute.xlu0 0
  %2360 = vperm.xlu0 %2359, %v2192
  %v2361 = vpop.permute.xlu0 %2360
  %2364 = vset.pattern.permute.xlu0 0
  %2365 = vperm.xlu0 %2364, %v2197
  %v2366 = vpop.permute.xlu0 %2365
  %2369 = vset.pattern.permute.xlu0 0
  %2370 = vperm.xlu0 %2369, %v2202
  %v2371 = vpop.permute.xlu0 %2370
  %2374 = vset.pattern.permute.xlu0 0
  %2375 = vperm.xlu0 %2374, %v2207
  %v2376 = vpop.permute.xlu0 %2375
  %2379 = vset.pattern.permute.xlu0 0
  %2380 = vperm.xlu0 %2379, %v2212
  %v2381 = vpop.permute.xlu0 %2380
  %2384 = vset.pattern.permute.xlu0 0
  %2385 = vperm.xlu0 %2384, %v2217
  %v2386 = vpop.permute.xlu0 %2385
  %v2388 = vlaneseq
  %v2389 = vshrl.u32 %v2388, 7
  %v2390 = vsub.s32 2, %v2389
  %v2391 = vrot.slane %v2236, %v2390
  %v2392 = vadd.f32 %v2311, %v2391
  %v2393 = vadd.f32 %v2316, %v2391
  %v2394 = vadd.f32 %v2321, %v2391
  %v2395 = vadd.f32 %v2326, %v2391
  %v2396 = vadd.f32 %v2331, %v2391
  %v2397 = vadd.f32 %v2336, %v2391
  %v2398 = vadd.f32 %v2341, %v2391
  %v2399 = vadd.f32 %v2346, %v2391
  %v2400 = vadd.f32 %v2351, %v2391
  %v2401 = vadd.f32 %v2356, %v2391
  %v2402 = vadd.f32 %v2361, %v2391
  %v2403 = vadd.f32 %v2366, %v2391
  %v2404 = vadd.f32 %v2371, %v2391
  %v2405 = vadd.f32 %v2376, %v2391
  %v2406 = vadd.f32 %v2381, %v2391
  %v2407 = vadd.f32 %v2386, %v2391
  %v2408 = vmul.f32 %v2392, 0.2
  %v2409 = vmul.f32 %v2393, 0.2
  %v2410 = vmul.f32 %v2394, 0.2
  %v2411 = vmul.f32 %v2395, 0.2
  %v2412 = vmul.f32 %v2396, 0.2
  %v2413 = vmul.f32 %v2397, 0.2
  %v2414 = vmul.f32 %v2398, 0.2
  %v2415 = vmul.f32 %v2399, 0.2
  %v2416 = vmul.f32 %v2400, 0.2
  %v2417 = vmul.f32 %v2401, 0.2
  %v2418 = vmul.f32 %v2402, 0.2
  %v2419 = vmul.f32 %v2403, 0.2
  %v2420 = vmul.f32 %v2404, 0.2
  %v2421 = vmul.f32 %v2405, 0.2
  %v2422 = vmul.f32 %v2406, 0.2
  %v2423 = vmul.f32 %v2407, 0.2
  %v2424 = vmax.f32 %v2392, %v2408
  %v2425 = vmax.f32 %v2393, %v2409
  %v2426 = vmax.f32 %v2394, %v2410
  %v2427 = vmax.f32 %v2395, %v2411
  %v2428 = vmax.f32 %v2396, %v2412
  %v2429 = vmax.f32 %v2397, %v2413
  %v2430 = vmax.f32 %v2398, %v2414
  %v2431 = vmax.f32 %v2399, %v2415
  %v2432 = vmax.f32 %v2400, %v2416
  %v2433 = vmax.f32 %v2401, %v2417
  %v2434 = vmax.f32 %v2402, %v2418
  %v2435 = vmax.f32 %v2403, %v2419
  %v2436 = vmax.f32 %v2404, %v2420
  %v2437 = vmax.f32 %v2405, %v2421
  %v2438 = vmax.f32 %v2406, %v2422
  %v2439 = vmax.f32 %v2407, %v2423
  %2441 = vset.pattern.permute.xlu0 0
  %2442 = vperm.xlu0 %2441, %v2292
  %v2443 = vpop.permute.xlu0 %2442
  %2446 = vset.pattern.permute.xlu0 0
  %2447 = vperm.xlu0 %2446, %v2293
  %v2448 = vpop.permute.xlu0 %2447
  %2451 = vset.pattern.permute.xlu0 0
  %2452 = vperm.xlu0 %2451, %v2294
  %v2453 = vpop.permute.xlu0 %2452
  %2456 = vset.pattern.permute.xlu0 0
  %2457 = vperm.xlu0 %2456, %v2295
  %v2458 = vpop.permute.xlu0 %2457
  %2461 = vset.pattern.permute.xlu0 0
  %2462 = vperm.xlu0 %2461, %v2296
  %v2463 = vpop.permute.xlu0 %2462
  %2466 = vset.pattern.permute.xlu0 0
  %2467 = vperm.xlu0 %2466, %v2297
  %v2468 = vpop.permute.xlu0 %2467
  %2471 = vset.pattern.permute.xlu0 0
  %2472 = vperm.xlu0 %2471, %v2298
  %v2473 = vpop.permute.xlu0 %2472
  %2476 = vset.pattern.permute.xlu0 0
  %2477 = vperm.xlu0 %2476, %v2299
  %v2478 = vpop.permute.xlu0 %2477
  %2481 = vset.pattern.permute.xlu0 0
  %2482 = vperm.xlu0 %2481, %v2300
  %v2483 = vpop.permute.xlu0 %2482
  %2486 = vset.pattern.permute.xlu0 0
  %2487 = vperm.xlu0 %2486, %v2301
  %v2488 = vpop.permute.xlu0 %2487
  %2491 = vset.pattern.permute.xlu0 0
  %2492 = vperm.xlu0 %2491, %v2302
  %v2493 = vpop.permute.xlu0 %2492
  %2496 = vset.pattern.permute.xlu0 0
  %2497 = vperm.xlu0 %2496, %v2303
  %v2498 = vpop.permute.xlu0 %2497
  %2501 = vset.pattern.permute.xlu0 0
  %2502 = vperm.xlu0 %2501, %v2304
  %v2503 = vpop.permute.xlu0 %2502
  %2506 = vset.pattern.permute.xlu0 0
  %2507 = vperm.xlu0 %2506, %v2305
  %v2508 = vpop.permute.xlu0 %2507
  %2511 = vset.pattern.permute.xlu0 0
  %2512 = vperm.xlu0 %2511, %v2306
  %v2513 = vpop.permute.xlu0 %2512
  %2516 = vset.pattern.permute.xlu0 0
  %2517 = vperm.xlu0 %2516, %v2307
  %v2518 = vpop.permute.xlu0 %2517
  %v2520 = vsub.f32 %v2424, %v2443
  %v2521 = vsub.f32 %v2425, %v2448
  %v2522 = vsub.f32 %v2426, %v2453
  %v2523 = vsub.f32 %v2427, %v2458
  %v2524 = vsub.f32 %v2428, %v2463
  %v2525 = vsub.f32 %v2429, %v2468
  %v2526 = vsub.f32 %v2430, %v2473
  %v2527 = vsub.f32 %v2431, %v2478
  %v2528 = vsub.f32 %v2432, %v2483
  %v2529 = vsub.f32 %v2433, %v2488
  %v2530 = vsub.f32 %v2434, %v2493
  %v2531 = vsub.f32 %v2435, %v2498
  %v2532 = vsub.f32 %v2436, %v2503
  %v2533 = vsub.f32 %v2437, %v2508
  %v2534 = vsub.f32 %v2438, %v2513
  %v2535 = vsub.f32 %v2439, %v2518
  %v2536 = vmul.f32 %v2520, 1.442695
  %v2537 = vpow.pop %v2536
  %v2538 = vmul.f32 %v2521, 1.442695
  %v2539 = vpow.pop %v2538
  %v2540 = vmul.f32 %v2522, 1.442695
  %v2541 = vpow.pop %v2540
  %v2542 = vmul.f32 %v2523, 1.442695
  %v2543 = vpow.pop %v2542
  %v2544 = vmul.f32 %v2524, 1.442695
  %v2545 = vpow.pop %v2544
  %v2546 = vmul.f32 %v2525, 1.442695
  %v2547 = vpow.pop %v2546
  %v2548 = vmul.f32 %v2526, 1.442695
  %v2549 = vpow.pop %v2548
  %v2550 = vmul.f32 %v2527, 1.442695
  %v2551 = vpow.pop %v2550
  %v2552 = vmul.f32 %v2528, 1.442695
  %v2553 = vpow.pop %v2552
  %v2554 = vmul.f32 %v2529, 1.442695
  %v2555 = vpow.pop %v2554
  %v2556 = vmul.f32 %v2530, 1.442695
  %v2557 = vpow.pop %v2556
  %v2558 = vmul.f32 %v2531, 1.442695
  %v2559 = vpow.pop %v2558
  %v2560 = vmul.f32 %v2532, 1.442695
  %v2561 = vpow.pop %v2560
  %v2562 = vmul.f32 %v2533, 1.442695
  %v2563 = vpow.pop %v2562
  %v2564 = vmul.f32 %v2534, 1.442695
  %v2565 = vpow.pop %v2564
  %v2566 = vmul.f32 %v2535, 1.442695
  %v2567 = vpow.pop %v2566
  %v2568 = vmul.f32 %v2537, %v760
  %v2569 = vmul.f32 %v2539, %v761
  %v2570 = vmul.f32 %v2541, %v762
  %v2571 = vmul.f32 %v2543, %v763
  %v2572 = vmul.f32 %v2545, %v764
  %v2573 = vmul.f32 %v2547, %v765
  %v2574 = vmul.f32 %v2549, %v766
  %v2575 = vmul.f32 %v2551, %v767
  %v2576 = vmul.f32 %v2553, %v768
  %v2577 = vmul.f32 %v2555, %v769
  %v2578 = vmul.f32 %v2557, %v770
  %v2579 = vmul.f32 %v2559, %v771
  %v2580 = vmul.f32 %v2561, %v772
  %v2581 = vmul.f32 %v2563, %v773
  %v2582 = vmul.f32 %v2565, %v774
  %v2583 = vmul.f32 %v2567, %v775
  %2584 = vmatprep.subr.mxu0 0.0
  %2585 = vmatpush1.msra.mxu0 %v2043
  %2586 = vmatprep.subr.mxu0 0.0
  %2587 = vmatpush1.msra.mxu0 %v2044
  %2588 = vmatprep.subr.mxu0 0.0
  %2589 = vmatpush1.msra.mxu0 %v2045
  %2590 = vmatprep.subr.mxu0 0.0
  %2591 = vmatpush1.msra.mxu0 %v2046
  %2592 = vmatprep.subr.mxu0 0.0
  %2593 = vmatpush1.msra.mxu0 %v2047
  %2594 = vmatprep.subr.mxu0 0.0
  %2595 = vmatpush1.msra.mxu0 %v2048
  %2596 = vmatprep.subr.mxu0 0.0
  %2597 = vmatpush1.msra.mxu0 %v2049
  %2598 = vmatprep.subr.mxu0 0.0
  %2599 = vmatpush1.msra.mxu0 %v2050
  %2600 = vmatprep.subr.mxu0 0.0
  %2601 = vmatpush1.msra.mxu0 %v2051
  %2602 = vmatprep.subr.mxu0 0.0
  %2603 = vmatpush1.msra.mxu0 %v2052
  %2604 = vmatprep.subr.mxu0 0.0
  %2605 = vmatpush1.msra.mxu0 %v2053
  %2606 = vmatprep.subr.mxu0 0.0
  %2607 = vmatpush1.msra.mxu0 %v2054
  %2608 = vmatprep.subr.mxu0 0.0
  %2609 = vmatpush1.msra.mxu0 %v2055
  %2610 = vmatprep.subr.mxu0 0.0
  %2611 = vmatpush1.msra.mxu0 %v2056
  %2612 = vmatprep.subr.mxu0 0.0
  %2613 = vmatpush1.msra.mxu0 %v2057
  %2614 = vmatprep.subr.mxu0 0.0
  %2615 = vmatpush1.msra.mxu0 %v2058
  %2616 = vmatprep.subr.mxu0 0.0
  %2617 = vmatpush1.msra.mxu0 0.0
  %2618 = vmatprep.subr.mxu0 0.0
  %2619 = vmatpush1.msra.mxu0 0.0
  %2620 = vmatprep.subr.mxu0 0.0
  %2621 = vmatpush1.msra.mxu0 0.0
  %2622 = vmatprep.subr.mxu0 0.0
  %2623 = vmatpush1.msra.mxu0 0.0
  %2624 = vmatprep.subr.mxu0 0.0
  %2625 = vmatpush1.msra.mxu0 0.0
  %2626 = vmatprep.subr.mxu0 0.0
  %2627 = vmatpush1.msra.mxu0 0.0
  %2628 = vmatprep.subr.mxu0 0.0
  %2629 = vmatpush1.msra.mxu0 0.0
  %2630 = vmatprep.subr.mxu0 0.0
  %2631 = vmatpush1.msra.mxu0 0.0
  %2632 = vmatprep.subr.mxu0 0.0
  %2633 = vmatpush1.msra.mxu0 0.0
  %2634 = vmatprep.subr.mxu0 0.0
  %2635 = vmatpush1.msra.mxu0 0.0
  %2636 = vmatprep.subr.mxu0 0.0
  %2637 = vmatpush1.msra.mxu0 0.0
  %2638 = vmatprep.subr.mxu0 0.0
  %2639 = vmatpush1.msra.mxu0 0.0
  %2640 = vmatprep.subr.mxu0 0.0
  %2641 = vmatpush1.msra.mxu0 0.0
  %2642 = vmatprep.subr.mxu0 0.0
  %2643 = vmatpush1.msra.mxu0 0.0
  %2644 = vmatprep.subr.mxu0 0.0
  %2645 = vmatpush1.msra.mxu0 0.0
  %2646 = vmatprep.subr.mxu0 0.0
  %2647 = vmatpush1.msra.mxu0 0.0
  %2648 = vmatprep.mubr.f32.mxu0 0.0
  %2649 = vmatmul.mubr.f32.gmra.mrb[0].mxu0 %v2568
  %v2650 = vpop.f32.mrb[0].mxu0
  %v2651 = vadd.f32 0.0, %v2650
  %v2652 = vpop.f32.mrb[0].mxu0
  %2653 = vmatprep.mubr.f32.mxu0 0.0
  %2654 = vmatmul.mubr.f32.gmra.mrb[0].mxu0 %v2569
  %v2655 = vpop.f32.mrb[0].mxu0
  %v2656 = vadd.f32 0.0, %v2655
  %v2657 = vpop.f32.mrb[0].mxu0
  %2658 = vmatprep.mubr.f32.mxu0 0.0
  %2659 = vmatmul.mubr.f32.gmra.mrb[0].mxu0 %v2570
  %v2660 = vpop.f32.mrb[0].mxu0
  %v2661 = vadd.f32 0.0, %v2660
  %v2662 = vpop.f32.mrb[0].mxu0
  %2663 = vmatprep.mubr.f32.mxu0 0.0
  %2664 = vmatmul.mubr.f32.gmra.mrb[0].mxu0 %v2571
  %v2665 = vpop.f32.mrb[0].mxu0
  %v2666 = vadd.f32 0.0, %v2665
  %v2667 = vpop.f32.mrb[0].mxu0
  %2668 = vmatprep.mubr.f32.mxu0 0.0
  %2669 = vmatmul.mubr.f32.gmra.mrb[0].mxu0 %v2572
  %v2670 = vpop.f32.mrb[0].mxu0
  %v2671 = vadd.f32 0.0, %v2670
  %v2672 = vpop.f32.mrb[0].mxu0
  %2673 = vmatprep.mubr.f32.mxu0 0.0
  %2674 = vmatmul.mubr.f32.gmra.mrb[0].mxu0 %v2573
  %v2675 = vpop.f32.mrb[0].mxu0
  %v2676 = vadd.f32 0.0, %v2675
  %v2677 = vpop.f32.mrb[0].mxu0
  %2678 = vmatprep.mubr.f32.mxu0 0.0
  %2679 = vmatmul.mubr.f32.gmra.mrb[0].mxu0 %v2574
  %v2680 = vpop.f32.mrb[0].mxu0
  %v2681 = vadd.f32 0.0, %v2680
  %v2682 = vpop.f32.mrb[0].mxu0
  %2683 = vmatprep.mubr.f32.mxu0 0.0
  %2684 = vmatmul.mubr.f32.gmra.mrb[0].mxu0 %v2575
  %v2685 = vpop.f32.mrb[0].mxu0
  %v2686 = vadd.f32 0.0, %v2685
  %v2687 = vpop.f32.mrb[0].mxu0
  %2688 = vmatprep.mubr.f32.mxu0 0.0
  %2689 = vmatmul.mubr.f32.gmra.mrb[0].mxu0 %v2576
  %v2690 = vpop.f32.mrb[0].mxu0
  %v2691 = vadd.f32 0.0, %v2690
  %v2692 = vpop.f32.mrb[0].mxu0
  %2693 = vmatprep.mubr.f32.mxu0 0.0
  %2694 = vmatmul.mubr.f32.gmra.mrb[0].mxu0 %v2577
  %v2695 = vpop.f32.mrb[0].mxu0
  %v2696 = vadd.f32 0.0, %v2695
  %v2697 = vpop.f32.mrb[0].mxu0
  %2698 = vmatprep.mubr.f32.mxu0 0.0
  %2699 = vmatmul.mubr.f32.gmra.mrb[0].mxu0 %v2578
  %v2700 = vpop.f32.mrb[0].mxu0
  %v2701 = vadd.f32 0.0, %v2700
  %v2702 = vpop.f32.mrb[0].mxu0
  %2703 = vmatprep.mubr.f32.mxu0 0.0
  %2704 = vmatmul.mubr.f32.gmra.mrb[0].mxu0 %v2579
  %v2705 = vpop.f32.mrb[0].mxu0
  %v2706 = vadd.f32 0.0, %v2705
  %v2707 = vpop.f32.mrb[0].mxu0
  %2708 = vmatprep.mubr.f32.mxu0 0.0
  %2709 = vmatmul.mubr.f32.gmra.mrb[0].mxu0 %v2580
  %v2710 = vpop.f32.mrb[0].mxu0
  %v2711 = vadd.f32 0.0, %v2710
  %v2712 = vpop.f32.mrb[0].mxu0
  %2713 = vmatprep.mubr.f32.mxu0 0.0
  %2714 = vmatmul.mubr.f32.gmra.mrb[0].mxu0 %v2581
  %v2715 = vpop.f32.mrb[0].mxu0
  %v2716 = vadd.f32 0.0, %v2715
  %v2717 = vpop.f32.mrb[0].mxu0
  %2718 = vmatprep.mubr.f32.mxu0 0.0
  %2719 = vmatmul.mubr.f32.gmra.mrb[0].mxu0 %v2582
  %v2720 = vpop.f32.mrb[0].mxu0
  %v2721 = vadd.f32 0.0, %v2720
  %v2722 = vpop.f32.mrb[0].mxu0
  %2723 = vmatprep.mubr.f32.mxu0 0.0
  %2724 = vmatmul.mubr.f32.gmra.mrb[0].mxu0 %v2583
  %v2725 = vpop.f32.mrb[0].mxu0
  %v2726 = vadd.f32 0.0, %v2725
  %v2727 = vpop.f32.mrb[0].mxu0
  %2728 = vdwg.mxu0
  %v2729 = vrcp.pop %v2651
  %v2730 = vmul.f32 1.0, %v2729
  %v2731 = vrcp.pop %v2656
  %v2732 = vmul.f32 1.0, %v2731
  %v2733 = vrcp.pop %v2661
  %v2734 = vmul.f32 1.0, %v2733
  %v2735 = vrcp.pop %v2666
  %v2736 = vmul.f32 1.0, %v2735
  %v2737 = vrcp.pop %v2671
  %v2738 = vmul.f32 1.0, %v2737
  %v2739 = vrcp.pop %v2676
  %v2740 = vmul.f32 1.0, %v2739
  %v2741 = vrcp.pop %v2681
  %v2742 = vmul.f32 1.0, %v2741
  %v2743 = vrcp.pop %v2686
  %v2744 = vmul.f32 1.0, %v2743
  %v2745 = vrcp.pop %v2691
  %v2746 = vmul.f32 1.0, %v2745
  %v2747 = vrcp.pop %v2696
  %v2748 = vmul.f32 1.0, %v2747
  %v2749 = vrcp.pop %v2701
  %v2750 = vmul.f32 1.0, %v2749
  %v2751 = vrcp.pop %v2706
  %v2752 = vmul.f32 1.0, %v2751
  %v2753 = vrcp.pop %v2711
  %v2754 = vmul.f32 1.0, %v2753
  %v2755 = vrcp.pop %v2716
  %v2756 = vmul.f32 1.0, %v2755
  %v2757 = vrcp.pop %v2721
  %v2758 = vmul.f32 1.0, %v2757
  %v2759 = vrcp.pop %v2726
  %v2760 = vmul.f32 1.0, %v2759
  %2762 = vset.pattern.permute.xlu0 127
  %2763 = vperm.xlu0 %2762, %v2730
  %v2764 = vpop.permute.xlu0 %2763
  %2767 = vset.pattern.permute.xlu0 127
  %2768 = vperm.xlu0 %2767, %v2732
  %v2769 = vpop.permute.xlu0 %2768
  %2772 = vset.pattern.permute.xlu0 127
  %2773 = vperm.xlu0 %2772, %v2734
  %v2774 = vpop.permute.xlu0 %2773
  %2777 = vset.pattern.permute.xlu0 127
  %2778 = vperm.xlu0 %2777, %v2736
  %v2779 = vpop.permute.xlu0 %2778
  %2782 = vset.pattern.permute.xlu0 127
  %2783 = vperm.xlu0 %2782, %v2738
  %v2784 = vpop.permute.xlu0 %2783
  %2787 = vset.pattern.permute.xlu0 127
  %2788 = vperm.xlu0 %2787, %v2740
  %v2789 = vpop.permute.xlu0 %2788
  %2792 = vset.pattern.permute.xlu0 127
  %2793 = vperm.xlu0 %2792, %v2742
  %v2794 = vpop.permute.xlu0 %2793
  %2797 = vset.pattern.permute.xlu0 127
  %2798 = vperm.xlu0 %2797, %v2744
  %v2799 = vpop.permute.xlu0 %2798
  %2802 = vset.pattern.permute.xlu0 127
  %2803 = vperm.xlu0 %2802, %v2746
  %v2804 = vpop.permute.xlu0 %2803
  %2807 = vset.pattern.permute.xlu0 127
  %2808 = vperm.xlu0 %2807, %v2748
  %v2809 = vpop.permute.xlu0 %2808
  %2812 = vset.pattern.permute.xlu0 127
  %2813 = vperm.xlu0 %2812, %v2750
  %v2814 = vpop.permute.xlu0 %2813
  %2817 = vset.pattern.permute.xlu0 127
  %2818 = vperm.xlu0 %2817, %v2752
  %v2819 = vpop.permute.xlu0 %2818
  %2822 = vset.pattern.permute.xlu0 127
  %2823 = vperm.xlu0 %2822, %v2754
  %v2824 = vpop.permute.xlu0 %2823
  %2827 = vset.pattern.permute.xlu0 127
  %2828 = vperm.xlu0 %2827, %v2756
  %v2829 = vpop.permute.xlu0 %2828
  %2832 = vset.pattern.permute.xlu0 127
  %2833 = vperm.xlu0 %2832, %v2758
  %v2834 = vpop.permute.xlu0 %2833
  %2837 = vset.pattern.permute.xlu0 127
  %2838 = vperm.xlu0 %2837, %v2760
  %v2839 = vpop.permute.xlu0 %2838
  %v2841 = vmul.f32 %v2651, %v2764
  %v2842 = vmul.f32 %v2656, %v2769
  %v2843 = vmul.f32 %v2661, %v2774
  %v2844 = vmul.f32 %v2666, %v2779
  %v2845 = vmul.f32 %v2671, %v2784
  %v2846 = vmul.f32 %v2676, %v2789
  %v2847 = vmul.f32 %v2681, %v2794
  %v2848 = vmul.f32 %v2686, %v2799
  %v2849 = vmul.f32 %v2691, %v2804
  %v2850 = vmul.f32 %v2696, %v2809
  %v2851 = vmul.f32 %v2701, %v2814
  %v2852 = vmul.f32 %v2706, %v2819
  %v2853 = vmul.f32 %v2711, %v2824
  %v2854 = vmul.f32 %v2716, %v2829
  %v2855 = vmul.f32 %v2721, %v2834
  %v2856 = vmul.f32 %v2726, %v2839
  %v2858 = vlaneseq
  %v2859 = vshrl.u32 %v2858, 7
  %v2860 = vsub.s32 0, %v2859
  %v2861 = vrot.slane %v2255, %v2860
  %v2863 = vadd.f32 %v2841, %v2861
  %v2864 = vadd.f32 %v2842, %v2861
  %v2865 = vadd.f32 %v2843, %v2861
  %v2866 = vadd.f32 %v2844, %v2861
  %v2867 = vadd.f32 %v2845, %v2861
  %v2868 = vadd.f32 %v2846, %v2861
  %v2869 = vadd.f32 %v2847, %v2861
  %v2870 = vadd.f32 %v2848, %v2861
  %v2871 = vadd.f32 %v2849, %v2861
  %v2872 = vadd.f32 %v2850, %v2861
  %v2873 = vadd.f32 %v2851, %v2861
  %v2874 = vadd.f32 %v2852, %v2861
  %v2875 = vadd.f32 %v2853, %v2861
  %v2876 = vadd.f32 %v2854, %v2861
  %v2877 = vadd.f32 %v2855, %v2861
  %v2878 = vadd.f32 %v2856, %v2861
  %vm2879 = vcmp.gt.f32.partialorder %v2863, 0.0
  %vm2880 = vcmp.gt.f32.partialorder %v2864, 0.0
  %vm2881 = vcmp.gt.f32.partialorder %v2865, 0.0
  %vm2882 = vcmp.gt.f32.partialorder %v2866, 0.0
  %vm2883 = vcmp.gt.f32.partialorder %v2867, 0.0
  %vm2884 = vcmp.gt.f32.partialorder %v2868, 0.0
  %vm2885 = vcmp.gt.f32.partialorder %v2869, 0.0
  %vm2886 = vcmp.gt.f32.partialorder %v2870, 0.0
  %vm2887 = vcmp.gt.f32.partialorder %v2871, 0.0
  %vm2888 = vcmp.gt.f32.partialorder %v2872, 0.0
  %vm2889 = vcmp.gt.f32.partialorder %v2873, 0.0
  %vm2890 = vcmp.gt.f32.partialorder %v2874, 0.0
  %vm2891 = vcmp.gt.f32.partialorder %v2875, 0.0
  %vm2892 = vcmp.gt.f32.partialorder %v2876, 0.0
  %vm2893 = vcmp.gt.f32.partialorder %v2877, 0.0
  %vm2894 = vcmp.gt.f32.partialorder %v2878, 0.0
  %v2895 = vmul.f32 %v2863, 1.442695
  %v2896 = vpow.pop %v2895
  %v2897 = vmul.f32 %v2864, 1.442695
  %v2898 = vpow.pop %v2897
  %v2899 = vmul.f32 %v2865, 1.442695
  %v2900 = vpow.pop %v2899
  %v2901 = vmul.f32 %v2866, 1.442695
  %v2902 = vpow.pop %v2901
  %v2903 = vmul.f32 %v2867, 1.442695
  %v2904 = vpow.pop %v2903
  %v2905 = vmul.f32 %v2868, 1.442695
  %v2906 = vpow.pop %v2905
  %v2907 = vmul.f32 %v2869, 1.442695
  %v2908 = vpow.pop %v2907
  %v2909 = vmul.f32 %v2870, 1.442695
  %v2910 = vpow.pop %v2909
  %v2911 = vmul.f32 %v2871, 1.442695
  %v2912 = vpow.pop %v2911
  %v2913 = vmul.f32 %v2872, 1.442695
  %v2914 = vpow.pop %v2913
  %v2915 = vmul.f32 %v2873, 1.442695
  %v2916 = vpow.pop %v2915
  %v2917 = vmul.f32 %v2874, 1.442695
  %v2918 = vpow.pop %v2917
  %v2919 = vmul.f32 %v2875, 1.442695
  %v2920 = vpow.pop %v2919
  %v2921 = vmul.f32 %v2876, 1.442695
  %v2922 = vpow.pop %v2921
  %v2923 = vmul.f32 %v2877, 1.442695
  %v2924 = vpow.pop %v2923
  %v2925 = vmul.f32 %v2878, 1.442695
  %v2926 = vpow.pop %v2925
  %v2927 = vsub.f32 %v2896, 1.0
  %v2928 = vsub.f32 %v2898, 1.0
  %v2929 = vsub.f32 %v2900, 1.0
  %v2930 = vsub.f32 %v2902, 1.0
  %v2931 = vsub.f32 %v2904, 1.0
  %v2932 = vsub.f32 %v2906, 1.0
  %v2933 = vsub.f32 %v2908, 1.0
  %v2934 = vsub.f32 %v2910, 1.0
  %v2935 = vsub.f32 %v2912, 1.0
  %v2936 = vsub.f32 %v2914, 1.0
  %v2937 = vsub.f32 %v2916, 1.0
  %v2938 = vsub.f32 %v2918, 1.0
  %v2939 = vsub.f32 %v2920, 1.0
  %v2940 = vsub.f32 %v2922, 1.0
  %v2941 = vsub.f32 %v2924, 1.0
  %v2942 = vsub.f32 %v2926, 1.0
  %v2943 = vsel %vm2879, %v2863, %v2927
  %v2944 = vsel %vm2880, %v2864, %v2928
  %v2945 = vsel %vm2881, %v2865, %v2929
  %v2946 = vsel %vm2882, %v2866, %v2930
  %v2947 = vsel %vm2883, %v2867, %v2931
  %v2948 = vsel %vm2884, %v2868, %v2932
  %v2949 = vsel %vm2885, %v2869, %v2933
  %v2950 = vsel %vm2886, %v2870, %v2934
  %v2951 = vsel %vm2887, %v2871, %v2935
  %v2952 = vsel %vm2888, %v2872, %v2936
  %v2953 = vsel %vm2889, %v2873, %v2937
  %v2954 = vsel %vm2890, %v2874, %v2938
  %v2955 = vsel %vm2891, %v2875, %v2939
  %v2956 = vsel %vm2892, %v2876, %v2940
  %v2957 = vsel %vm2893, %v2877, %v2941
  %v2958 = vsel %vm2894, %v2878, %v2942
  %v2959 = vlaneseq
  %v2960 = vshrl.u32 %v2959, 7
  %v2961 = vsub.s32 3, %v2960
  %v2962 = vrot.slane %v2254, %v2961
  %v2963 = vadd.f32 %v2142, %v2962
  %v2964 = vadd.f32 %v2147, %v2962
  %v2965 = vadd.f32 %v2152, %v2962
  %v2966 = vadd.f32 %v2157, %v2962
  %v2967 = vadd.f32 %v2162, %v2962
  %v2968 = vadd.f32 %v2167, %v2962
  %v2969 = vadd.f32 %v2172, %v2962
  %v2970 = vadd.f32 %v2177, %v2962
  %v2971 = vadd.f32 %v2182, %v2962
  %v2972 = vadd.f32 %v2187, %v2962
  %v2973 = vadd.f32 %v2192, %v2962
  %v2974 = vadd.f32 %v2197, %v2962
  %v2975 = vadd.f32 %v2202, %v2962
  %v2976 = vadd.f32 %v2207, %v2962
  %v2977 = vadd.f32 %v2212, %v2962
  %v2978 = vadd.f32 %v2217, %v2962
  %v2979 = vmul.f32 %v2963, 0.2
  %v2980 = vmul.f32 %v2964, 0.2
  %v2981 = vmul.f32 %v2965, 0.2
  %v2982 = vmul.f32 %v2966, 0.2
  %v2983 = vmul.f32 %v2967, 0.2
  %v2984 = vmul.f32 %v2968, 0.2
  %v2985 = vmul.f32 %v2969, 0.2
  %v2986 = vmul.f32 %v2970, 0.2
  %v2987 = vmul.f32 %v2971, 0.2
  %v2988 = vmul.f32 %v2972, 0.2
  %v2989 = vmul.f32 %v2973, 0.2
  %v2990 = vmul.f32 %v2974, 0.2
  %v2991 = vmul.f32 %v2975, 0.2
  %v2992 = vmul.f32 %v2976, 0.2
  %v2993 = vmul.f32 %v2977, 0.2
  %v2994 = vmul.f32 %v2978, 0.2
  %v2995 = vmax.f32 %v2963, %v2979
  %v2996 = vmax.f32 %v2964, %v2980
  %v2997 = vmax.f32 %v2965, %v2981
  %v2998 = vmax.f32 %v2966, %v2982
  %v2999 = vmax.f32 %v2967, %v2983
  %v3000 = vmax.f32 %v2968, %v2984
  %v3001 = vmax.f32 %v2969, %v2985
  %v3002 = vmax.f32 %v2970, %v2986
  %v3003 = vmax.f32 %v2971, %v2987
  %v3004 = vmax.f32 %v2972, %v2988
  %v3005 = vmax.f32 %v2973, %v2989
  %v3006 = vmax.f32 %v2974, %v2990
  %v3007 = vmax.f32 %v2975, %v2991
  %v3008 = vmax.f32 %v2976, %v2992
  %v3009 = vmax.f32 %v2977, %v2993
  %v3010 = vmax.f32 %v2978, %v2994
  %3011 = vset.pattern.permute.xlu0 1
  %3012 = vperm.xlu0 %3011, %v2142
  %v3013 = vpop.permute.xlu0 %3012
  %3015 = vset.pattern.permute.xlu0 1
  %3016 = vperm.xlu0 %3015, %v2147
  %v3017 = vpop.permute.xlu0 %3016
  %3019 = vset.pattern.permute.xlu0 1
  %3020 = vperm.xlu0 %3019, %v2152
  %v3021 = vpop.permute.xlu0 %3020
  %3023 = vset.pattern.permute.xlu0 1
  %3024 = vperm.xlu0 %3023, %v2157
  %v3025 = vpop.permute.xlu0 %3024
  %3027 = vset.pattern.permute.xlu0 1
  %3028 = vperm.xlu0 %3027, %v2162
  %v3029 = vpop.permute.xlu0 %3028
  %3031 = vset.pattern.permute.xlu0 1
  %3032 = vperm.xlu0 %3031, %v2167
  %v3033 = vpop.permute.xlu0 %3032
  %3035 = vset.pattern.permute.xlu0 1
  %3036 = vperm.xlu0 %3035, %v2172
  %v3037 = vpop.permute.xlu0 %3036
  %3039 = vset.pattern.permute.xlu0 1
  %3040 = vperm.xlu0 %3039, %v2177
  %v3041 = vpop.permute.xlu0 %3040
  %3043 = vset.pattern.permute.xlu0 1
  %3044 = vperm.xlu0 %3043, %v2182
  %v3045 = vpop.permute.xlu0 %3044
  %3047 = vset.pattern.permute.xlu0 1
  %3048 = vperm.xlu0 %3047, %v2187
  %v3049 = vpop.permute.xlu0 %3048
  %3051 = vset.pattern.permute.xlu0 1
  %3052 = vperm.xlu0 %3051, %v2192
  %v3053 = vpop.permute.xlu0 %3052
  %3055 = vset.pattern.permute.xlu0 1
  %3056 = vperm.xlu0 %3055, %v2197
  %v3057 = vpop.permute.xlu0 %3056
  %3059 = vset.pattern.permute.xlu0 1
  %3060 = vperm.xlu0 %3059, %v2202
  %v3061 = vpop.permute.xlu0 %3060
  %3063 = vset.pattern.permute.xlu0 1
  %3064 = vperm.xlu0 %3063, %v2207
  %v3065 = vpop.permute.xlu0 %3064
  %3067 = vset.pattern.permute.xlu0 1
  %3068 = vperm.xlu0 %3067, %v2212
  %v3069 = vpop.permute.xlu0 %3068
  %3071 = vset.pattern.permute.xlu0 1
  %3072 = vperm.xlu0 %3071, %v2217
  %v3073 = vpop.permute.xlu0 %3072
  %v3075 = vlaneseq
  %v3076 = vshrl.u32 %v3075, 7
  %v3077 = vsub.s32 3, %v3076
  %v3078 = vrot.slane %v2236, %v3077
  %v3079 = vadd.f32 %v3013, %v3078
  %v3080 = vadd.f32 %v3017, %v3078
  %v3081 = vadd.f32 %v3021, %v3078
  %v3082 = vadd.f32 %v3025, %v3078
  %v3083 = vadd.f32 %v3029, %v3078
  %v3084 = vadd.f32 %v3033, %v3078
  %v3085 = vadd.f32 %v3037, %v3078
  %v3086 = vadd.f32 %v3041, %v3078
  %v3087 = vadd.f32 %v3045, %v3078
  %v3088 = vadd.f32 %v3049, %v3078
  %v3089 = vadd.f32 %v3053, %v3078
  %v3090 = vadd.f32 %v3057, %v3078
  %v3091 = vadd.f32 %v3061, %v3078
  %v3092 = vadd.f32 %v3065, %v3078
  %v3093 = vadd.f32 %v3069, %v3078
  %v3094 = vadd.f32 %v3073, %v3078
  %v3095 = vmul.f32 %v3079, 0.2
  %v3096 = vmul.f32 %v3080, 0.2
  %v3097 = vmul.f32 %v3081, 0.2
  %v3098 = vmul.f32 %v3082, 0.2
  %v3099 = vmul.f32 %v3083, 0.2
  %v3100 = vmul.f32 %v3084, 0.2
  %v3101 = vmul.f32 %v3085, 0.2
  %v3102 = vmul.f32 %v3086, 0.2
  %v3103 = vmul.f32 %v3087, 0.2
  %v3104 = vmul.f32 %v3088, 0.2
  %v3105 = vmul.f32 %v3089, 0.2
  %v3106 = vmul.f32 %v3090, 0.2
  %v3107 = vmul.f32 %v3091, 0.2
  %v3108 = vmul.f32 %v3092, 0.2
  %v3109 = vmul.f32 %v3093, 0.2
  %v3110 = vmul.f32 %v3094, 0.2
  %v3111 = vmax.f32 %v3079, %v3095
  %v3112 = vmax.f32 %v3080, %v3096
  %v3113 = vmax.f32 %v3081, %v3097
  %v3114 = vmax.f32 %v3082, %v3098
  %v3115 = vmax.f32 %v3083, %v3099
  %v3116 = vmax.f32 %v3084, %v3100
  %v3117 = vmax.f32 %v3085, %v3101
  %v3118 = vmax.f32 %v3086, %v3102
  %v3119 = vmax.f32 %v3087, %v3103
  %v3120 = vmax.f32 %v3088, %v3104
  %v3121 = vmax.f32 %v3089, %v3105
  %v3122 = vmax.f32 %v3090, %v3106
  %v3123 = vmax.f32 %v3091, %v3107
  %v3124 = vmax.f32 %v3092, %v3108
  %v3125 = vmax.f32 %v3093, %v3109
  %v3126 = vmax.f32 %v3094, %v3110
  %3128 = vset.pattern.permute.xlu0 1
  %3129 = vperm.xlu0 %3128, %v2995
  %v3130 = vpop.permute.xlu0 %3129
  %3133 = vset.pattern.permute.xlu0 1
  %3134 = vperm.xlu0 %3133, %v2996
  %v3135 = vpop.permute.xlu0 %3134
  %3138 = vset.pattern.permute.xlu0 1
  %3139 = vperm.xlu0 %3138, %v2997
  %v3140 = vpop.permute.xlu0 %3139
  %3143 = vset.pattern.permute.xlu0 1
  %3144 = vperm.xlu0 %3143, %v2998
  %v3145 = vpop.permute.xlu0 %3144
  %3148 = vset.pattern.permute.xlu0 1
  %3149 = vperm.xlu0 %3148, %v2999
  %v3150 = vpop.permute.xlu0 %3149
  %3153 = vset.pattern.permute.xlu0 1
  %3154 = vperm.xlu0 %3153, %v3000
  %v3155 = vpop.permute.xlu0 %3154
  %3158 = vset.pattern.permute.xlu0 1
  %3159 = vperm.xlu0 %3158, %v3001
  %v3160 = vpop.permute.xlu0 %3159
  %3163 = vset.pattern.permute.xlu0 1
  %3164 = vperm.xlu0 %3163, %v3002
  %v3165 = vpop.permute.xlu0 %3164
  %3168 = vset.pattern.permute.xlu0 1
  %3169 = vperm.xlu0 %3168, %v3003
  %v3170 = vpop.permute.xlu0 %3169
  %3173 = vset.pattern.permute.xlu0 1
  %3174 = vperm.xlu0 %3173, %v3004
  %v3175 = vpop.permute.xlu0 %3174
  %3178 = vset.pattern.permute.xlu0 1
  %3179 = vperm.xlu0 %3178, %v3005
  %v3180 = vpop.permute.xlu0 %3179
  %3183 = vset.pattern.permute.xlu0 1
  %3184 = vperm.xlu0 %3183, %v3006
  %v3185 = vpop.permute.xlu0 %3184
  %3188 = vset.pattern.permute.xlu0 1
  %3189 = vperm.xlu0 %3188, %v3007
  %v3190 = vpop.permute.xlu0 %3189
  %3193 = vset.pattern.permute.xlu0 1
  %3194 = vperm.xlu0 %3193, %v3008
  %v3195 = vpop.permute.xlu0 %3194
  %3198 = vset.pattern.permute.xlu0 1
  %3199 = vperm.xlu0 %3198, %v3009
  %v3200 = vpop.permute.xlu0 %3199
  %3203 = vset.pattern.permute.xlu0 1
  %3204 = vperm.xlu0 %3203, %v3010
  %v3205 = vpop.permute.xlu0 %3204
  %v3207 = vsub.f32 %v3111, %v3130
  %v3208 = vsub.f32 %v3112, %v3135
  %v3209 = vsub.f32 %v3113, %v3140
  %v3210 = vsub.f32 %v3114, %v3145
  %v3211 = vsub.f32 %v3115, %v3150
  %v3212 = vsub.f32 %v3116, %v3155
  %v3213 = vsub.f32 %v3117, %v3160
  %v3214 = vsub.f32 %v3118, %v3165
  %v3215 = vsub.f32 %v3119, %v3170
  %v3216 = vsub.f32 %v3120, %v3175
  %v3217 = vsub.f32 %v3121, %v3180
  %v3218 = vsub.f32 %v3122, %v3185
  %v3219 = vsub.f32 %v3123, %v3190
  %v3220 = vsub.f32 %v3124, %v3195
  %v3221 = vsub.f32 %v3125, %v3200
  %v3222 = vsub.f32 %v3126, %v3205
  %v3223 = vmul.f32 %v3207, 1.442695
  %v3224 = vpow.pop %v3223
  %v3225 = vmul.f32 %v3208, 1.442695
  %v3226 = vpow.pop %v3225
  %v3227 = vmul.f32 %v3209, 1.442695
  %v3228 = vpow.pop %v3227
  %v3229 = vmul.f32 %v3210, 1.442695
  %v3230 = vpow.pop %v3229
  %v3231 = vmul.f32 %v3211, 1.442695
  %v3232 = vpow.pop %v3231
  %v3233 = vmul.f32 %v3212, 1.442695
  %v3234 = vpow.pop %v3233
  %v3235 = vmul.f32 %v3213, 1.442695
  %v3236 = vpow.pop %v3235
  %v3237 = vmul.f32 %v3214, 1.442695
  %v3238 = vpow.pop %v3237
  %v3239 = vmul.f32 %v3215, 1.442695
  %v3240 = vpow.pop %v3239
  %v3241 = vmul.f32 %v3216, 1.442695
  %v3242 = vpow.pop %v3241
  %v3243 = vmul.f32 %v3217, 1.442695
  %v3244 = vpow.pop %v3243
  %v3245 = vmul.f32 %v3218, 1.442695
  %v3246 = vpow.pop %v3245
  %v3247 = vmul.f32 %v3219, 1.442695
  %v3248 = vpow.pop %v3247
  %v3249 = vmul.f32 %v3220, 1.442695
  %v3250 = vpow.pop %v3249
  %v3251 = vmul.f32 %v3221, 1.442695
  %v3252 = vpow.pop %v3251
  %v3253 = vmul.f32 %v3222, 1.442695
  %v3254 = vpow.pop %v3253
  %v3255 = vmul.f32 %v3224, %v760
  %v3256 = vmul.f32 %v3226, %v761
  %v3257 = vmul.f32 %v3228, %v762
  %v3258 = vmul.f32 %v3230, %v763
  %v3259 = vmul.f32 %v3232, %v764
  %v3260 = vmul.f32 %v3234, %v765
  %v3261 = vmul.f32 %v3236, %v766
  %v3262 = vmul.f32 %v3238, %v767
  %v3263 = vmul.f32 %v3240, %v768
  %v3264 = vmul.f32 %v3242, %v769
  %v3265 = vmul.f32 %v3244, %v770
  %v3266 = vmul.f32 %v3246, %v771
  %v3267 = vmul.f32 %v3248, %v772
  %v3268 = vmul.f32 %v3250, %v773
  %v3269 = vmul.f32 %v3252, %v774
  %v3270 = vmul.f32 %v3254, %v775
  %3271 = vmatprep.subr.mxu0 0.0
  %3272 = vmatpush1.msra.mxu0 %v2043
  %3273 = vmatprep.subr.mxu0 0.0
  %3274 = vmatpush1.msra.mxu0 %v2044
  %3275 = vmatprep.subr.mxu0 0.0
  %3276 = vmatpush1.msra.mxu0 %v2045
  %3277 = vmatprep.subr.mxu0 0.0
  %3278 = vmatpush1.msra.mxu0 %v2046
  %3279 = vmatprep.subr.mxu0 0.0
  %3280 = vmatpush1.msra.mxu0 %v2047
  %3281 = vmatprep.subr.mxu0 0.0
  %3282 = vmatpush1.msra.mxu0 %v2048
  %3283 = vmatprep.subr.mxu0 0.0
  %3284 = vmatpush1.msra.mxu0 %v2049
  %3285 = vmatprep.subr.mxu0 0.0
  %3286 = vmatpush1.msra.mxu0 %v2050
  %3287 = vmatprep.subr.mxu0 0.0
  %3288 = vmatpush1.msra.mxu0 %v2051
  %3289 = vmatprep.subr.mxu0 0.0
  %3290 = vmatpush1.msra.mxu0 %v2052
  %3291 = vmatprep.subr.mxu0 0.0
  %3292 = vmatpush1.msra.mxu0 %v2053
  %3293 = vmatprep.subr.mxu0 0.0
  %3294 = vmatpush1.msra.mxu0 %v2054
  %3295 = vmatprep.subr.mxu0 0.0
  %3296 = vmatpush1.msra.mxu0 %v2055
  %3297 = vmatprep.subr.mxu0 0.0
  %3298 = vmatpush1.msra.mxu0 %v2056
  %3299 = vmatprep.subr.mxu0 0.0
  %3300 = vmatpush1.msra.mxu0 %v2057
  %3301 = vmatprep.subr.mxu0 0.0
  %3302 = vmatpush1.msra.mxu0 %v2058
  %3303 = vmatprep.subr.mxu0 0.0
  %3304 = vmatpush1.msra.mxu0 0.0
  %3305 = vmatprep.subr.mxu0 0.0
  %3306 = vmatpush1.msra.mxu0 0.0
  %3307 = vmatprep.subr.mxu0 0.0
  %3308 = vmatpush1.msra.mxu0 0.0
  %3309 = vmatprep.subr.mxu0 0.0
  %3310 = vmatpush1.msra.mxu0 0.0
  %3311 = vmatprep.subr.mxu0 0.0
  %3312 = vmatpush1.msra.mxu0 0.0
  %3313 = vmatprep.subr.mxu0 0.0
  %3314 = vmatpush1.msra.mxu0 0.0
  %3315 = vmatprep.subr.mxu0 0.0
  %3316 = vmatpush1.msra.mxu0 0.0
  %3317 = vmatprep.subr.mxu0 0.0
  %3318 = vmatpush1.msra.mxu0 0.0
  %3319 = vmatprep.subr.mxu0 0.0
  %3320 = vmatpush1.msra.mxu0 0.0
  %3321 = vmatprep.subr.mxu0 0.0
  %3322 = vmatpush1.msra.mxu0 0.0
  %3323 = vmatprep.subr.mxu0 0.0
  %3324 = vmatpush1.msra.mxu0 0.0
  %3325 = vmatprep.subr.mxu0 0.0
  %3326 = vmatpush1.msra.mxu0 0.0
  %3327 = vmatprep.subr.mxu0 0.0
  %3328 = vmatpush1.msra.mxu0 0.0
  %3329 = vmatprep.subr.mxu0 0.0
  %3330 = vmatpush1.msra.mxu0 0.0
  %3331 = vmatprep.subr.mxu0 0.0
  %3332 = vmatpush1.msra.mxu0 0.0
  %3333 = vmatprep.subr.mxu0 0.0
  %3334 = vmatpush1.msra.mxu0 0.0
  %3335 = vmatprep.mubr.f32.mxu0 0.0
  %3336 = vmatmul.mubr.f32.gmra.mrb[0].mxu0 %v3255
  %v3337 = vpop.f32.mrb[0].mxu0
  %v3338 = vadd.f32 0.0, %v3337
  %v3339 = vpop.f32.mrb[0].mxu0
  %3340 = vmatprep.mubr.f32.mxu0 0.0
  %3341 = vmatmul.mubr.f32.gmra.mrb[0].mxu0 %v3256
  %v3342 = vpop.f32.mrb[0].mxu0
  %v3343 = vadd.f32 0.0, %v3342
  %v3344 = vpop.f32.mrb[0].mxu0
  %3345 = vmatprep.mubr.f32.mxu0 0.0
  %3346 = vmatmul.mubr.f32.gmra.mrb[0].mxu0 %v3257
  %v3347 = vpop.f32.mrb[0].mxu0
  %v3348 = vadd.f32 0.0, %v3347
  %v3349 = vpop.f32.mrb[0].mxu0
  %3350 = vmatprep.mubr.f32.mxu0 0.0
  %3351 = vmatmul.mubr.f32.gmra.mrb[0].mxu0 %v3258
  %v3352 = vpop.f32.mrb[0].mxu0
  %v3353 = vadd.f32 0.0, %v3352
  %v3354 = vpop.f32.mrb[0].mxu0
  %3355 = vmatprep.mubr.f32.mxu0 0.0
  %3356 = vmatmul.mubr.f32.gmra.mrb[0].mxu0 %v3259
  %v3357 = vpop.f32.mrb[0].mxu0
  %v3358 = vadd.f32 0.0, %v3357
  %v3359 = vpop.f32.mrb[0].mxu0
  %3360 = vmatprep.mubr.f32.mxu0 0.0
  %3361 = vmatmul.mubr.f32.gmra.mrb[0].mxu0 %v3260
  %v3362 = vpop.f32.mrb[0].mxu0
  %v3363 = vadd.f32 0.0, %v3362
  %v3364 = vpop.f32.mrb[0].mxu0
  %3365 = vmatprep.mubr.f32.mxu0 0.0
  %3366 = vmatmul.mubr.f32.gmra.mrb[0].mxu0 %v3261
  %v3367 = vpop.f32.mrb[0].mxu0
  %v3368 = vadd.f32 0.0, %v3367
  %v3369 = vpop.f32.mrb[0].mxu0
  %3370 = vmatprep.mubr.f32.mxu0 0.0
  %3371 = vmatmul.mubr.f32.gmra.mrb[0].mxu0 %v3262
  %v3372 = vpop.f32.mrb[0].mxu0
  %v3373 = vadd.f32 0.0, %v3372
  %v3374 = vpop.f32.mrb[0].mxu0
  %3375 = vmatprep.mubr.f32.mxu0 0.0
  %3376 = vmatmul.mubr.f32.gmra.mrb[0].mxu0 %v3263
  %v3377 = vpop.f32.mrb[0].mxu0
  %v3378 = vadd.f32 0.0, %v3377
  %v3379 = vpop.f32.mrb[0].mxu0
  %3380 = vmatprep.mubr.f32.mxu0 0.0
  %3381 = vmatmul.mubr.f32.gmra.mrb[0].mxu0 %v3264
  %v3382 = vpop.f32.mrb[0].mxu0
  %v3383 = vadd.f32 0.0, %v3382
  %v3384 = vpop.f32.mrb[0].mxu0
  %3385 = vmatprep.mubr.f32.mxu0 0.0
  %3386 = vmatmul.mubr.f32.gmra.mrb[0].mxu0 %v3265
  %v3387 = vpop.f32.mrb[0].mxu0
  %v3388 = vadd.f32 0.0, %v3387
  %v3389 = vpop.f32.mrb[0].mxu0
  %3390 = vmatprep.mubr.f32.mxu0 0.0
  %3391 = vmatmul.mubr.f32.gmra.mrb[0].mxu0 %v3266
  %v3392 = vpop.f32.mrb[0].mxu0
  %v3393 = vadd.f32 0.0, %v3392
  %v3394 = vpop.f32.mrb[0].mxu0
  %3395 = vmatprep.mubr.f32.mxu0 0.0
  %3396 = vmatmul.mubr.f32.gmra.mrb[0].mxu0 %v3267
  %v3397 = vpop.f32.mrb[0].mxu0
  %v3398 = vadd.f32 0.0, %v3397
  %v3399 = vpop.f32.mrb[0].mxu0
  %3400 = vmatprep.mubr.f32.mxu0 0.0
  %3401 = vmatmul.mubr.f32.gmra.mrb[0].mxu0 %v3268
  %v3402 = vpop.f32.mrb[0].mxu0
  %v3403 = vadd.f32 0.0, %v3402
  %v3404 = vpop.f32.mrb[0].mxu0
  %3405 = vmatprep.mubr.f32.mxu0 0.0
  %3406 = vmatmul.mubr.f32.gmra.mrb[0].mxu0 %v3269
  %v3407 = vpop.f32.mrb[0].mxu0
  %v3408 = vadd.f32 0.0, %v3407
  %v3409 = vpop.f32.mrb[0].mxu0
  %3410 = vmatprep.mubr.f32.mxu0 0.0
  %3411 = vmatmul.mubr.f32.gmra.mrb[0].mxu0 %v3270
  %v3412 = vpop.f32.mrb[0].mxu0
  %v3413 = vadd.f32 0.0, %v3412
  %v3414 = vpop.f32.mrb[0].mxu0
  %3415 = vdwg.mxu0
  %v3416 = vrcp.pop %v3338
  %v3417 = vmul.f32 1.0, %v3416
  %v3418 = vrcp.pop %v3343
  %v3419 = vmul.f32 1.0, %v3418
  %v3420 = vrcp.pop %v3348
  %v3421 = vmul.f32 1.0, %v3420
  %v3422 = vrcp.pop %v3353
  %v3423 = vmul.f32 1.0, %v3422
  %v3424 = vrcp.pop %v3358
  %v3425 = vmul.f32 1.0, %v3424
  %v3426 = vrcp.pop %v3363
  %v3427 = vmul.f32 1.0, %v3426
  %v3428 = vrcp.pop %v3368
  %v3429 = vmul.f32 1.0, %v3428
  %v3430 = vrcp.pop %v3373
  %v3431 = vmul.f32 1.0, %v3430
  %v3432 = vrcp.pop %v3378
  %v3433 = vmul.f32 1.0, %v3432
  %v3434 = vrcp.pop %v3383
  %v3435 = vmul.f32 1.0, %v3434
  %v3436 = vrcp.pop %v3388
  %v3437 = vmul.f32 1.0, %v3436
  %v3438 = vrcp.pop %v3393
  %v3439 = vmul.f32 1.0, %v3438
  %v3440 = vrcp.pop %v3398
  %v3441 = vmul.f32 1.0, %v3440
  %v3442 = vrcp.pop %v3403
  %v3443 = vmul.f32 1.0, %v3442
  %v3444 = vrcp.pop %v3408
  %v3445 = vmul.f32 1.0, %v3444
  %v3446 = vrcp.pop %v3413
  %v3447 = vmul.f32 1.0, %v3446
  %3449 = vset.pattern.permute.xlu0 127
  %3450 = vperm.xlu0 %3449, %v3417
  %v3451 = vpop.permute.xlu0 %3450
  %3454 = vset.pattern.permute.xlu0 127
  %3455 = vperm.xlu0 %3454, %v3419
  %v3456 = vpop.permute.xlu0 %3455
  %3459 = vset.pattern.permute.xlu0 127
  %3460 = vperm.xlu0 %3459, %v3421
  %v3461 = vpop.permute.xlu0 %3460
  %3464 = vset.pattern.permute.xlu0 127
  %3465 = vperm.xlu0 %3464, %v3423
  %v3466 = vpop.permute.xlu0 %3465
  %3469 = vset.pattern.permute.xlu0 127
  %3470 = vperm.xlu0 %3469, %v3425
  %v3471 = vpop.permute.xlu0 %3470
  %3474 = vset.pattern.permute.xlu0 127
  %3475 = vperm.xlu0 %3474, %v3427
  %v3476 = vpop.permute.xlu0 %3475
  %3479 = vset.pattern.permute.xlu0 127
  %3480 = vperm.xlu0 %3479, %v3429
  %v3481 = vpop.permute.xlu0 %3480
  %3484 = vset.pattern.permute.xlu0 127
  %3485 = vperm.xlu0 %3484, %v3431
  %v3486 = vpop.permute.xlu0 %3485
  %3489 = vset.pattern.permute.xlu0 127
  %3490 = vperm.xlu0 %3489, %v3433
  %v3491 = vpop.permute.xlu0 %3490
  %3494 = vset.pattern.permute.xlu0 127
  %3495 = vperm.xlu0 %3494, %v3435
  %v3496 = vpop.permute.xlu0 %3495
  %3499 = vset.pattern.permute.xlu0 127
  %3500 = vperm.xlu0 %3499, %v3437
  %v3501 = vpop.permute.xlu0 %3500
  %3504 = vset.pattern.permute.xlu0 127
  %3505 = vperm.xlu0 %3504, %v3439
  %v3506 = vpop.permute.xlu0 %3505
  %3509 = vset.pattern.permute.xlu0 127
  %3510 = vperm.xlu0 %3509, %v3441
  %v3511 = vpop.permute.xlu0 %3510
  %3514 = vset.pattern.permute.xlu0 127
  %3515 = vperm.xlu0 %3514, %v3443
  %v3516 = vpop.permute.xlu0 %3515
  %3519 = vset.pattern.permute.xlu0 127
  %3520 = vperm.xlu0 %3519, %v3445
  %v3521 = vpop.permute.xlu0 %3520
  %3524 = vset.pattern.permute.xlu0 127
  %3525 = vperm.xlu0 %3524, %v3447
  %v3526 = vpop.permute.xlu0 %3525
  %v3528 = vmul.f32 %v3338, %v3451
  %v3529 = vmul.f32 %v3343, %v3456
  %v3530 = vmul.f32 %v3348, %v3461
  %v3531 = vmul.f32 %v3353, %v3466
  %v3532 = vmul.f32 %v3358, %v3471
  %v3533 = vmul.f32 %v3363, %v3476
  %v3534 = vmul.f32 %v3368, %v3481
  %v3535 = vmul.f32 %v3373, %v3486
  %v3536 = vmul.f32 %v3378, %v3491
  %v3537 = vmul.f32 %v3383, %v3496
  %v3538 = vmul.f32 %v3388, %v3501
  %v3539 = vmul.f32 %v3393, %v3506
  %v3540 = vmul.f32 %v3398, %v3511
  %v3541 = vmul.f32 %v3403, %v3516
  %v3542 = vmul.f32 %v3408, %v3521
  %v3543 = vmul.f32 %v3413, %v3526
  %v3544 = vadd.f32 %v3528, %v2861
  %v3545 = vadd.f32 %v3529, %v2861
  %v3546 = vadd.f32 %v3530, %v2861
  %v3547 = vadd.f32 %v3531, %v2861
  %v3548 = vadd.f32 %v3532, %v2861
  %v3549 = vadd.f32 %v3533, %v2861
  %v3550 = vadd.f32 %v3534, %v2861
  %v3551 = vadd.f32 %v3535, %v2861
  %v3552 = vadd.f32 %v3536, %v2861
  %v3553 = vadd.f32 %v3537, %v2861
  %v3554 = vadd.f32 %v3538, %v2861
  %v3555 = vadd.f32 %v3539, %v2861
  %v3556 = vadd.f32 %v3540, %v2861
  %v3557 = vadd.f32 %v3541, %v2861
  %v3558 = vadd.f32 %v3542, %v2861
  %v3559 = vadd.f32 %v3543, %v2861
  %vm3560 = vcmp.gt.f32.partialorder %v3544, 0.0
  %vm3561 = vcmp.gt.f32.partialorder %v3545, 0.0
  %vm3562 = vcmp.gt.f32.partialorder %v3546, 0.0
  %vm3563 = vcmp.gt.f32.partialorder %v3547, 0.0
  %vm3564 = vcmp.gt.f32.partialorder %v3548, 0.0
  %vm3565 = vcmp.gt.f32.partialorder %v3549, 0.0
  %vm3566 = vcmp.gt.f32.partialorder %v3550, 0.0
  %vm3567 = vcmp.gt.f32.partialorder %v3551, 0.0
  %vm3568 = vcmp.gt.f32.partialorder %v3552, 0.0
  %vm3569 = vcmp.gt.f32.partialorder %v3553, 0.0
  %vm3570 = vcmp.gt.f32.partialorder %v3554, 0.0
  %vm3571 = vcmp.gt.f32.partialorder %v3555, 0.0
  %vm3572 = vcmp.gt.f32.partialorder %v3556, 0.0
  %vm3573 = vcmp.gt.f32.partialorder %v3557, 0.0
  %vm3574 = vcmp.gt.f32.partialorder %v3558, 0.0
  %vm3575 = vcmp.gt.f32.partialorder %v3559, 0.0
  %v3576 = vmul.f32 %v3544, 1.442695
  %v3577 = vpow.pop %v3576
  %v3578 = vmul.f32 %v3545, 1.442695
  %v3579 = vpow.pop %v3578
  %v3580 = vmul.f32 %v3546, 1.442695
  %v3581 = vpow.pop %v3580
  %v3582 = vmul.f32 %v3547, 1.442695
  %v3583 = vpow.pop %v3582
  %v3584 = vmul.f32 %v3548, 1.442695
  %v3585 = vpow.pop %v3584
  %v3586 = vmul.f32 %v3549, 1.442695
  %v3587 = vpow.pop %v3586
  %v3588 = vmul.f32 %v3550, 1.442695
  %v3589 = vpow.pop %v3588
  %v3590 = vmul.f32 %v3551, 1.442695
  %v3591 = vpow.pop %v3590
  %v3592 = vmul.f32 %v3552, 1.442695
  %v3593 = vpow.pop %v3592
  %v3594 = vmul.f32 %v3553, 1.442695
  %v3595 = vpow.pop %v3594
  %v3596 = vmul.f32 %v3554, 1.442695
  %v3597 = vpow.pop %v3596
  %v3598 = vmul.f32 %v3555, 1.442695
  %v3599 = vpow.pop %v3598
  %v3600 = vmul.f32 %v3556, 1.442695
  %v3601 = vpow.pop %v3600
  %v3602 = vmul.f32 %v3557, 1.442695
  %v3603 = vpow.pop %v3602
  %v3604 = vmul.f32 %v3558, 1.442695
  %v3605 = vpow.pop %v3604
  %v3606 = vmul.f32 %v3559, 1.442695
  %v3607 = vpow.pop %v3606
  %v3608 = vsub.f32 %v3577, 1.0
  %v3609 = vsub.f32 %v3579, 1.0
  %v3610 = vsub.f32 %v3581, 1.0
  %v3611 = vsub.f32 %v3583, 1.0
  %v3612 = vsub.f32 %v3585, 1.0
  %v3613 = vsub.f32 %v3587, 1.0
  %v3614 = vsub.f32 %v3589, 1.0
  %v3615 = vsub.f32 %v3591, 1.0
  %v3616 = vsub.f32 %v3593, 1.0
  %v3617 = vsub.f32 %v3595, 1.0
  %v3618 = vsub.f32 %v3597, 1.0
  %v3619 = vsub.f32 %v3599, 1.0
  %v3620 = vsub.f32 %v3601, 1.0
  %v3621 = vsub.f32 %v3603, 1.0
  %v3622 = vsub.f32 %v3605, 1.0
  %v3623 = vsub.f32 %v3607, 1.0
  %v3624 = vsel %vm3560, %v3544, %v3608
  %v3625 = vsel %vm3561, %v3545, %v3609
  %v3626 = vsel %vm3562, %v3546, %v3610
  %v3627 = vsel %vm3563, %v3547, %v3611
  %v3628 = vsel %vm3564, %v3548, %v3612
  %v3629 = vsel %vm3565, %v3549, %v3613
  %v3630 = vsel %vm3566, %v3550, %v3614
  %v3631 = vsel %vm3567, %v3551, %v3615
  %v3632 = vsel %vm3568, %v3552, %v3616
  %v3633 = vsel %vm3569, %v3553, %v3617
  %v3634 = vsel %vm3570, %v3554, %v3618
  %v3635 = vsel %vm3571, %v3555, %v3619
  %v3636 = vsel %vm3572, %v3556, %v3620
  %v3637 = vsel %vm3573, %v3557, %v3621
  %v3638 = vsel %vm3574, %v3558, %v3622
  %v3639 = vsel %vm3575, %v3559, %v3623
  %vm3640 = vcmask 64512
  %v3641 = vsel %vm3640, %v2943, %v3624
  %v3642 = vsel %vm3640, %v2944, %v3625
  %v3643 = vsel %vm3640, %v2945, %v3626
  %v3644 = vsel %vm3640, %v2946, %v3627
  %v3645 = vsel %vm3640, %v2947, %v3628
  %v3646 = vsel %vm3640, %v2948, %v3629
  %v3647 = vsel %vm3640, %v2949, %v3630
  %v3648 = vsel %vm3640, %v2950, %v3631
  %v3649 = vsel %vm3640, %v2951, %v3632
  %v3650 = vsel %vm3640, %v2952, %v3633
  %v3651 = vsel %vm3640, %v2953, %v3634
  %v3652 = vsel %vm3640, %v2954, %v3635
  %v3653 = vsel %vm3640, %v2955, %v3636
  %v3654 = vsel %vm3640, %v2956, %v3637
  %v3655 = vsel %vm3640, %v2957, %v3638
  %v3656 = vsel %vm3640, %v2958, %v3639
  %v3657 = vsel %vm1848, %v3641, 0.0
  %v3658 = vsel %vm1848, %v3642, 0.0
  %v3659 = vsel %vm1848, %v3643, 0.0
  %v3660 = vsel %vm1848, %v3644, 0.0
  %v3661 = vsel %vm1848, %v3645, 0.0
  %v3662 = vsel %vm1848, %v3646, 0.0
  %v3663 = vsel %vm1848, %v3647, 0.0
  %v3664 = vsel %vm1848, %v3648, 0.0
  %v3665 = vsel %vm1848, %v3649, 0.0
  %v3666 = vsel %vm1848, %v3650, 0.0
  %v3667 = vsel %vm1848, %v3651, 0.0
  %v3668 = vsel %vm1848, %v3652, 0.0
  %v3669 = vsel %vm1848, %v3653, 0.0
  %v3670 = vsel %vm1848, %v3654, 0.0
  %v3671 = vsel %vm1848, %v3655, 0.0
  %v3672 = vsel %vm1848, %v3656, 0.0
  %v3673 = vld [vmem:[%s8] sm:$0xff]
  %v3674 = vld [vmem:[%s8 + $0x8] sm:$0xff]
  %v3675 = vld [vmem:[%s8 + $0x10] sm:$0xff]
  %v3676 = vld [vmem:[%s8 + $0x18] sm:$0xff]
  %v3677 = vld [vmem:[%s8 + $0x20] sm:$0xff]
  %v3678 = vld [vmem:[%s8 + $0x28] sm:$0xff]
  %v3679 = vld [vmem:[%s8 + $0x30] sm:$0xff]
  %v3680 = vld [vmem:[%s8 + $0x38] sm:$0xff]
  %v3681 = vld [vmem:[%s8 + $0x40] sm:$0xff]
  %v3682 = vld [vmem:[%s8 + $0x48] sm:$0xff]
  %v3683 = vld [vmem:[%s8 + $0x50] sm:$0xff]
  %v3684 = vld [vmem:[%s8 + $0x58] sm:$0xff]
  %v3685 = vld [vmem:[%s8 + $0x60] sm:$0xff]
  %v3686 = vld [vmem:[%s8 + $0x68] sm:$0xff]
  %v3687 = vld [vmem:[%s8 + $0x70] sm:$0xff]
  %v3688 = vld [vmem:[%s8 + $0x78] sm:$0xff]
  %3689 = vmatprep.subr.mxu0 0.0
  %3690 = vmatpush1.msra.mxu0 %v3673
  %3691 = vmatprep.subr.mxu0 0.0
  %3692 = vmatpush1.msra.mxu0 %v3674
  %3693 = vmatprep.subr.mxu0 0.0
  %3694 = vmatpush1.msra.mxu0 %v3675
  %3695 = vmatprep.subr.mxu0 0.0
  %3696 = vmatpush1.msra.mxu0 %v3676
  %3697 = vmatprep.subr.mxu0 0.0
  %3698 = vmatpush1.msra.mxu0 %v3677
  %3699 = vmatprep.subr.mxu0 0.0
  %3700 = vmatpush1.msra.mxu0 %v3678
  %3701 = vmatprep.subr.mxu0 0.0
  %3702 = vmatpush1.msra.mxu0 %v3679
  %3703 = vmatprep.subr.mxu0 0.0
  %3704 = vmatpush1.msra.mxu0 %v3680
  %3705 = vmatprep.subr.mxu0 0.0
  %3706 = vmatpush1.msra.mxu0 %v3681
  %3707 = vmatprep.subr.mxu0 0.0
  %3708 = vmatpush1.msra.mxu0 %v3682
  %3709 = vmatprep.subr.mxu0 0.0
  %3710 = vmatpush1.msra.mxu0 %v3683
  %3711 = vmatprep.subr.mxu0 0.0
  %3712 = vmatpush1.msra.mxu0 %v3684
  %3713 = vmatprep.subr.mxu0 0.0
  %3714 = vmatpush1.msra.mxu0 %v3685
  %3715 = vmatprep.subr.mxu0 0.0
  %3716 = vmatpush1.msra.mxu0 %v3686
  %3717 = vmatprep.subr.mxu0 0.0
  %3718 = vmatpush1.msra.mxu0 %v3687
  %3719 = vmatprep.subr.mxu0 0.0
  %3720 = vmatpush1.msra.mxu0 %v3688
  %3721 = vmatprep.subr.mxu0 0.0
  %3722 = vmatpush1.msra.mxu0 0.0
  %3723 = vmatprep.subr.mxu0 0.0
  %3724 = vmatpush1.msra.mxu0 0.0
  %3725 = vmatprep.subr.mxu0 0.0
  %3726 = vmatpush1.msra.mxu0 0.0
  %3727 = vmatprep.subr.mxu0 0.0
  %3728 = vmatpush1.msra.mxu0 0.0
  %3729 = vmatprep.subr.mxu0 0.0
  %3730 = vmatpush1.msra.mxu0 0.0
  %3731 = vmatprep.subr.mxu0 0.0
  %3732 = vmatpush1.msra.mxu0 0.0
  %3733 = vmatprep.subr.mxu0 0.0
  %3734 = vmatpush1.msra.mxu0 0.0
  %3735 = vmatprep.subr.mxu0 0.0
  %3736 = vmatpush1.msra.mxu0 0.0
  %3737 = vmatprep.subr.mxu0 0.0
  %3738 = vmatpush1.msra.mxu0 0.0
  %3739 = vmatprep.subr.mxu0 0.0
  %3740 = vmatpush1.msra.mxu0 0.0
  %3741 = vmatprep.subr.mxu0 0.0
  %3742 = vmatpush1.msra.mxu0 0.0
  %3743 = vmatprep.subr.mxu0 0.0
  %3744 = vmatpush1.msra.mxu0 0.0
  %3745 = vmatprep.subr.mxu0 0.0
  %3746 = vmatpush1.msra.mxu0 0.0
  %3747 = vmatprep.subr.mxu0 0.0
  %3748 = vmatpush1.msra.mxu0 0.0
  %3749 = vmatprep.subr.mxu0 0.0
  %3750 = vmatpush1.msra.mxu0 0.0
  %3751 = vmatprep.subr.mxu0 0.0
  %3752 = vmatpush1.msra.mxu0 0.0
  %3753 = vmatprep.mubr.f32.mxu0 0.0
  %3754 = vmatmul.mubr.f32.gmra.mrb[0].mxu0 %v3657
  %v3755 = vpop.f32.mrb[0].mxu0
  %v3756 = vadd.f32 0.0, %v3755
  %v3757 = vpop.f32.mrb[0].mxu0
  %3758 = vmatprep.mubr.f32.mxu0 0.0
  %3759 = vmatmul.mubr.f32.gmra.mrb[0].mxu0 %v3658
  %v3760 = vpop.f32.mrb[0].mxu0
  %v3761 = vadd.f32 0.0, %v3760
  %v3762 = vpop.f32.mrb[0].mxu0
  %3763 = vmatprep.mubr.f32.mxu0 0.0
  %3764 = vmatmul.mubr.f32.gmra.mrb[0].mxu0 %v3659
  %v3765 = vpop.f32.mrb[0].mxu0
  %v3766 = vadd.f32 0.0, %v3765
  %v3767 = vpop.f32.mrb[0].mxu0
  %3768 = vmatprep.mubr.f32.mxu0 0.0
  %3769 = vmatmul.mubr.f32.gmra.mrb[0].mxu0 %v3660
  %v3770 = vpop.f32.mrb[0].mxu0
  %v3771 = vadd.f32 0.0, %v3770
  %v3772 = vpop.f32.mrb[0].mxu0
  %3773 = vmatprep.mubr.f32.mxu0 0.0
  %3774 = vmatmul.mubr.f32.gmra.mrb[0].mxu0 %v3661
  %v3775 = vpop.f32.mrb[0].mxu0
  %v3776 = vadd.f32 0.0, %v3775
  %v3777 = vpop.f32.mrb[0].mxu0
  %3778 = vmatprep.mubr.f32.mxu0 0.0
  %3779 = vmatmul.mubr.f32.gmra.mrb[0].mxu0 %v3662
  %v3780 = vpop.f32.mrb[0].mxu0
  %v3781 = vadd.f32 0.0, %v3780
  %v3782 = vpop.f32.mrb[0].mxu0
  %3783 = vmatprep.mubr.f32.mxu0 0.0
  %3784 = vmatmul.mubr.f32.gmra.mrb[0].mxu0 %v3663
  %v3785 = vpop.f32.mrb[0].mxu0
  %v3786 = vadd.f32 0.0, %v3785
  %v3787 = vpop.f32.mrb[0].mxu0
  %3788 = vmatprep.mubr.f32.mxu0 0.0
  %3789 = vmatmul.mubr.f32.gmra.mrb[0].mxu0 %v3664
  %v3790 = vpop.f32.mrb[0].mxu0
  %v3791 = vadd.f32 0.0, %v3790
  %v3792 = vpop.f32.mrb[0].mxu0
  %3793 = vmatprep.mubr.f32.mxu0 0.0
  %3794 = vmatmul.mubr.f32.gmra.mrb[0].mxu0 %v3665
  %v3795 = vpop.f32.mrb[0].mxu0
  %v3796 = vadd.f32 0.0, %v3795
  %v3797 = vpop.f32.mrb[0].mxu0
  %3798 = vmatprep.mubr.f32.mxu0 0.0
  %3799 = vmatmul.mubr.f32.gmra.mrb[0].mxu0 %v3666
  %v3800 = vpop.f32.mrb[0].mxu0
  %v3801 = vadd.f32 0.0, %v3800
  %v3802 = vpop.f32.mrb[0].mxu0
  %3803 = vmatprep.mubr.f32.mxu0 0.0
  %3804 = vmatmul.mubr.f32.gmra.mrb[0].mxu0 %v3667
  %v3805 = vpop.f32.mrb[0].mxu0
  %v3806 = vadd.f32 0.0, %v3805
  %v3807 = vpop.f32.mrb[0].mxu0
  %3808 = vmatprep.mubr.f32.mxu0 0.0
  %3809 = vmatmul.mubr.f32.gmra.mrb[0].mxu0 %v3668
  %v3810 = vpop.f32.mrb[0].mxu0
  %v3811 = vadd.f32 0.0, %v3810
  %v3812 = vpop.f32.mrb[0].mxu0
  %3813 = vmatprep.mubr.f32.mxu0 0.0
  %3814 = vmatmul.mubr.f32.gmra.mrb[0].mxu0 %v3669
  %v3815 = vpop.f32.mrb[0].mxu0
  %v3816 = vadd.f32 0.0, %v3815
  %v3817 = vpop.f32.mrb[0].mxu0
  %3818 = vmatprep.mubr.f32.mxu0 0.0
  %3819 = vmatmul.mubr.f32.gmra.mrb[0].mxu0 %v3670
  %v3820 = vpop.f32.mrb[0].mxu0
  %v3821 = vadd.f32 0.0, %v3820
  %v3822 = vpop.f32.mrb[0].mxu0
  %3823 = vmatprep.mubr.f32.mxu0 0.0
  %3824 = vmatmul.mubr.f32.gmra.mrb[0].mxu0 %v3671
  %v3825 = vpop.f32.mrb[0].mxu0
  %v3826 = vadd.f32 0.0, %v3825
  %v3827 = vpop.f32.mrb[0].mxu0
  %3828 = vmatprep.mubr.f32.mxu0 0.0
  %3829 = vmatmul.mubr.f32.gmra.mrb[0].mxu0 %v3672
  %v3830 = vpop.f32.mrb[0].mxu0
  %v3831 = vadd.f32 0.0, %v3830
  %v3832 = vpop.f32.mrb[0].mxu0
  %3833 = vdwg.mxu0
  %v3834 = vsel %vm233, 1.0, %v3756
  %v3835 = vsel %vm233, 1.0, %v3761
  %v3836 = vsel %vm233, 1.0, %v3766
  %v3837 = vsel %vm233, 1.0, %v3771
  %v3838 = vsel %vm233, 1.0, %v3776
  %v3839 = vsel %vm233, 1.0, %v3781
  %v3840 = vsel %vm233, 1.0, %v3786
  %v3841 = vsel %vm233, 1.0, %v3791
  %v3842 = vsel %vm233, 1.0, %v3796
  %v3843 = vsel %vm233, 1.0, %v3801
  %v3844 = vsel %vm233, 1.0, %v3806
  %v3845 = vsel %vm233, 1.0, %v3811
  %v3846 = vsel %vm233, 1.0, %v3816
  %v3847 = vsel %vm233, 1.0, %v3821
  %v3848 = vsel %vm233, 1.0, %v3826
  %v3849 = vsel %vm233, 1.0, %v3831
  %v3850 = vld [vmem:[%s9] sm:$0xff]
  %v3851 = vld [vmem:[%s9 + $0x8] sm:$0xff]
  %v3852 = vld [vmem:[%s9 + $0x10] sm:$0xff]
  %v3853 = vld [vmem:[%s9 + $0x18] sm:$0xff]
  %v3854 = vld [vmem:[%s9 + $0x20] sm:$0xff]
  %v3855 = vld [vmem:[%s9 + $0x28] sm:$0xff]
  %v3856 = vld [vmem:[%s9 + $0x30] sm:$0xff]
  %v3857 = vld [vmem:[%s9 + $0x38] sm:$0xff]
  %v3858 = vld [vmem:[%s9 + $0x40] sm:$0xff]
  %v3859 = vld [vmem:[%s9 + $0x48] sm:$0xff]
  %v3860 = vld [vmem:[%s9 + $0x50] sm:$0xff]
  %v3861 = vld [vmem:[%s9 + $0x58] sm:$0xff]
  %v3862 = vld [vmem:[%s9 + $0x60] sm:$0xff]
  %v3863 = vld [vmem:[%s9 + $0x68] sm:$0xff]
  %v3864 = vld [vmem:[%s9 + $0x70] sm:$0xff]
  %v3865 = vld [vmem:[%s9 + $0x78] sm:$0xff]
  %3866 = vmatprep.subr.mxu0 0.0
  %3867 = vmatpush1.msra.mxu0 %v3850
  %3868 = vmatprep.subr.mxu0 0.0
  %3869 = vmatpush1.msra.mxu0 %v3851
  %3870 = vmatprep.subr.mxu0 0.0
  %3871 = vmatpush1.msra.mxu0 %v3852
  %3872 = vmatprep.subr.mxu0 0.0
  %3873 = vmatpush1.msra.mxu0 %v3853
  %3874 = vmatprep.subr.mxu0 0.0
  %3875 = vmatpush1.msra.mxu0 %v3854
  %3876 = vmatprep.subr.mxu0 0.0
  %3877 = vmatpush1.msra.mxu0 %v3855
  %3878 = vmatprep.subr.mxu0 0.0
  %3879 = vmatpush1.msra.mxu0 %v3856
  %3880 = vmatprep.subr.mxu0 0.0
  %3881 = vmatpush1.msra.mxu0 %v3857
  %3882 = vmatprep.subr.mxu0 0.0
  %3883 = vmatpush1.msra.mxu0 %v3858
  %3884 = vmatprep.subr.mxu0 0.0
  %3885 = vmatpush1.msra.mxu0 %v3859
  %3886 = vmatprep.subr.mxu0 0.0
  %3887 = vmatpush1.msra.mxu0 %v3860
  %3888 = vmatprep.subr.mxu0 0.0
  %3889 = vmatpush1.msra.mxu0 %v3861
  %3890 = vmatprep.subr.mxu0 0.0
  %3891 = vmatpush1.msra.mxu0 %v3862
  %3892 = vmatprep.subr.mxu0 0.0
  %3893 = vmatpush1.msra.mxu0 %v3863
  %3894 = vmatprep.subr.mxu0 0.0
  %3895 = vmatpush1.msra.mxu0 %v3864
  %3896 = vmatprep.subr.mxu0 0.0
  %3897 = vmatpush1.msra.mxu0 %v3865
  %3898 = vmatprep.subr.mxu0 0.0
  %3899 = vmatpush1.msra.mxu0 0.0
  %3900 = vmatprep.subr.mxu0 0.0
  %3901 = vmatpush1.msra.mxu0 0.0
  %3902 = vmatprep.subr.mxu0 0.0
  %3903 = vmatpush1.msra.mxu0 0.0
  %3904 = vmatprep.subr.mxu0 0.0
  %3905 = vmatpush1.msra.mxu0 0.0
  %3906 = vmatprep.subr.mxu0 0.0
  %3907 = vmatpush1.msra.mxu0 0.0
  %3908 = vmatprep.subr.mxu0 0.0
  %3909 = vmatpush1.msra.mxu0 0.0
  %3910 = vmatprep.subr.mxu0 0.0
  %3911 = vmatpush1.msra.mxu0 0.0
  %3912 = vmatprep.subr.mxu0 0.0
  %3913 = vmatpush1.msra.mxu0 0.0
  %3914 = vmatprep.subr.mxu0 0.0
  %3915 = vmatpush1.msra.mxu0 0.0
  %3916 = vmatprep.subr.mxu0 0.0
  %3917 = vmatpush1.msra.mxu0 0.0
  %3918 = vmatprep.subr.mxu0 0.0
  %3919 = vmatpush1.msra.mxu0 0.0
  %3920 = vmatprep.subr.mxu0 0.0
  %3921 = vmatpush1.msra.mxu0 0.0
  %3922 = vmatprep.subr.mxu0 0.0
  %3923 = vmatpush1.msra.mxu0 0.0
  %3924 = vmatprep.subr.mxu0 0.0
  %3925 = vmatpush1.msra.mxu0 0.0
  %3926 = vmatprep.subr.mxu0 0.0
  %3927 = vmatpush1.msra.mxu0 0.0
  %3928 = vmatprep.subr.mxu0 0.0
  %3929 = vmatpush1.msra.mxu0 0.0
  %3930 = vmatprep.mubr.f32.mxu0 0.0
  %3931 = vmatmul.mubr.f32.gmra.mrb[0].mxu0 %v3756
  %v3932 = vpop.f32.mrb[0].mxu0
  %v3933 = vadd.f32 0.0, %v3932
  %v3934 = vpop.f32.mrb[0].mxu0
  %3935 = vmatprep.mubr.f32.mxu0 0.0
  %3936 = vmatmul.mubr.f32.gmra.mrb[0].mxu0 %v3761
  %v3937 = vpop.f32.mrb[0].mxu0
  %v3938 = vadd.f32 0.0, %v3937
  %v3939 = vpop.f32.mrb[0].mxu0
  %3940 = vmatprep.mubr.f32.mxu0 0.0
  %3941 = vmatmul.mubr.f32.gmra.mrb[0].mxu0 %v3766
  %v3942 = vpop.f32.mrb[0].mxu0
  %v3943 = vadd.f32 0.0, %v3942
  %v3944 = vpop.f32.mrb[0].mxu0
  %3945 = vmatprep.mubr.f32.mxu0 0.0
  %3946 = vmatmul.mubr.f32.gmra.mrb[0].mxu0 %v3771
  %v3947 = vpop.f32.mrb[0].mxu0
  %v3948 = vadd.f32 0.0, %v3947
  %v3949 = vpop.f32.mrb[0].mxu0
  %3950 = vmatprep.mubr.f32.mxu0 0.0
  %3951 = vmatmul.mubr.f32.gmra.mrb[0].mxu0 %v3776
  %v3952 = vpop.f32.mrb[0].mxu0
  %v3953 = vadd.f32 0.0, %v3952
  %v3954 = vpop.f32.mrb[0].mxu0
  %3955 = vmatprep.mubr.f32.mxu0 0.0
  %3956 = vmatmul.mubr.f32.gmra.mrb[0].mxu0 %v3781
  %v3957 = vpop.f32.mrb[0].mxu0
  %v3958 = vadd.f32 0.0, %v3957
  %v3959 = vpop.f32.mrb[0].mxu0
  %3960 = vmatprep.mubr.f32.mxu0 0.0
  %3961 = vmatmul.mubr.f32.gmra.mrb[0].mxu0 %v3786
  %v3962 = vpop.f32.mrb[0].mxu0
  %v3963 = vadd.f32 0.0, %v3962
  %v3964 = vpop.f32.mrb[0].mxu0
  %3965 = vmatprep.mubr.f32.mxu0 0.0
  %3966 = vmatmul.mubr.f32.gmra.mrb[0].mxu0 %v3791
  %v3967 = vpop.f32.mrb[0].mxu0
  %v3968 = vadd.f32 0.0, %v3967
  %v3969 = vpop.f32.mrb[0].mxu0
  %3970 = vmatprep.mubr.f32.mxu0 0.0
  %3971 = vmatmul.mubr.f32.gmra.mrb[0].mxu0 %v3796
  %v3972 = vpop.f32.mrb[0].mxu0
  %v3973 = vadd.f32 0.0, %v3972
  %v3974 = vpop.f32.mrb[0].mxu0
  %3975 = vmatprep.mubr.f32.mxu0 0.0
  %3976 = vmatmul.mubr.f32.gmra.mrb[0].mxu0 %v3801
  %v3977 = vpop.f32.mrb[0].mxu0
  %v3978 = vadd.f32 0.0, %v3977
  %v3979 = vpop.f32.mrb[0].mxu0
  %3980 = vmatprep.mubr.f32.mxu0 0.0
  %3981 = vmatmul.mubr.f32.gmra.mrb[0].mxu0 %v3806
  %v3982 = vpop.f32.mrb[0].mxu0
  %v3983 = vadd.f32 0.0, %v3982
  %v3984 = vpop.f32.mrb[0].mxu0
  %3985 = vmatprep.mubr.f32.mxu0 0.0
  %3986 = vmatmul.mubr.f32.gmra.mrb[0].mxu0 %v3811
  %v3987 = vpop.f32.mrb[0].mxu0
  %v3988 = vadd.f32 0.0, %v3987
  %v3989 = vpop.f32.mrb[0].mxu0
  %3990 = vmatprep.mubr.f32.mxu0 0.0
  %3991 = vmatmul.mubr.f32.gmra.mrb[0].mxu0 %v3816
  %v3992 = vpop.f32.mrb[0].mxu0
  %v3993 = vadd.f32 0.0, %v3992
  %v3994 = vpop.f32.mrb[0].mxu0
  %3995 = vmatprep.mubr.f32.mxu0 0.0
  %3996 = vmatmul.mubr.f32.gmra.mrb[0].mxu0 %v3821
  %v3997 = vpop.f32.mrb[0].mxu0
  %v3998 = vadd.f32 0.0, %v3997
  %v3999 = vpop.f32.mrb[0].mxu0
  %4000 = vmatprep.mubr.f32.mxu0 0.0
  %4001 = vmatmul.mubr.f32.gmra.mrb[0].mxu0 %v3826
  %v4002 = vpop.f32.mrb[0].mxu0
  %v4003 = vadd.f32 0.0, %v4002
  %v4004 = vpop.f32.mrb[0].mxu0
  %4005 = vmatprep.mubr.f32.mxu0 0.0
  %4006 = vmatmul.mubr.f32.gmra.mrb[0].mxu0 %v3831
  %v4007 = vpop.f32.mrb[0].mxu0
  %v4008 = vadd.f32 0.0, %v4007
  %v4009 = vpop.f32.mrb[0].mxu0
  %4010 = vdwg.mxu0
  %4011 = vxpose.xlu0.b32.start [1/16] %v3933, 128
  %4012 = vxpose.xlu0.b32.cont [2/16] %v3938, 128
  %4013 = vxpose.xlu0.b32.cont [3/16] %v3943, 128
  %4014 = vxpose.xlu0.b32.cont [4/16] %v3948, 128
  %4015 = vxpose.xlu0.b32.cont [5/16] %v3953, 128
  %4016 = vxpose.xlu0.b32.cont [6/16] %v3958, 128
  %4017 = vxpose.xlu0.b32.cont [7/16] %v3963, 128
  %4018 = vxpose.xlu0.b32.cont [8/16] %v3968, 128
  %4019 = vxpose.xlu0.b32.cont [9/16] %v3973, 128
  %4020 = vxpose.xlu0.b32.cont [10/16] %v3978, 128
  %4021 = vxpose.xlu0.b32.cont [11/16] %v3983, 128
  %4022 = vxpose.xlu0.b32.cont [12/16] %v3988, 128
  %4023 = vxpose.xlu0.b32.cont [13/16] %v3993, 128
  %4024 = vxpose.xlu0.b32.cont [14/16] %v3998, 128
  %4025 = vxpose.xlu0.b32.cont [15/16] %v4003, 128
  %4026 = vxpose.xlu0.b32.end [16/16] %v4008, 128
  %v4027 = vpop.trf.xlu0
  %v4028 = vpop.trf.xlu0
  %v4029 = vpop.trf.xlu0
  %v4030 = vpop.trf.xlu0
  %v4031 = vpop.trf.xlu0
  %v4032 = vpop.trf.xlu0
  %v4033 = vpop.trf.xlu0
  %v4034 = vpop.trf.xlu0
  %v4035 = vpop.trf.xlu0
  %v4036 = vpop.trf.xlu0
  %v4037 = vpop.trf.xlu0
  %v4038 = vpop.trf.xlu0
  %v4039 = vpop.trf.xlu0
  %v4040 = vpop.trf.xlu0
  %v4041 = vpop.trf.xlu0
  %v4042 = vpop.trf.xlu0
  %vm4043 = vcmask 1041409
  %v4044 = vsel %vm4043, %v4027, -inf
  %4045 = vmax.xlane.f32.xlu0 %v4044
  %v4046 = vpop.xlane.xlu0 %4045
  %v4047 = vlaneseq
  %v4048 = vshrl.u32 %v4047, 7
  %v4049 = vsub.s32 1, %v4048
  %v4050 = vrot.slane %v4046, %v4049
  %v4051 = vadd.f32 %v3933, %v4050
  %v4052 = vadd.f32 %v3938, %v4050
  %v4053 = vadd.f32 %v3943, %v4050
  %v4054 = vadd.f32 %v3948, %v4050
  %v4055 = vadd.f32 %v3953, %v4050
  %v4056 = vadd.f32 %v3958, %v4050
  %v4057 = vadd.f32 %v3963, %v4050
  %v4058 = vadd.f32 %v3968, %v4050
  %v4059 = vadd.f32 %v3973, %v4050
  %v4060 = vadd.f32 %v3978, %v4050
  %v4061 = vadd.f32 %v3983, %v4050
  %v4062 = vadd.f32 %v3988, %v4050
  %v4063 = vadd.f32 %v3993, %v4050
  %v4064 = vadd.f32 %v3998, %v4050
  %v4065 = vadd.f32 %v4003, %v4050
  %v4066 = vadd.f32 %v4008, %v4050
  %v4067 = vmul.f32 %v4051, 0.2
  %v4068 = vmul.f32 %v4052, 0.2
  %v4069 = vmul.f32 %v4053, 0.2
  %v4070 = vmul.f32 %v4054, 0.2
  %v4071 = vmul.f32 %v4055, 0.2
  %v4072 = vmul.f32 %v4056, 0.2
  %v4073 = vmul.f32 %v4057, 0.2
  %v4074 = vmul.f32 %v4058, 0.2
  %v4075 = vmul.f32 %v4059, 0.2
  %v4076 = vmul.f32 %v4060, 0.2
  %v4077 = vmul.f32 %v4061, 0.2
  %v4078 = vmul.f32 %v4062, 0.2
  %v4079 = vmul.f32 %v4063, 0.2
  %v4080 = vmul.f32 %v4064, 0.2
  %v4081 = vmul.f32 %v4065, 0.2
  %v4082 = vmul.f32 %v4066, 0.2
  %v4083 = vmax.f32 %v4051, %v4067
  %v4084 = vmax.f32 %v4052, %v4068
  %v4085 = vmax.f32 %v4053, %v4069
  %v4086 = vmax.f32 %v4054, %v4070
  %v4087 = vmax.f32 %v4055, %v4071
  %v4088 = vmax.f32 %v4056, %v4072
  %v4089 = vmax.f32 %v4057, %v4073
  %v4090 = vmax.f32 %v4058, %v4074
  %v4091 = vmax.f32 %v4059, %v4075
  %v4092 = vmax.f32 %v4060, %v4076
  %v4093 = vmax.f32 %v4061, %v4077
  %v4094 = vmax.f32 %v4062, %v4078
  %v4095 = vmax.f32 %v4063, %v4079
  %v4096 = vmax.f32 %v4064, %v4080
  %v4097 = vmax.f32 %v4065, %v4081
  %v4098 = vmax.f32 %v4066, %v4082
  %4100 = vset.pattern.permute.xlu0 0
  %4101 = vperm.xlu0 %4100, %v3933
  %v4102 = vpop.permute.xlu0 %4101
  %4105 = vset.pattern.permute.xlu0 0
  %4106 = vperm.xlu0 %4105, %v3938
  %v4107 = vpop.permute.xlu0 %4106
  %4110 = vset.pattern.permute.xlu0 0
  %4111 = vperm.xlu0 %4110, %v3943
  %v4112 = vpop.permute.xlu0 %4111
  %4115 = vset.pattern.permute.xlu0 0
  %4116 = vperm.xlu0 %4115, %v3948
  %v4117 = vpop.permute.xlu0 %4116
  %4120 = vset.pattern.permute.xlu0 0
  %4121 = vperm.xlu0 %4120, %v3953
  %v4122 = vpop.permute.xlu0 %4121
  %4125 = vset.pattern.permute.xlu0 0
  %4126 = vperm.xlu0 %4125, %v3958
  %v4127 = vpop.permute.xlu0 %4126
  %4130 = vset.pattern.permute.xlu0 0
  %4131 = vperm.xlu0 %4130, %v3963
  %v4132 = vpop.permute.xlu0 %4131
  %4135 = vset.pattern.permute.xlu0 0
  %4136 = vperm.xlu0 %4135, %v3968
  %v4137 = vpop.permute.xlu0 %4136
  %4140 = vset.pattern.permute.xlu0 0
  %4141 = vperm.xlu0 %4140, %v3973
  %v4142 = vpop.permute.xlu0 %4141
  %4145 = vset.pattern.permute.xlu0 0
  %4146 = vperm.xlu0 %4145, %v3978
  %v4147 = vpop.permute.xlu0 %4146
  %4150 = vset.pattern.permute.xlu0 0
  %4151 = vperm.xlu0 %4150, %v3983
  %v4152 = vpop.permute.xlu0 %4151
  %4155 = vset.pattern.permute.xlu0 0
  %4156 = vperm.xlu0 %4155, %v3988
  %v4157 = vpop.permute.xlu0 %4156
  %4160 = vset.pattern.permute.xlu0 0
  %4161 = vperm.xlu0 %4160, %v3993
  %v4162 = vpop.permute.xlu0 %4161
  %4165 = vset.pattern.permute.xlu0 0
  %4166 = vperm.xlu0 %4165, %v3998
  %v4167 = vpop.permute.xlu0 %4166
  %4170 = vset.pattern.permute.xlu0 0
  %4171 = vperm.xlu0 %4170, %v4003
  %v4172 = vpop.permute.xlu0 %4171
  %4175 = vset.pattern.permute.xlu0 0
  %4176 = vperm.xlu0 %4175, %v4008
  %v4177 = vpop.permute.xlu0 %4176
  %v4179 = vlaneseq
  %v4180 = vshrl.u32 %v4179, 7
  %v4181 = vsub.s32 1, %v4180
  %v4182 = vrot.slane %v4027, %v4181
  %v4183 = vadd.f32 %v4102, %v4182
  %v4184 = vadd.f32 %v4107, %v4182
  %v4185 = vadd.f32 %v4112, %v4182
  %v4186 = vadd.f32 %v4117, %v4182
  %v4187 = vadd.f32 %v4122, %v4182
  %v4188 = vadd.f32 %v4127, %v4182
  %v4189 = vadd.f32 %v4132, %v4182
  %v4190 = vadd.f32 %v4137, %v4182
  %v4191 = vadd.f32 %v4142, %v4182
  %v4192 = vadd.f32 %v4147, %v4182
  %v4193 = vadd.f32 %v4152, %v4182
  %v4194 = vadd.f32 %v4157, %v4182
  %v4195 = vadd.f32 %v4162, %v4182
  %v4196 = vadd.f32 %v4167, %v4182
  %v4197 = vadd.f32 %v4172, %v4182
  %v4198 = vadd.f32 %v4177, %v4182
  %v4199 = vmul.f32 %v4183, 0.2
  %v4200 = vmul.f32 %v4184, 0.2
  %v4201 = vmul.f32 %v4185, 0.2
  %v4202 = vmul.f32 %v4186, 0.2
  %v4203 = vmul.f32 %v4187, 0.2
  %v4204 = vmul.f32 %v4188, 0.2
  %v4205 = vmul.f32 %v4189, 0.2
  %v4206 = vmul.f32 %v4190, 0.2
  %v4207 = vmul.f32 %v4191, 0.2
  %v4208 = vmul.f32 %v4192, 0.2
  %v4209 = vmul.f32 %v4193, 0.2
  %v4210 = vmul.f32 %v4194, 0.2
  %v4211 = vmul.f32 %v4195, 0.2
  %v4212 = vmul.f32 %v4196, 0.2
  %v4213 = vmul.f32 %v4197, 0.2
  %v4214 = vmul.f32 %v4198, 0.2
  %v4215 = vmax.f32 %v4183, %v4199
  %v4216 = vmax.f32 %v4184, %v4200
  %v4217 = vmax.f32 %v4185, %v4201
  %v4218 = vmax.f32 %v4186, %v4202
  %v4219 = vmax.f32 %v4187, %v4203
  %v4220 = vmax.f32 %v4188, %v4204
  %v4221 = vmax.f32 %v4189, %v4205
  %v4222 = vmax.f32 %v4190, %v4206
  %v4223 = vmax.f32 %v4191, %v4207
  %v4224 = vmax.f32 %v4192, %v4208
  %v4225 = vmax.f32 %v4193, %v4209
  %v4226 = vmax.f32 %v4194, %v4210
  %v4227 = vmax.f32 %v4195, %v4211
  %v4228 = vmax.f32 %v4196, %v4212
  %v4229 = vmax.f32 %v4197, %v4213
  %v4230 = vmax.f32 %v4198, %v4214
  %4232 = vset.pattern.permute.xlu0 0
  %4233 = vperm.xlu0 %4232, %v4083
  %v4234 = vpop.permute.xlu0 %4233
  %4237 = vset.pattern.permute.xlu0 0
  %4238 = vperm.xlu0 %4237, %v4084
  %v4239 = vpop.permute.xlu0 %4238
  %4242 = vset.pattern.permute.xlu0 0
  %4243 = vperm.xlu0 %4242, %v4085
  %v4244 = vpop.permute.xlu0 %4243
  %4247 = vset.pattern.permute.xlu0 0
  %4248 = vperm.xlu0 %4247, %v4086
  %v4249 = vpop.permute.xlu0 %4248
  %4252 = vset.pattern.permute.xlu0 0
  %4253 = vperm.xlu0 %4252, %v4087
  %v4254 = vpop.permute.xlu0 %4253
  %4257 = vset.pattern.permute.xlu0 0
  %4258 = vperm.xlu0 %4257, %v4088
  %v4259 = vpop.permute.xlu0 %4258
  %4262 = vset.pattern.permute.xlu0 0
  %4263 = vperm.xlu0 %4262, %v4089
  %v4264 = vpop.permute.xlu0 %4263
  %4267 = vset.pattern.permute.xlu0 0
  %4268 = vperm.xlu0 %4267, %v4090
  %v4269 = vpop.permute.xlu0 %4268
  %4272 = vset.pattern.permute.xlu0 0
  %4273 = vperm.xlu0 %4272, %v4091
  %v4274 = vpop.permute.xlu0 %4273
  %4277 = vset.pattern.permute.xlu0 0
  %4278 = vperm.xlu0 %4277, %v4092
  %v4279 = vpop.permute.xlu0 %4278
  %4282 = vset.pattern.permute.xlu0 0
  %4283 = vperm.xlu0 %4282, %v4093
  %v4284 = vpop.permute.xlu0 %4283
  %4287 = vset.pattern.permute.xlu0 0
  %4288 = vperm.xlu0 %4287, %v4094
  %v4289 = vpop.permute.xlu0 %4288
  %4292 = vset.pattern.permute.xlu0 0
  %4293 = vperm.xlu0 %4292, %v4095
  %v4294 = vpop.permute.xlu0 %4293
  %4297 = vset.pattern.permute.xlu0 0
  %4298 = vperm.xlu0 %4297, %v4096
  %v4299 = vpop.permute.xlu0 %4298
  %4302 = vset.pattern.permute.xlu0 0
  %4303 = vperm.xlu0 %4302, %v4097
  %v4304 = vpop.permute.xlu0 %4303
  %4307 = vset.pattern.permute.xlu0 0
  %4308 = vperm.xlu0 %4307, %v4098
  %v4309 = vpop.permute.xlu0 %4308
  %v4311 = vsub.f32 %v4215, %v4234
  %v4312 = vsub.f32 %v4216, %v4239
  %v4313 = vsub.f32 %v4217, %v4244
  %v4314 = vsub.f32 %v4218, %v4249
  %v4315 = vsub.f32 %v4219, %v4254
  %v4316 = vsub.f32 %v4220, %v4259
  %v4317 = vsub.f32 %v4221, %v4264
  %v4318 = vsub.f32 %v4222, %v4269
  %v4319 = vsub.f32 %v4223, %v4274
  %v4320 = vsub.f32 %v4224, %v4279
  %v4321 = vsub.f32 %v4225, %v4284
  %v4322 = vsub.f32 %v4226, %v4289
  %v4323 = vsub.f32 %v4227, %v4294
  %v4324 = vsub.f32 %v4228, %v4299
  %v4325 = vsub.f32 %v4229, %v4304
  %v4326 = vsub.f32 %v4230, %v4309
  %v4327 = vmul.f32 %v4311, 1.442695
  %v4328 = vpow.pop %v4327
  %v4329 = vmul.f32 %v4312, 1.442695
  %v4330 = vpow.pop %v4329
  %v4331 = vmul.f32 %v4313, 1.442695
  %v4332 = vpow.pop %v4331
  %v4333 = vmul.f32 %v4314, 1.442695
  %v4334 = vpow.pop %v4333
  %v4335 = vmul.f32 %v4315, 1.442695
  %v4336 = vpow.pop %v4335
  %v4337 = vmul.f32 %v4316, 1.442695
  %v4338 = vpow.pop %v4337
  %v4339 = vmul.f32 %v4317, 1.442695
  %v4340 = vpow.pop %v4339
  %v4341 = vmul.f32 %v4318, 1.442695
  %v4342 = vpow.pop %v4341
  %v4343 = vmul.f32 %v4319, 1.442695
  %v4344 = vpow.pop %v4343
  %v4345 = vmul.f32 %v4320, 1.442695
  %v4346 = vpow.pop %v4345
  %v4347 = vmul.f32 %v4321, 1.442695
  %v4348 = vpow.pop %v4347
  %v4349 = vmul.f32 %v4322, 1.442695
  %v4350 = vpow.pop %v4349
  %v4351 = vmul.f32 %v4323, 1.442695
  %v4352 = vpow.pop %v4351
  %v4353 = vmul.f32 %v4324, 1.442695
  %v4354 = vpow.pop %v4353
  %v4355 = vmul.f32 %v4325, 1.442695
  %v4356 = vpow.pop %v4355
  %v4357 = vmul.f32 %v4326, 1.442695
  %v4358 = vpow.pop %v4357
  %v4359 = vmul.f32 %v4328, %v760
  %v4360 = vmul.f32 %v4330, %v761
  %v4361 = vmul.f32 %v4332, %v762
  %v4362 = vmul.f32 %v4334, %v763
  %v4363 = vmul.f32 %v4336, %v764
  %v4364 = vmul.f32 %v4338, %v765
  %v4365 = vmul.f32 %v4340, %v766
  %v4366 = vmul.f32 %v4342, %v767
  %v4367 = vmul.f32 %v4344, %v768
  %v4368 = vmul.f32 %v4346, %v769
  %v4369 = vmul.f32 %v4348, %v770
  %v4370 = vmul.f32 %v4350, %v771
  %v4371 = vmul.f32 %v4352, %v772
  %v4372 = vmul.f32 %v4354, %v773
  %v4373 = vmul.f32 %v4356, %v774
  %v4374 = vmul.f32 %v4358, %v775
  %4375 = vmatprep.subr.mxu0 0.0
  %4376 = vmatpush1.msra.mxu0 %v3834
  %4377 = vmatprep.subr.mxu0 0.0
  %4378 = vmatpush1.msra.mxu0 %v3835
  %4379 = vmatprep.subr.mxu0 0.0
  %4380 = vmatpush1.msra.mxu0 %v3836
  %4381 = vmatprep.subr.mxu0 0.0
  %4382 = vmatpush1.msra.mxu0 %v3837
  %4383 = vmatprep.subr.mxu0 0.0
  %4384 = vmatpush1.msra.mxu0 %v3838
  %4385 = vmatprep.subr.mxu0 0.0
  %4386 = vmatpush1.msra.mxu0 %v3839
  %4387 = vmatprep.subr.mxu0 0.0
  %4388 = vmatpush1.msra.mxu0 %v3840
  %4389 = vmatprep.subr.mxu0 0.0
  %4390 = vmatpush1.msra.mxu0 %v3841
  %4391 = vmatprep.subr.mxu0 0.0
  %4392 = vmatpush1.msra.mxu0 %v3842
  %4393 = vmatprep.subr.mxu0 0.0
  %4394 = vmatpush1.msra.mxu0 %v3843
  %4395 = vmatprep.subr.mxu0 0.0
  %4396 = vmatpush1.msra.mxu0 %v3844
  %4397 = vmatprep.subr.mxu0 0.0
  %4398 = vmatpush1.msra.mxu0 %v3845
  %4399 = vmatprep.subr.mxu0 0.0
  %4400 = vmatpush1.msra.mxu0 %v3846
  %4401 = vmatprep.subr.mxu0 0.0
  %4402 = vmatpush1.msra.mxu0 %v3847
  %4403 = vmatprep.subr.mxu0 0.0
  %4404 = vmatpush1.msra.mxu0 %v3848
  %4405 = vmatprep.subr.mxu0 0.0
  %4406 = vmatpush1.msra.mxu0 %v3849
  %4407 = vmatprep.subr.mxu0 0.0
  %4408 = vmatpush1.msra.mxu0 0.0
  %4409 = vmatprep.subr.mxu0 0.0
  %4410 = vmatpush1.msra.mxu0 0.0
  %4411 = vmatprep.subr.mxu0 0.0
  %4412 = vmatpush1.msra.mxu0 0.0
  %4413 = vmatprep.subr.mxu0 0.0
  %4414 = vmatpush1.msra.mxu0 0.0
  %4415 = vmatprep.subr.mxu0 0.0
  %4416 = vmatpush1.msra.mxu0 0.0
  %4417 = vmatprep.subr.mxu0 0.0
  %4418 = vmatpush1.msra.mxu0 0.0
  %4419 = vmatprep.subr.mxu0 0.0
  %4420 = vmatpush1.msra.mxu0 0.0
  %4421 = vmatprep.subr.mxu0 0.0
  %4422 = vmatpush1.msra.mxu0 0.0
  %4423 = vmatprep.subr.mxu0 0.0
  %4424 = vmatpush1.msra.mxu0 0.0
  %4425 = vmatprep.subr.mxu0 0.0
  %4426 = vmatpush1.msra.mxu0 0.0
  %4427 = vmatprep.subr.mxu0 0.0
  %4428 = vmatpush1.msra.mxu0 0.0
  %4429 = vmatprep.subr.mxu0 0.0
  %4430 = vmatpush1.msra.mxu0 0.0
  %4431 = vmatprep.subr.mxu0 0.0
  %4432 = vmatpush1.msra.mxu0 0.0
  %4433 = vmatprep.subr.mxu0 0.0
  %4434 = vmatpush1.msra.mxu0 0.0
  %4435 = vmatprep.subr.mxu0 0.0
  %4436 = vmatpush1.msra.mxu0 0.0
  %4437 = vmatprep.subr.mxu0 0.0
  %4438 = vmatpush1.msra.mxu0 0.0
  %4439 = vmatprep.mubr.f32.mxu0 0.0
  %4440 = vmatmul.mubr.f32.gmra.mrb[0].mxu0 %v4359
  %v4441 = vpop.f32.mrb[0].mxu0
  %v4442 = vadd.f32 0.0, %v4441
  %v4443 = vpop.f32.mrb[0].mxu0
  %4444 = vmatprep.mubr.f32.mxu0 0.0
  %4445 = vmatmul.mubr.f32.gmra.mrb[0].mxu0 %v4360
  %v4446 = vpop.f32.mrb[0].mxu0
  %v4447 = vadd.f32 0.0, %v4446
  %v4448 = vpop.f32.mrb[0].mxu0
  %4449 = vmatprep.mubr.f32.mxu0 0.0
  %4450 = vmatmul.mubr.f32.gmra.mrb[0].mxu0 %v4361
  %v4451 = vpop.f32.mrb[0].mxu0
  %v4452 = vadd.f32 0.0, %v4451
  %v4453 = vpop.f32.mrb[0].mxu0
  %4454 = vmatprep.mubr.f32.mxu0 0.0
  %4455 = vmatmul.mubr.f32.gmra.mrb[0].mxu0 %v4362
  %v4456 = vpop.f32.mrb[0].mxu0
  %v4457 = vadd.f32 0.0, %v4456
  %v4458 = vpop.f32.mrb[0].mxu0
  %4459 = vmatprep.mubr.f32.mxu0 0.0
  %4460 = vmatmul.mubr.f32.gmra.mrb[0].mxu0 %v4363
  %v4461 = vpop.f32.mrb[0].mxu0
  %v4462 = vadd.f32 0.0, %v4461
  %v4463 = vpop.f32.mrb[0].mxu0
  %4464 = vmatprep.mubr.f32.mxu0 0.0
  %4465 = vmatmul.mubr.f32.gmra.mrb[0].mxu0 %v4364
  %v4466 = vpop.f32.mrb[0].mxu0
  %v4467 = vadd.f32 0.0, %v4466
  %v4468 = vpop.f32.mrb[0].mxu0
  %4469 = vmatprep.mubr.f32.mxu0 0.0
  %4470 = vmatmul.mubr.f32.gmra.mrb[0].mxu0 %v4365
  %v4471 = vpop.f32.mrb[0].mxu0
  %v4472 = vadd.f32 0.0, %v4471
  %v4473 = vpop.f32.mrb[0].mxu0
  %4474 = vmatprep.mubr.f32.mxu0 0.0
  %4475 = vmatmul.mubr.f32.gmra.mrb[0].mxu0 %v4366
  %v4476 = vpop.f32.mrb[0].mxu0
  %v4477 = vadd.f32 0.0, %v4476
  %v4478 = vpop.f32.mrb[0].mxu0
  %4479 = vmatprep.mubr.f32.mxu0 0.0
  %4480 = vmatmul.mubr.f32.gmra.mrb[0].mxu0 %v4367
  %v4481 = vpop.f32.mrb[0].mxu0
  %v4482 = vadd.f32 0.0, %v4481
  %v4483 = vpop.f32.mrb[0].mxu0
  %4484 = vmatprep.mubr.f32.mxu0 0.0
  %4485 = vmatmul.mubr.f32.gmra.mrb[0].mxu0 %v4368
  %v4486 = vpop.f32.mrb[0].mxu0
  %v4487 = vadd.f32 0.0, %v4486
  %v4488 = vpop.f32.mrb[0].mxu0
  %4489 = vmatprep.mubr.f32.mxu0 0.0
  %4490 = vmatmul.mubr.f32.gmra.mrb[0].mxu0 %v4369
  %v4491 = vpop.f32.mrb[0].mxu0
  %v4492 = vadd.f32 0.0, %v4491
  %v4493 = vpop.f32.mrb[0].mxu0
  %4494 = vmatprep.mubr.f32.mxu0 0.0
  %4495 = vmatmul.mubr.f32.gmra.mrb[0].mxu0 %v4370
  %v4496 = vpop.f32.mrb[0].mxu0
  %v4497 = vadd.f32 0.0, %v4496
  %v4498 = vpop.f32.mrb[0].mxu0
  %4499 = vmatprep.mubr.f32.mxu0 0.0
  %4500 = vmatmul.mubr.f32.gmra.mrb[0].mxu0 %v4371
  %v4501 = vpop.f32.mrb[0].mxu0
  %v4502 = vadd.f32 0.0, %v4501
  %v4503 = vpop.f32.mrb[0].mxu0
  %4504 = vmatprep.mubr.f32.mxu0 0.0
  %4505 = vmatmul.mubr.f32.gmra.mrb[0].mxu0 %v4372
  %v4506 = vpop.f32.mrb[0].mxu0
  %v4507 = vadd.f32 0.0, %v4506
  %v4508 = vpop.f32.mrb[0].mxu0
  %4509 = vmatprep.mubr.f32.mxu0 0.0
  %4510 = vmatmul.mubr.f32.gmra.mrb[0].mxu0 %v4373
  %v4511 = vpop.f32.mrb[0].mxu0
  %v4512 = vadd.f32 0.0, %v4511
  %v4513 = vpop.f32.mrb[0].mxu0
  %4514 = vmatprep.mubr.f32.mxu0 0.0
  %4515 = vmatmul.mubr.f32.gmra.mrb[0].mxu0 %v4374
  %v4516 = vpop.f32.mrb[0].mxu0
  %v4517 = vadd.f32 0.0, %v4516
  %v4518 = vpop.f32.mrb[0].mxu0
  %4519 = vdwg.mxu0
  %v4520 = vrcp.pop %v4442
  %v4521 = vmul.f32 1.0, %v4520
  %v4522 = vrcp.pop %v4447
  %v4523 = vmul.f32 1.0, %v4522
  %v4524 = vrcp.pop %v4452
  %v4525 = vmul.f32 1.0, %v4524
  %v4526 = vrcp.pop %v4457
  %v4527 = vmul.f32 1.0, %v4526
  %v4528 = vrcp.pop %v4462
  %v4529 = vmul.f32 1.0, %v4528
  %v4530 = vrcp.pop %v4467
  %v4531 = vmul.f32 1.0, %v4530
  %v4532 = vrcp.pop %v4472
  %v4533 = vmul.f32 1.0, %v4532
  %v4534 = vrcp.pop %v4477
  %v4535 = vmul.f32 1.0, %v4534
  %v4536 = vrcp.pop %v4482
  %v4537 = vmul.f32 1.0, %v4536
  %v4538 = vrcp.pop %v4487
  %v4539 = vmul.f32 1.0, %v4538
  %v4540 = vrcp.pop %v4492
  %v4541 = vmul.f32 1.0, %v4540
  %v4542 = vrcp.pop %v4497
  %v4543 = vmul.f32 1.0, %v4542
  %v4544 = vrcp.pop %v4502
  %v4545 = vmul.f32 1.0, %v4544
  %v4546 = vrcp.pop %v4507
  %v4547 = vmul.f32 1.0, %v4546
  %v4548 = vrcp.pop %v4512
  %v4549 = vmul.f32 1.0, %v4548
  %v4550 = vrcp.pop %v4517
  %v4551 = vmul.f32 1.0, %v4550
  %4553 = vset.pattern.permute.xlu0 127
  %4554 = vperm.xlu0 %4553, %v4521
  %v4555 = vpop.permute.xlu0 %4554
  %4558 = vset.pattern.permute.xlu0 127
  %4559 = vperm.xlu0 %4558, %v4523
  %v4560 = vpop.permute.xlu0 %4559
  %4563 = vset.pattern.permute.xlu0 127
  %4564 = vperm.xlu0 %4563, %v4525
  %v4565 = vpop.permute.xlu0 %4564
  %4568 = vset.pattern.permute.xlu0 127
  %4569 = vperm.xlu0 %4568, %v4527
  %v4570 = vpop.permute.xlu0 %4569
  %4573 = vset.pattern.permute.xlu0 127
  %4574 = vperm.xlu0 %4573, %v4529
  %v4575 = vpop.permute.xlu0 %4574
  %4578 = vset.pattern.permute.xlu0 127
  %4579 = vperm.xlu0 %4578, %v4531
  %v4580 = vpop.permute.xlu0 %4579
  %4583 = vset.pattern.permute.xlu0 127
  %4584 = vperm.xlu0 %4583, %v4533
  %v4585 = vpop.permute.xlu0 %4584
  %4588 = vset.pattern.permute.xlu0 127
  %4589 = vperm.xlu0 %4588, %v4535
  %v4590 = vpop.permute.xlu0 %4589
  %4593 = vset.pattern.permute.xlu0 127
  %4594 = vperm.xlu0 %4593, %v4537
  %v4595 = vpop.permute.xlu0 %4594
  %4598 = vset.pattern.permute.xlu0 127
  %4599 = vperm.xlu0 %4598, %v4539
  %v4600 = vpop.permute.xlu0 %4599
  %4603 = vset.pattern.permute.xlu0 127
  %4604 = vperm.xlu0 %4603, %v4541
  %v4605 = vpop.permute.xlu0 %4604
  %4608 = vset.pattern.permute.xlu0 127
  %4609 = vperm.xlu0 %4608, %v4543
  %v4610 = vpop.permute.xlu0 %4609
  %4613 = vset.pattern.permute.xlu0 127
  %4614 = vperm.xlu0 %4613, %v4545
  %v4615 = vpop.permute.xlu0 %4614
  %4618 = vset.pattern.permute.xlu0 127
  %4619 = vperm.xlu0 %4618, %v4547
  %v4620 = vpop.permute.xlu0 %4619
  %4623 = vset.pattern.permute.xlu0 127
  %4624 = vperm.xlu0 %4623, %v4549
  %v4625 = vpop.permute.xlu0 %4624
  %4628 = vset.pattern.permute.xlu0 127
  %4629 = vperm.xlu0 %4628, %v4551
  %v4630 = vpop.permute.xlu0 %4629
  %v4632 = vmul.f32 %v4442, %v4555
  %v4633 = vmul.f32 %v4447, %v4560
  %v4634 = vmul.f32 %v4452, %v4565
  %v4635 = vmul.f32 %v4457, %v4570
  %v4636 = vmul.f32 %v4462, %v4575
  %v4637 = vmul.f32 %v4467, %v4580
  %v4638 = vmul.f32 %v4472, %v4585
  %v4639 = vmul.f32 %v4477, %v4590
  %v4640 = vmul.f32 %v4482, %v4595
  %v4641 = vmul.f32 %v4487, %v4600
  %v4642 = vmul.f32 %v4492, %v4605
  %v4643 = vmul.f32 %v4497, %v4610
  %v4644 = vmul.f32 %v4502, %v4615
  %v4645 = vmul.f32 %v4507, %v4620
  %v4646 = vmul.f32 %v4512, %v4625
  %v4647 = vmul.f32 %v4517, %v4630
  %v4648 = vld [vmem:[%s10] sm:$0x1]
  %v4650 = vlaneseq
  %v4651 = vshrl.u32 %v4650, 7
  %v4652 = vsub.s32 0, %v4651
  %v4653 = vrot.slane %v4648, %v4652
  %v4655 = vadd.f32 %v4632, %v4653
  %v4656 = vadd.f32 %v4633, %v4653
  %v4657 = vadd.f32 %v4634, %v4653
  %v4658 = vadd.f32 %v4635, %v4653
  %v4659 = vadd.f32 %v4636, %v4653
  %v4660 = vadd.f32 %v4637, %v4653
  %v4661 = vadd.f32 %v4638, %v4653
  %v4662 = vadd.f32 %v4639, %v4653
  %v4663 = vadd.f32 %v4640, %v4653
  %v4664 = vadd.f32 %v4641, %v4653
  %v4665 = vadd.f32 %v4642, %v4653
  %v4666 = vadd.f32 %v4643, %v4653
  %v4667 = vadd.f32 %v4644, %v4653
  %v4668 = vadd.f32 %v4645, %v4653
  %v4669 = vadd.f32 %v4646, %v4653
  %v4670 = vadd.f32 %v4647, %v4653
  %vm4671 = vcmp.lt.s32.totalorder %v232, 4
  %v4672 = vsel %vm4671, %v4655, -1e+30
  %v4673 = vsel %vm4671, %v4656, -1e+30
  %v4674 = vsel %vm4671, %v4657, -1e+30
  %v4675 = vsel %vm4671, %v4658, -1e+30
  %v4676 = vsel %vm4671, %v4659, -1e+30
  %v4677 = vsel %vm4671, %v4660, -1e+30
  %v4678 = vsel %vm4671, %v4661, -1e+30
  %v4679 = vsel %vm4671, %v4662, -1e+30
  %v4680 = vsel %vm4671, %v4663, -1e+30
  %v4681 = vsel %vm4671, %v4664, -1e+30
  %v4682 = vsel %vm4671, %v4665, -1e+30
  %v4683 = vsel %vm4671, %v4666, -1e+30
  %v4684 = vsel %vm4671, %v4667, -1e+30
  %v4685 = vsel %vm4671, %v4668, -1e+30
  %v4686 = vsel %vm4671, %v4669, -1e+30
  %v4687 = vsel %vm4671, %v4670, -1e+30
  %4688 = vmax.xlane.f32.xlu0 %v4672
  %v4689 = vpop.xlane.xlu0 %4688
  %4690 = vmax.xlane.f32.xlu0 %v4673
  %v4691 = vpop.xlane.xlu0 %4690
  %4692 = vmax.xlane.f32.xlu0 %v4674
  %v4693 = vpop.xlane.xlu0 %4692
  %4694 = vmax.xlane.f32.xlu0 %v4675
  %v4695 = vpop.xlane.xlu0 %4694
  %4696 = vmax.xlane.f32.xlu0 %v4676
  %v4697 = vpop.xlane.xlu0 %4696
  %4698 = vmax.xlane.f32.xlu0 %v4677
  %v4699 = vpop.xlane.xlu0 %4698
  %4700 = vmax.xlane.f32.xlu0 %v4678
  %v4701 = vpop.xlane.xlu0 %4700
  %4702 = vmax.xlane.f32.xlu0 %v4679
  %v4703 = vpop.xlane.xlu0 %4702
  %4704 = vmax.xlane.f32.xlu0 %v4680
  %v4705 = vpop.xlane.xlu0 %4704
  %4706 = vmax.xlane.f32.xlu0 %v4681
  %v4707 = vpop.xlane.xlu0 %4706
  %4708 = vmax.xlane.f32.xlu0 %v4682
  %v4709 = vpop.xlane.xlu0 %4708
  %4710 = vmax.xlane.f32.xlu0 %v4683
  %v4711 = vpop.xlane.xlu0 %4710
  %4712 = vmax.xlane.f32.xlu0 %v4684
  %v4713 = vpop.xlane.xlu0 %4712
  %4714 = vmax.xlane.f32.xlu0 %v4685
  %v4715 = vpop.xlane.xlu0 %4714
  %4716 = vmax.xlane.f32.xlu0 %v4686
  %v4717 = vpop.xlane.xlu0 %4716
  %4718 = vmax.xlane.f32.xlu0 %v4687
  %v4719 = vpop.xlane.xlu0 %4718
  %v4720 = vsub.f32 %v4672, %v4689
  %v4721 = vsub.f32 %v4673, %v4691
  %v4722 = vsub.f32 %v4674, %v4693
  %v4723 = vsub.f32 %v4675, %v4695
  %v4724 = vsub.f32 %v4676, %v4697
  %v4725 = vsub.f32 %v4677, %v4699
  %v4726 = vsub.f32 %v4678, %v4701
  %v4727 = vsub.f32 %v4679, %v4703
  %v4728 = vsub.f32 %v4680, %v4705
  %v4729 = vsub.f32 %v4681, %v4707
  %v4730 = vsub.f32 %v4682, %v4709
  %v4731 = vsub.f32 %v4683, %v4711
  %v4732 = vsub.f32 %v4684, %v4713
  %v4733 = vsub.f32 %v4685, %v4715
  %v4734 = vsub.f32 %v4686, %v4717
  %v4735 = vsub.f32 %v4687, %v4719
  %v4736 = vmul.f32 %v4720, 1.442695
  %v4737 = vpow.pop %v4736
  %v4738 = vmul.f32 %v4721, 1.442695
  %v4739 = vpow.pop %v4738
  %v4740 = vmul.f32 %v4722, 1.442695
  %v4741 = vpow.pop %v4740
  %v4742 = vmul.f32 %v4723, 1.442695
  %v4743 = vpow.pop %v4742
  %v4744 = vmul.f32 %v4724, 1.442695
  %v4745 = vpow.pop %v4744
  %v4746 = vmul.f32 %v4725, 1.442695
  %v4747 = vpow.pop %v4746
  %v4748 = vmul.f32 %v4726, 1.442695
  %v4749 = vpow.pop %v4748
  %v4750 = vmul.f32 %v4727, 1.442695
  %v4751 = vpow.pop %v4750
  %v4752 = vmul.f32 %v4728, 1.442695
  %v4753 = vpow.pop %v4752
  %v4754 = vmul.f32 %v4729, 1.442695
  %v4755 = vpow.pop %v4754
  %v4756 = vmul.f32 %v4730, 1.442695
  %v4757 = vpow.pop %v4756
  %v4758 = vmul.f32 %v4731, 1.442695
  %v4759 = vpow.pop %v4758
  %v4760 = vmul.f32 %v4732, 1.442695
  %v4761 = vpow.pop %v4760
  %v4762 = vmul.f32 %v4733, 1.442695
  %v4763 = vpow.pop %v4762
  %v4764 = vmul.f32 %v4734, 1.442695
  %v4765 = vpow.pop %v4764
  %v4766 = vmul.f32 %v4735, 1.442695
  %v4767 = vpow.pop %v4766
  %4768 = vadd.xlane.f32.xlu0 %v4737
  %v4769 = vpop.xlane.xlu0 %4768
  %4770 = vadd.xlane.f32.xlu0 %v4739
  %v4771 = vpop.xlane.xlu0 %4770
  %4772 = vadd.xlane.f32.xlu0 %v4741
  %v4773 = vpop.xlane.xlu0 %4772
  %4774 = vadd.xlane.f32.xlu0 %v4743
  %v4775 = vpop.xlane.xlu0 %4774
  %4776 = vadd.xlane.f32.xlu0 %v4745
  %v4777 = vpop.xlane.xlu0 %4776
  %4778 = vadd.xlane.f32.xlu0 %v4747
  %v4779 = vpop.xlane.xlu0 %4778
  %4780 = vadd.xlane.f32.xlu0 %v4749
  %v4781 = vpop.xlane.xlu0 %4780
  %4782 = vadd.xlane.f32.xlu0 %v4751
  %v4783 = vpop.xlane.xlu0 %4782
  %4784 = vadd.xlane.f32.xlu0 %v4753
  %v4785 = vpop.xlane.xlu0 %4784
  %4786 = vadd.xlane.f32.xlu0 %v4755
  %v4787 = vpop.xlane.xlu0 %4786
  %4788 = vadd.xlane.f32.xlu0 %v4757
  %v4789 = vpop.xlane.xlu0 %4788
  %4790 = vadd.xlane.f32.xlu0 %v4759
  %v4791 = vpop.xlane.xlu0 %4790
  %4792 = vadd.xlane.f32.xlu0 %v4761
  %v4793 = vpop.xlane.xlu0 %4792
  %4794 = vadd.xlane.f32.xlu0 %v4763
  %v4795 = vpop.xlane.xlu0 %4794
  %4796 = vadd.xlane.f32.xlu0 %v4765
  %v4797 = vpop.xlane.xlu0 %4796
  %4798 = vadd.xlane.f32.xlu0 %v4767
  %v4799 = vpop.xlane.xlu0 %4798
  %v4800 = vlog2.pop %v4769
  %v4801 = vmul.f32 %v4800, 0.6931472
  %v4802 = vlog2.pop %v4771
  %v4803 = vmul.f32 %v4802, 0.6931472
  %v4804 = vlog2.pop %v4773
  %v4805 = vmul.f32 %v4804, 0.6931472
  %v4806 = vlog2.pop %v4775
  %v4807 = vmul.f32 %v4806, 0.6931472
  %v4808 = vlog2.pop %v4777
  %v4809 = vmul.f32 %v4808, 0.6931472
  %v4810 = vlog2.pop %v4779
  %v4811 = vmul.f32 %v4810, 0.6931472
  %v4812 = vlog2.pop %v4781
  %v4813 = vmul.f32 %v4812, 0.6931472
  %v4814 = vlog2.pop %v4783
  %v4815 = vmul.f32 %v4814, 0.6931472
  %v4816 = vlog2.pop %v4785
  %v4817 = vmul.f32 %v4816, 0.6931472
  %v4818 = vlog2.pop %v4787
  %v4819 = vmul.f32 %v4818, 0.6931472
  %v4820 = vlog2.pop %v4789
  %v4821 = vmul.f32 %v4820, 0.6931472
  %v4822 = vlog2.pop %v4791
  %v4823 = vmul.f32 %v4822, 0.6931472
  %v4824 = vlog2.pop %v4793
  %v4825 = vmul.f32 %v4824, 0.6931472
  %v4826 = vlog2.pop %v4795
  %v4827 = vmul.f32 %v4826, 0.6931472
  %v4828 = vlog2.pop %v4797
  %v4829 = vmul.f32 %v4828, 0.6931472
  %v4830 = vlog2.pop %v4799
  %v4831 = vmul.f32 %v4830, 0.6931472
  %v4832 = vsub.f32 %v4720, %v4801
  %v4833 = vsub.f32 %v4721, %v4803
  %v4834 = vsub.f32 %v4722, %v4805
  %v4835 = vsub.f32 %v4723, %v4807
  %v4836 = vsub.f32 %v4724, %v4809
  %v4837 = vsub.f32 %v4725, %v4811
  %v4838 = vsub.f32 %v4726, %v4813
  %v4839 = vsub.f32 %v4727, %v4815
  %v4840 = vsub.f32 %v4728, %v4817
  %v4841 = vsub.f32 %v4729, %v4819
  %v4842 = vsub.f32 %v4730, %v4821
  %v4843 = vsub.f32 %v4731, %v4823
  %v4844 = vsub.f32 %v4732, %v4825
  %v4845 = vsub.f32 %v4733, %v4827
  %v4846 = vsub.f32 %v4734, %v4829
  %v4847 = vsub.f32 %v4735, %v4831
  %4848 = vst [vmem:[%s11] sm:$0xff] %v4832
  %4849 = vst [vmem:[%s11 + $0x8] sm:$0xff] %v4833
  %4850 = vst [vmem:[%s11 + $0x10] sm:$0xff] %v4834
  %4851 = vst [vmem:[%s11 + $0x18] sm:$0xff] %v4835
  %4852 = vst [vmem:[%s11 + $0x20] sm:$0xff] %v4836
  %4853 = vst [vmem:[%s11 + $0x28] sm:$0xff] %v4837
  %4854 = vst [vmem:[%s11 + $0x30] sm:$0xff] %v4838
  %4855 = vst [vmem:[%s11 + $0x38] sm:$0xff] %v4839
  %4856 = vst [vmem:[%s11 + $0x40] sm:$0xff] %v4840
  %4857 = vst [vmem:[%s11 + $0x48] sm:$0xff] %v4841
  %4858 = vst [vmem:[%s11 + $0x50] sm:$0xff] %v4842
  %4859 = vst [vmem:[%s11 + $0x58] sm:$0xff] %v4843
  %4860 = vst [vmem:[%s11 + $0x60] sm:$0xff] %v4844
  %4861 = vst [vmem:[%s11 + $0x68] sm:$0xff] %v4845
  %4862 = vst [vmem:[%s11 + $0x70] sm:$0xff] %v4846
  %4863 = vst [vmem:[%s11 + $0x78] sm:$0xff] %v4847
  // Predicated region
  $region46: #{net_amazon_gat_heads.1} parent=0 // pred_check
    _
  $region47: #{net_amazon_gat_heads.1} parent=0 // pred_check_branch
    %4865 = sbr.rel (0) target = $region49
  $region48: #{net_amazon_gat_heads.1} parent=0 // pred_region
    _
  $region49: #{net_amazon_gat_heads.1} parent=0 // pred_fallthru
    _
  // Predicated region
  $region50: #{net_amazon_gat_heads.1} parent=0 // pred_check
    _
  $region51: #{net_amazon_gat_heads.1} parent=0 // pred_check_branch
    %4867 = sbr.rel (0) target = $region53
  $region52: #{net_amazon_gat_heads.1} parent=0 // pred_region
    _
  $region53: #{net_amazon_gat_heads.1} parent=0 // pred_fallthru
    _

</llo_original>
